<compile_context>
chip_gen: v6e
topology: v6e:2x2x1
jax: 0.10.0
libtpu: 0.0.40
codegen_flags: <defaults>
</compile_context>

<pallas_src>
import jax
import jax.numpy as jnp
from jax.experimental import pallas as pl
from jax.experimental.pallas import tpu as pltpu

VOCAB = 100
B, S, H = 2, 8, 128          # batch, seq, hidden (mini bert hidden)
BS = B * S                    # 16 flattened rows
NH = 4                        # attention heads
DH = H // NH                  # head dim = 32
FF = 4 * H                    # feed-forward dim = 512
INFORM = H // 4               # 32  (inform_size)
RNN = H // 8                  # 16  (rnn_size); BiLSTM output = 2*RNN = INFORM
NCLASS = 4
FILTER_SIZES = (2, 3, 4)
MAXFS = max(FILTER_SIZES)
NFILTERS = H                  # 128
LN_EPS = 1e-12

# ----------------------- packed-slab row layout (bf16) ------------------------
# "wide" slab (512 lanes): FFN up-proj + fused QKV (lane-padded 384 -> 512)
W_ROW_F1 = 0                  # (H, FF)
W_ROW_F1B = 128               # (1, FF)
W_ROW_QKV = 144               # (H, 3H)  [Wq | Wk | Wv]
W_ROW_QKVB = 272              # (1, 3H)
WIDE_ROWS = 288

# "enc" slab (128 lanes): weights needed by the encoder stage (VMEM in_spec)
E_ROW_WO = 0                  # (H, H)
E_ROW_WF2 = 128               # (FF, H)
E_ROW_WP = 640                # (H, H)
E_ROW_VEC = 768               # 8 vec rows
ENC_ROWS = 776
EV_BO, EV_BF2, EV_BP, EV_LN1G, EV_LN1B, EV_LN2G, EV_LN2B = range(7)

# "late" slab (128 lanes): conv / LSTM / head weights (manual DMA overlap)
L_ROW_WC2 = 0                 # (2H, F) im2col conv, filter size 2
L_ROW_WC3 = 256               # (3H, F)
L_ROW_WC4 = 640               # (4H, F)
L_ROW_WIH = 1152              # (H, 8R)   fused LSTM input weights (gate-grouped)
L_ROW_WHH = 1280              # (2R, 8R)  fused block-diagonal recurrent weights
L_ROW_WCL = 1312              # (3F, 128) cnn linear, lane-padded 32 -> 128
L_ROW_WPL = 1696              # (H, 128)  pool linear, lane-padded
L_ROW_WPRED = 1824            # (2*INFORM, 128) predict, lane-padded
L_ROW_VEC = 1888              # 8 vec rows
LATE_ROWS = 1896
LV_BLSTM, LV_BC2, LV_BC3, LV_BC4, LV_BCL, LV_BPL, LV_U, LV_BPRED = range(8)


# ----------------------------- in-kernel helpers -----------------------------
def _layernorm(x, g, b):
    mu = jnp.mean(x, axis=-1, keepdims=True)
    var = jnp.mean((x - mu) ** 2, axis=-1, keepdims=True)
    return (x - mu) * jax.lax.rsqrt(var + LN_EPS) * g + b


def _softmax_last(x, approx=True):
    m = jnp.max(x, axis=-1, keepdims=True)
    e = jnp.exp(x - m)
    s = jnp.sum(e, axis=-1, keepdims=True)
    if approx:
        return e * pl.reciprocal(s, approx=True)      # EUP, frees VALU
    return e / s                                      # exact (final output)


# ------------------------------- fused kernel ---------------------------------
def bganet_kernel(act_ref, wide_ref, enc_ref, late_hbm_ref,
                  probs_ref, attw_ref, late_ref, dma_sem):
    f32, bf16 = jnp.float32, jnp.bfloat16

    # Start the DMA for the late-stage weights so it overlaps with the encoder
    # matmuls; wait just before the TextCNN / LSTM / head sections need them.
    late_cp = pltpu.make_async_copy(late_hbm_ref, late_ref, dma_sem)
    late_cp.start()

    x = act_ref[0:BS, :]                                   # (BS, H) f32 embeddings
    attn_bias = act_ref[BS:2 * BS, :][:, 0:BS]             # (BS, BS) additive mask

    # ---- static views into the encoder weight slabs (bf16) ----
    w_o = enc_ref[E_ROW_WO:E_ROW_WO + H, :]
    w_f2 = enc_ref[E_ROW_WF2:E_ROW_WF2 + FF, :]
    w_p = enc_ref[E_ROW_WP:E_ROW_WP + H, :]
    evec = enc_ref[E_ROW_VEC:E_ROW_VEC + 8, :].astype(f32)
    b_o = evec[EV_BO:EV_BO + 1]
    b_f2 = evec[EV_BF2:EV_BF2 + 1]
    b_p = evec[EV_BP:EV_BP + 1]
    ln1g, ln1b = evec[EV_LN1G:EV_LN1G + 1], evec[EV_LN1B:EV_LN1B + 1]
    ln2g, ln2b = evec[EV_LN2G:EV_LN2G + 1], evec[EV_LN2B:EV_LN2B + 1]

    w_f1 = wide_ref[W_ROW_F1:W_ROW_F1 + H, :]                       # (H, FF)
    b_f1 = wide_ref[W_ROW_F1B:W_ROW_F1B + 1, :].astype(f32)
    w_qkv = wide_ref[W_ROW_QKV:W_ROW_QKV + H, 0:3 * H]              # (H, 3H)
    b_qkv = wide_ref[W_ROW_QKVB:W_ROW_QKVB + 1, 0:3 * H].astype(f32)

    # ------------------- mini-BERT encoder layer + pooler -------------------
    x_bf = x.astype(bf16)
    qkv = jnp.dot(x_bf, w_qkv, preferred_element_type=f32) + b_qkv  # (BS, 3H)
    qkv_bf = qkv.astype(bf16)
    scale = 1.0 / (DH ** 0.5)
    ctxs = []
    for hd in range(NH):                                 # static head loop
        qh = qkv_bf[:, hd * DH:(hd + 1) * DH]
        kh = qkv_bf[:, H + hd * DH:H + (hd + 1) * DH]
        vh = qkv_bf[:, 2 * H + hd * DH:2 * H + (hd + 1) * DH]
        # batch folded into one (16,16) score tile; cross-batch / padded keys
        # killed by the precomputed additive bias.
        sc = jnp.einsum('qd,kd->qk', qh, kh,
                        preferred_element_type=f32) * scale + attn_bias
        p = _softmax_last(sc)
        ctxs.append(jnp.dot(p.astype(bf16), vh, preferred_element_type=f32))
    ctx = jnp.concatenate(ctxs, axis=-1)                             # (BS, H)
    attn = jnp.dot(ctx.astype(bf16), w_o, preferred_element_type=f32) + b_o
    h1 = _layernorm(x + attn, ln1g, ln1b)

    ff = jax.nn.gelu(
        jnp.dot(h1.astype(bf16), w_f1, preferred_element_type=f32) + b_f1,
        approximate=True)
    ff = jnp.dot(ff.astype(bf16), w_f2, preferred_element_type=f32) + b_f2
    h2 = _layernorm(h1 + ff, ln2g, ln2b)                 # last_hidden_state (BS, H)
    h2_bf = h2.astype(bf16)

    cls = jnp.concatenate([h2_bf[b * S:b * S + 1, :] for b in range(B)], axis=0)
    pool = jnp.tanh(jnp.dot(cls, w_p, preferred_element_type=f32) + b_p)  # (B, H)

    # late-stage weights must be resident from here on.
    late_cp.wait()

    lvec = late_ref[L_ROW_VEC:L_ROW_VEC + 8, :].astype(f32)          # (8, 128)
    b_lstm = lvec[LV_BLSTM:LV_BLSTM + 1]
    conv_biases = (lvec[LV_BC2:LV_BC2 + 1], lvec[LV_BC3:LV_BC3 + 1],
                   lvec[LV_BC4:LV_BC4 + 1])
    b_cl = lvec[LV_BCL:LV_BCL + 1, 0:INFORM]
    b_pl = lvec[LV_BPL:LV_BPL + 1, 0:INFORM]
    u_att = lvec[LV_U:LV_U + 1, 0:INFORM]                            # (1, 2R)
    b_pred = lvec[LV_BPRED:LV_BPRED + 1, 0:NCLASS]

    # ------------------------------ TextCNN ---------------------------------
    # Shared im2col on the batch-flattened sequence; windows that wrap across a
    # batch boundary are masked with 0 AFTER ReLU, which is exact for max-pool.
    taps = [h2]
    for k in range(1, MAXFS):
        taps.append(jnp.concatenate([h2[k:, :], h2[:k, :]], axis=0))
    win = jnp.concatenate(taps, axis=-1).astype(bf16)                # (BS, 4H)
    pos = jax.lax.broadcasted_iota(jnp.int32, (BS, 1), 0) % S        # pos in seq
    feats = []
    for (row0, fs), b_c in zip(((L_ROW_WC2, 2), (L_ROW_WC3, 3), (L_ROW_WC4, 4)),
                               conv_biases):
        w_c = late_ref[row0:row0 + fs * H, :]                        # (fs*H, F)
        conv = jnp.dot(win[:, :fs * H], w_c, preferred_element_type=f32) + b_c
        conv = jnp.where(pos < (S - fs + 1), jnp.maximum(conv, 0.0), 0.0)
        feats.append(jnp.max(conv.reshape(B, S, NFILTERS), axis=1))  # (B, F)
    cat = jnp.concatenate(feats, axis=-1)                            # (B, 3F)
    w_cl = late_ref[L_ROW_WCL:L_ROW_WCL + 3 * NFILTERS, :]           # lane-padded
    c_att = jnp.dot(cat.astype(bf16), w_cl,
                    preferred_element_type=f32)[:, 0:INFORM] + b_cl  # (B, INFORM)

    # --------------------- fused bidirectional LSTM -------------------------
    # State packed on lanes: [h_fwd(t) | h_bwd(S-1-t)]; gate-grouped columns
    # [i_f|i_b|f_f|f_b|o_f|o_b|g_f|g_b]; block-diagonal recurrent weights.
    w_ih = late_ref[L_ROW_WIH:L_ROW_WIH + H, :]                      # (H, 8R)
    w_hh = late_ref[L_ROW_WHH:L_ROW_WHH + 2 * RNN, :]                # (2R, 8R)
    xg = (jnp.dot(h2_bf, w_ih, preferred_element_type=f32) + b_lstm
          ).reshape(B, S, 8 * RNN)                                   # (B, S, 128)
    lane = jax.lax.broadcasted_iota(jnp.int32, (1, 8 * RNN), 1)
    is_fwd = (lane % (2 * RNN)) < RNN                                # fwd-gate lanes
    hcur = jnp.zeros((B, 2 * RNN), f32)
    ccur = jnp.zeros((B, 2 * RNN), f32)
    hs = []
    for s in range(S):                       # static unrolled serial recurrence
        xin = jnp.where(is_fwd, xg[:, s, :], xg[:, S - 1 - s, :])
        gates = xin + jnp.dot(hcur.astype(bf16), w_hh, preferred_element_type=f32)
        ifo = jax.nn.sigmoid(gates[:, :6 * RNN])
        gg = jnp.tanh(gates[:, 6 * RNN:])
        ig, fg, og = (ifo[:, :2 * RNN], ifo[:, 2 * RNN:4 * RNN],
                      ifo[:, 4 * RNN:6 * RNN])
        ccur = fg * ccur + ig * gg
        hcur = og * jnp.tanh(ccur)
        hs.append(hcur)                      # packed [h_fwd(s) | h_bwd(S-1-s)]

    # reassemble a time-ordered (B, S, 2R) tile and run attention vectorized
    stacked = jnp.stack(hs, axis=1)                                  # step order
    stacked_rev = jnp.stack(hs[::-1], axis=1)
    hcat = jnp.concatenate([stacked[:, :, :RNN], stacked_rev[:, :, RNN:]],
                           axis=-1)                                  # (B, S, 2R)
    scores = jnp.sum(hcat * u_att[None, :, :], axis=-1)              # (B, S)
    alphas = _softmax_last(scores)
    f_att = jnp.sum(alphas[:, :, None] * hcat, axis=1)               # (B, 2R)
    attw_ref[...] = alphas

    # --------------------- gating + predict + softmax -----------------------
    w_pl = late_ref[L_ROW_WPL:L_ROW_WPL + H, :]
    p_att = jnp.dot(pool.astype(bf16), w_pl,
                    preferred_element_type=f32)[:, 0:INFORM] + b_pl
    zc = jnp.tanh(c_att)
    zf = jnp.tanh(f_att)
    hc = (1.0 - zc) * c_att + zc * p_att
    hf = (1.0 - zf) * f_att + zf * p_att
    hcat2 = jnp.concatenate([hc, hf], axis=-1)                       # (B, 2*INFORM)
    w_pred = late_ref[L_ROW_WPRED:L_ROW_WPRED + 2 * INFORM, :]
    logits = jnp.dot(hcat2.astype(bf16), w_pred,
                     preferred_element_type=f32)[:, 0:NCLASS] + b_pred
    probs_ref[...] = _softmax_last(logits, approx=False)             # exact


# ------------------------------- host wrappers --------------------------------
def _vmem_spec():
    return pl.BlockSpec(memory_space=pltpu.MemorySpace.VMEM)


@jax.jit
def bganet_forward(packed, in_ids, att_masks):
    # Embedding lookup + positions + LN: glue (gather, not the hot path).
    emb = packed['tok_emb'][in_ids] + packed['pos_emb'][None, :, :]
    mu = jnp.mean(emb, -1, keepdims=True)
    var = jnp.mean((emb - mu) ** 2, -1, keepdims=True)
    emb = ((emb - mu) * jax.lax.rsqrt(var + LN_EPS)
           * packed['emb_ln_g'] + packed['emb_ln_b'])
    emb_flat = emb.reshape(BS, H).astype(jnp.float32)

    # additive attention bias for the batch-folded scores:
    # block-diagonal over batch + key-padding mask
    batch_id = jnp.arange(BS, dtype=jnp.int32) // S
    same = batch_id[:, None] == batch_id[None, :]
    keep = (att_masks.reshape(BS) > 0)[None, :]
    bias = jnp.where(same & keep, 0.0, -1e9).astype(jnp.float32)     # (BS, BS)
    bias_pad = jnp.pad(bias, ((0, 0), (0, H - BS)))
    act = jnp.concatenate([emb_flat, bias_pad], axis=0)              # (2*BS, H)

    probs, attn_w = pl.pallas_call(
        bganet_kernel,
        out_shape=(jax.ShapeDtypeStruct((B, NCLASS), jnp.float32),
                   jax.ShapeDtypeStruct((B, S), jnp.float32)),
        in_specs=[_vmem_spec(), _vmem_spec(), _vmem_spec(),
                  pl.BlockSpec(memory_space=pl.ANY)],
        out_specs=(_vmem_spec(), _vmem_spec()),
        scratch_shapes=[pltpu.VMEM((LATE_ROWS, H), jnp.bfloat16),
                        pltpu.SemaphoreType.DMA(())],
    )(act, packed['wide'], packed['enc'], packed['late'])
    return probs, attn_w


def init_params(seed=0):
    keys = iter(jax.random.split(jax.random.PRNGKey(seed), 40))

    def nrm(shape, scale=0.05):
        return jax.random.normal(next(keys), shape, jnp.float32) * scale

    def zeros(shape):
        return jnp.zeros(shape, jnp.float32)

    p = {
        'tok_emb': nrm((VOCAB, H)), 'pos_emb': nrm((S, H)),
        'emb_ln_g': jnp.ones((H,), jnp.float32), 'emb_ln_b': zeros((H,)),
        # encoder layer
        'wq': nrm((H, H)), 'bq': zeros((1, H)),
        'wk': nrm((H, H)), 'bk': zeros((1, H)),
        'wv': nrm((H, H)), 'bv': zeros((1, H)),
        'wo': nrm((H, H)), 'bo': zeros((1, H)),
        'ln1g': jnp.ones((1, H), jnp.float32), 'ln1b': zeros((1, H)),
        'wf1': nrm((H, FF)), 'bf1': zeros((1, FF)),
        'wf2': nrm((FF, H)), 'bf2': zeros((1, H)),
        'ln2g': jnp.ones((1, H), jnp.float32), 'ln2b': zeros((1, H)),
        'wp': nrm((H, H)), 'bp': zeros((1, H)),
        # TextCNN (logical layout: (n_filters, filter_size, H))
        'wc2': nrm((NFILTERS, 2, H)), 'bc2': zeros((1, NFILTERS)),
        'wc3': nrm((NFILTERS, 3, H)), 'bc3': zeros((1, NFILTERS)),
        'wc4': nrm((NFILTERS, 4, H)), 'bc4': zeros((1, NFILTERS)),
        'wcl': nrm((len(FILTER_SIZES) * NFILTERS, INFORM)), 'bcl': zeros((1, INFORM)),
        # BiLSTM (weights pre-transposed: x @ W_ih^T -> (H, 4R), gate order i,f,g,o)
        'wih_f': nrm((H, 4 * RNN)), 'whh_f': nrm((RNN, 4 * RNN)), 'b_f': zeros((1, 4 * RNN)),
        'wih_b': nrm((H, 4 * RNN)), 'whh_b': nrm((RNN, 4 * RNN)), 'b_b': zeros((1, 4 * RNN)),
        'u_att': nrm((2 * RNN, 1)),
        # head
        'wpl': nrm((H, INFORM)), 'bpl': zeros((1, INFORM)),
        'wpred': nrm((2 * INFORM, NCLASS)), 'bpred': zeros((1, NCLASS)),
    }
    return p


def pack_params(p):
    """Pack the many small weights into a few bf16 DMA slabs (once, outside jit)."""
    def conv_pack(w):            # (F, fs, H) -> im2col RHS (fs*H, F): row = k*H + c
        return jnp.transpose(w, (1, 2, 0)).reshape(-1, NFILTERS)

    def gate_fuse(wf, wb):       # gate order [i,f,g,o] -> [i_f,i_b,f_f,f_b,o_f,o_b,g_f,g_b]
        def g(w, i):
            return w[..., i * RNN:(i + 1) * RNN]
        return jnp.concatenate([g(wf, 0), g(wb, 0), g(wf, 1), g(wb, 1),
                                g(wf, 3), g(wb, 3), g(wf, 2), g(wb, 2)], axis=-1)

    wide = jnp.zeros((WIDE_ROWS, FF), jnp.float32)
    wide = wide.at[W_ROW_F1:W_ROW_F1 + H].set(p['wf1'])
    wide = wide.at[W_ROW_F1B].set(p['bf1'][0])
    wide = wide.at[W_ROW_QKV:W_ROW_QKV + H, :3 * H].set(
        jnp.concatenate([p['wq'], p['wk'], p['wv']], axis=1))
    wide = wide.at[W_ROW_QKVB, :3 * H].set(
        jnp.concatenate([p['bq'], p['bk'], p['bv']], axis=1)[0])

    enc = jnp.zeros((ENC_ROWS, H), jnp.float32)
    enc = enc.at[E_ROW_WO:E_ROW_WO + H].set(p['wo'])
    enc = enc.at[E_ROW_WF2:E_ROW_WF2 + FF].set(p['wf2'])
    enc = enc.at[E_ROW_WP:E_ROW_WP + H].set(p['wp'])
    enc = enc.at[E_ROW_VEC + EV_BO].set(p['bo'][0])
    enc = enc.at[E_ROW_VEC + EV_BF2].set(p['bf2'][0])
    enc = enc.at[E_ROW_VEC + EV_BP].set(p['bp'][0])
    enc = enc.at[E_ROW_VEC + EV_LN1G].set(p['ln1g'][0])
    enc = enc.at[E_ROW_VEC + EV_LN1B].set(p['ln1b'][0])
    enc = enc.at[E_ROW_VEC + EV_LN2G].set(p['ln2g'][0])
    enc = enc.at[E_ROW_VEC + EV_LN2B].set(p['ln2b'][0])

    # block-diagonal, gate-grouped recurrent weights for the fused recurrence
    whh = jnp.zeros((2 * RNN, 8 * RNN), jnp.float32)
    for g_src, col in ((0, 0), (1, 2 * RNN), (3, 4 * RNN), (2, 6 * RNN)):
        whh = whh.at[:RNN, col:col + RNN].set(
            p['whh_f'][:, g_src * RNN:(g_src + 1) * RNN])
        whh = whh.at[RNN:, col + RNN:col + 2 * RNN].set(
            p['whh_b'][:, g_src * RNN:(g_src + 1) * RNN])

    late = jnp.zeros((LATE_ROWS, H), jnp.float32)
    late = late.at[L_ROW_WC2:L_ROW_WC2 + 2 * H].set(conv_pack(p['wc2']))
    late = late.at[L_ROW_WC3:L_ROW_WC3 + 3 * H].set(conv_pack(p['wc3']))
    late = late.at[L_ROW_WC4:L_ROW_WC4 + 4 * H].set(conv_pack(p['wc4']))
    late = late.at[L_ROW_WIH:L_ROW_WIH + H].set(gate_fuse(p['wih_f'], p['wih_b']))
    late = late.at[L_ROW_WHH:L_ROW_WHH + 2 * RNN].set(whh)
    late = late.at[L_ROW_WCL:L_ROW_WCL + 3 * NFILTERS, :INFORM].set(p['wcl'])
    late = late.at[L_ROW_WPL:L_ROW_WPL + H, :INFORM].set(p['wpl'])
    late = late.at[L_ROW_WPRED:L_ROW_WPRED + 2 * INFORM, :NCLASS].set(p['wpred'])
    late = late.at[L_ROW_VEC + LV_BLSTM].set(gate_fuse(p['b_f'], p['b_b'])[0])
    late = late.at[L_ROW_VEC + LV_BC2].set(p['bc2'][0])
    late = late.at[L_ROW_VEC + LV_BC3].set(p['bc3'][0])
    late = late.at[L_ROW_VEC + LV_BC4].set(p['bc4'][0])
    late = late.at[L_ROW_VEC + LV_BCL, :INFORM].set(p['bcl'][0])
    late = late.at[L_ROW_VEC + LV_BPL, :INFORM].set(p['bpl'][0])
    late = late.at[L_ROW_VEC + LV_U, :INFORM].set(p['u_att'][:, 0])
    late = late.at[L_ROW_VEC + LV_BPRED, :NCLASS].set(p['bpred'][0])

    return {
        'tok_emb': p['tok_emb'], 'pos_emb': p['pos_emb'],
        'emb_ln_g': p['emb_ln_g'], 'emb_ln_b': p['emb_ln_b'],
        'wide': wide.astype(jnp.bfloat16),
        'enc': enc.astype(jnp.bfloat16),
        'late': late.astype(jnp.bfloat16),
    }


if __name__ == "__main__":
    params = pack_params(init_params(0))
    key = jax.random.PRNGKey(0)
    in_ids = jax.random.randint(key, (B, S), 0, VOCAB, dtype=jnp.int32)
    att_masks = jnp.array([[1] * S, [1] * (S - 2) + [0] * 2], dtype=jnp.int32)

    probs, attn_w = bganet_forward(params, in_ids, att_masks)
    probs = jax.block_until_ready(probs)

    assert probs.shape == (B, NCLASS)
    assert attn_w.shape == (B, S)
    assert bool(jnp.all(jnp.isfinite(probs)))
    assert bool(jnp.allclose(jnp.sum(probs, axis=1), 1.0, atol=1e-5))
    print("KERNEL_OK")
</pallas_src>

<mosaic_0001>
module attributes {stable_mosaic.version = 11 : i64} {
  func.func @bganet_kernel(%arg0: memref<32x128xf32, #tpu.memory_space<vmem>>, %arg1: memref<288x512xbf16, #tpu.memory_space<vmem>>, %arg2: memref<776x128xbf16, #tpu.memory_space<vmem>>, %arg3: memref<1896x128xbf16, #tpu.memory_space<any>>, %arg4: memref<2x4xf32, #tpu.memory_space<vmem>>, %arg5: memref<2x8xf32, #tpu.memory_space<vmem>>, %arg6: memref<1896x128xbf16, #tpu.memory_space<vmem>>, %arg7: memref<!tpu.dma_semaphore, #tpu.memory_space<semaphore_mem>>) attributes {dimension_semantics = [], scalar_prefetch = 0 : i64, scratch_operands = 2 : i64, tpu.core_type = #tpu.core_type<tc>} {
    tpu.enqueue_dma source(%arg3 : memref<1896x128xbf16, #tpu.memory_space<any>>) target(%arg6 : memref<1896x128xbf16, #tpu.memory_space<vmem>>) target_semaphore(%arg7 : memref<!tpu.dma_semaphore, #tpu.memory_space<semaphore_mem>>)
    %c0 = arith.constant 0 : index
    %c0_0 = arith.constant 0 : index
    %0 = vector.load %arg0[%c0, %c0_0] : memref<32x128xf32, #tpu.memory_space<vmem>>, vector<16x128xf32>
    %c16 = arith.constant 16 : index
    %c0_1 = arith.constant 0 : index
    %1 = vector.load %arg0[%c16, %c0_1] : memref<32x128xf32, #tpu.memory_space<vmem>>, vector<16x128xf32>
    %2 = vector.extract_strided_slice %1 {offsets = [0, 0], sizes = [16, 16], strides = [1, 1]} : vector<16x128xf32> to vector<16x16xf32>
    %c0_2 = arith.constant 0 : index
    %c0_3 = arith.constant 0 : index
    %3 = vector.load %arg2[%c0_2, %c0_3] : memref<776x128xbf16, #tpu.memory_space<vmem>>, vector<128x128xbf16>
    %c128 = arith.constant 128 : index
    %c0_4 = arith.constant 0 : index
    %4 = vector.load %arg2[%c128, %c0_4] : memref<776x128xbf16, #tpu.memory_space<vmem>>, vector<512x128xbf16>
    %c640 = arith.constant 640 : index
    %c0_5 = arith.constant 0 : index
    %5 = vector.load %arg2[%c640, %c0_5] : memref<776x128xbf16, #tpu.memory_space<vmem>>, vector<128x128xbf16>
    %c768 = arith.constant 768 : index
    %c0_6 = arith.constant 0 : index
    %6 = vector.load %arg2[%c768, %c0_6] : memref<776x128xbf16, #tpu.memory_space<vmem>>, vector<8x128xbf16>
    %7 = arith.extf %6 : vector<8x128xbf16> to vector<8x128xf32>
    %8 = vector.extract_strided_slice %7 {offsets = [0, 0], sizes = [1, 128], strides = [1, 1]} : vector<8x128xf32> to vector<1x128xf32>
    %9 = vector.extract_strided_slice %7 {offsets = [1, 0], sizes = [1, 128], strides = [1, 1]} : vector<8x128xf32> to vector<1x128xf32>
    %10 = vector.extract_strided_slice %7 {offsets = [2, 0], sizes = [1, 128], strides = [1, 1]} : vector<8x128xf32> to vector<1x128xf32>
    %11 = vector.extract_strided_slice %7 {offsets = [3, 0], sizes = [1, 128], strides = [1, 1]} : vector<8x128xf32> to vector<1x128xf32>
    %12 = vector.extract_strided_slice %7 {offsets = [4, 0], sizes = [1, 128], strides = [1, 1]} : vector<8x128xf32> to vector<1x128xf32>
    %13 = vector.extract_strided_slice %7 {offsets = [5, 0], sizes = [1, 128], strides = [1, 1]} : vector<8x128xf32> to vector<1x128xf32>
    %14 = vector.extract_strided_slice %7 {offsets = [6, 0], sizes = [1, 128], strides = [1, 1]} : vector<8x128xf32> to vector<1x128xf32>
    %c0_7 = arith.constant 0 : index
    %c0_8 = arith.constant 0 : index
    %15 = vector.load %arg1[%c0_7, %c0_8] : memref<288x512xbf16, #tpu.memory_space<vmem>>, vector<128x512xbf16>
    %c128_9 = arith.constant 128 : index
    %c0_10 = arith.constant 0 : index
    %16 = vector.load %arg1[%c128_9, %c0_10] : memref<288x512xbf16, #tpu.memory_space<vmem>>, vector<1x512xbf16>
    %17 = arith.extf %16 : vector<1x512xbf16> to vector<1x512xf32>
    %c144 = arith.constant 144 : index
    %c0_11 = arith.constant 0 : index
    %18 = vector.load %arg1[%c144, %c0_11] : memref<288x512xbf16, #tpu.memory_space<vmem>>, vector<128x384xbf16>
    %c272 = arith.constant 272 : index
    %c0_12 = arith.constant 0 : index
    %19 = vector.load %arg1[%c272, %c0_12] : memref<288x512xbf16, #tpu.memory_space<vmem>>, vector<1x384xbf16>
    %20 = arith.extf %19 : vector<1x384xbf16> to vector<1x384xf32>
    %21 = arith.truncf %0 : vector<16x128xf32> to vector<16x128xbf16>
    %cst = arith.constant dense<0.000000e+00> : vector<16x384xf32>
    %22 = tpu.matmul %21, %18, %cst {dimension_numbers = #tpu.dot_dimension_numbers<[1], [0], [0], [1], [0, 0, 1, 1], [], []>} : vector<16x128xbf16>, vector<128x384xbf16>, vector<16x384xf32> -> vector<16x384xf32>
    %23 = vector.broadcast %20 : vector<1x384xf32> to vector<16x384xf32>
    %24 = arith.addf %22, %23 : vector<16x384xf32>
    %25 = arith.truncf %24 : vector<16x384xf32> to vector<16x384xbf16>
    %26 = vector.extract_strided_slice %25 {offsets = [0, 0], sizes = [16, 32], strides = [1, 1]} : vector<16x384xbf16> to vector<16x32xbf16>
    %27 = vector.extract_strided_slice %25 {offsets = [0, 128], sizes = [16, 32], strides = [1, 1]} : vector<16x384xbf16> to vector<16x32xbf16>
    %28 = vector.extract_strided_slice %25 {offsets = [0, 256], sizes = [16, 32], strides = [1, 1]} : vector<16x384xbf16> to vector<16x32xbf16>
    "tpu.trace_start"() <{level = 10 : i32, message = "qd,kd->qk"}> : () -> ()
    %cst_13 = arith.constant dense<0.000000e+00> : vector<16x16xf32>
    %29 = tpu.matmul %26, %27, %cst_13 {dimension_numbers = #tpu.dot_dimension_numbers<[1], [1], [0], [0], [0, 0, 1, 0], [], []>} : vector<16x32xbf16>, vector<16x32xbf16>, vector<16x16xf32> -> vector<16x16xf32>
    "tpu.trace_stop"() : () -> ()
    %cst_14 = arith.constant 0.176776692 : f32
    %30 = vector.broadcast %cst_14 : f32 to vector<16x16xf32>
    %31 = arith.mulf %29, %30 : vector<16x16xf32>
    %32 = arith.addf %31, %2 : vector<16x16xf32>
    %cst_15 = arith.constant dense<0xFF800000> : vector<16xf32>
    %33 = vector.multi_reduction <maximumf>, %32, %cst_15 [1] : vector<16x16xf32> to vector<16xf32>
    %34 = vector.shape_cast %33 : vector<16xf32> to vector<16x1xf32>
    %35 = vector.broadcast %34 : vector<16x1xf32> to vector<16x16xf32>
    %36 = arith.subf %32, %35 : vector<16x16xf32>
    %37 = math.exp %36 : vector<16x16xf32>
    %cst_16 = arith.constant dense<0.000000e+00> : vector<16xf32>
    %38 = vector.multi_reduction <add>, %37, %cst_16 [1] : vector<16x16xf32> to vector<16xf32>
    %39 = vector.shape_cast %38 : vector<16xf32> to vector<16x1xf32>
    %40 = tpu.reciprocal %39 {approx = true} : vector<16x1xf32> -> vector<16x1xf32>
    %41 = vector.broadcast %40 : vector<16x1xf32> to vector<16x16xf32>
    %42 = arith.mulf %37, %41 : vector<16x16xf32>
    %43 = arith.truncf %42 : vector<16x16xf32> to vector<16x16xbf16>
    %cst_17 = arith.constant dense<0.000000e+00> : vector<16x32xf32>
    %44 = tpu.matmul %43, %28, %cst_17 {dimension_numbers = #tpu.dot_dimension_numbers<[1], [0], [0], [1], [0, 0, 1, 1], [], []>} : vector<16x16xbf16>, vector<16x32xbf16>, vector<16x32xf32> -> vector<16x32xf32>
    %45 = vector.extract_strided_slice %25 {offsets = [0, 32], sizes = [16, 32], strides = [1, 1]} : vector<16x384xbf16> to vector<16x32xbf16>
    %46 = vector.extract_strided_slice %25 {offsets = [0, 160], sizes = [16, 32], strides = [1, 1]} : vector<16x384xbf16> to vector<16x32xbf16>
    %47 = vector.extract_strided_slice %25 {offsets = [0, 288], sizes = [16, 32], strides = [1, 1]} : vector<16x384xbf16> to vector<16x32xbf16>
    "tpu.trace_start"() <{level = 10 : i32, message = "qd,kd->qk"}> : () -> ()
    %cst_18 = arith.constant dense<0.000000e+00> : vector<16x16xf32>
    %48 = tpu.matmul %45, %46, %cst_18 {dimension_numbers = #tpu.dot_dimension_numbers<[1], [1], [0], [0], [0, 0, 1, 0], [], []>} : vector<16x32xbf16>, vector<16x32xbf16>, vector<16x16xf32> -> vector<16x16xf32>
    "tpu.trace_stop"() : () -> ()
    %cst_19 = arith.constant 0.176776692 : f32
    %49 = vector.broadcast %cst_19 : f32 to vector<16x16xf32>
    %50 = arith.mulf %48, %49 : vector<16x16xf32>
    %51 = arith.addf %50, %2 : vector<16x16xf32>
    %cst_20 = arith.constant dense<0xFF800000> : vector<16xf32>
    %52 = vector.multi_reduction <maximumf>, %51, %cst_20 [1] : vector<16x16xf32> to vector<16xf32>
    %53 = vector.shape_cast %52 : vector<16xf32> to vector<16x1xf32>
    %54 = vector.broadcast %53 : vector<16x1xf32> to vector<16x16xf32>
    %55 = arith.subf %51, %54 : vector<16x16xf32>
    %56 = math.exp %55 : vector<16x16xf32>
    %cst_21 = arith.constant dense<0.000000e+00> : vector<16xf32>
    %57 = vector.multi_reduction <add>, %56, %cst_21 [1] : vector<16x16xf32> to vector<16xf32>
    %58 = vector.shape_cast %57 : vector<16xf32> to vector<16x1xf32>
    %59 = tpu.reciprocal %58 {approx = true} : vector<16x1xf32> -> vector<16x1xf32>
    %60 = vector.broadcast %59 : vector<16x1xf32> to vector<16x16xf32>
    %61 = arith.mulf %56, %60 : vector<16x16xf32>
    %62 = arith.truncf %61 : vector<16x16xf32> to vector<16x16xbf16>
    %cst_22 = arith.constant dense<0.000000e+00> : vector<16x32xf32>
    %63 = tpu.matmul %62, %47, %cst_22 {dimension_numbers = #tpu.dot_dimension_numbers<[1], [0], [0], [1], [0, 0, 1, 1], [], []>} : vector<16x16xbf16>, vector<16x32xbf16>, vector<16x32xf32> -> vector<16x32xf32>
    %64 = vector.extract_strided_slice %25 {offsets = [0, 64], sizes = [16, 32], strides = [1, 1]} : vector<16x384xbf16> to vector<16x32xbf16>
    %65 = vector.extract_strided_slice %25 {offsets = [0, 192], sizes = [16, 32], strides = [1, 1]} : vector<16x384xbf16> to vector<16x32xbf16>
    %66 = vector.extract_strided_slice %25 {offsets = [0, 320], sizes = [16, 32], strides = [1, 1]} : vector<16x384xbf16> to vector<16x32xbf16>
    "tpu.trace_start"() <{level = 10 : i32, message = "qd,kd->qk"}> : () -> ()
    %cst_23 = arith.constant dense<0.000000e+00> : vector<16x16xf32>
    %67 = tpu.matmul %64, %65, %cst_23 {dimension_numbers = #tpu.dot_dimension_numbers<[1], [1], [0], [0], [0, 0, 1, 0], [], []>} : vector<16x32xbf16>, vector<16x32xbf16>, vector<16x16xf32> -> vector<16x16xf32>
    "tpu.trace_stop"() : () -> ()
    %cst_24 = arith.constant 0.176776692 : f32
    %68 = vector.broadcast %cst_24 : f32 to vector<16x16xf32>
    %69 = arith.mulf %67, %68 : vector<16x16xf32>
    %70 = arith.addf %69, %2 : vector<16x16xf32>
    %cst_25 = arith.constant dense<0xFF800000> : vector<16xf32>
    %71 = vector.multi_reduction <maximumf>, %70, %cst_25 [1] : vector<16x16xf32> to vector<16xf32>
    %72 = vector.shape_cast %71 : vector<16xf32> to vector<16x1xf32>
    %73 = vector.broadcast %72 : vector<16x1xf32> to vector<16x16xf32>
    %74 = arith.subf %70, %73 : vector<16x16xf32>
    %75 = math.exp %74 : vector<16x16xf32>
    %cst_26 = arith.constant dense<0.000000e+00> : vector<16xf32>
    %76 = vector.multi_reduction <add>, %75, %cst_26 [1] : vector<16x16xf32> to vector<16xf32>
    %77 = vector.shape_cast %76 : vector<16xf32> to vector<16x1xf32>
    %78 = tpu.reciprocal %77 {approx = true} : vector<16x1xf32> -> vector<16x1xf32>
    %79 = vector.broadcast %78 : vector<16x1xf32> to vector<16x16xf32>
    %80 = arith.mulf %75, %79 : vector<16x16xf32>
    %81 = arith.truncf %80 : vector<16x16xf32> to vector<16x16xbf16>
    %cst_27 = arith.constant dense<0.000000e+00> : vector<16x32xf32>
    %82 = tpu.matmul %81, %66, %cst_27 {dimension_numbers = #tpu.dot_dimension_numbers<[1], [0], [0], [1], [0, 0, 1, 1], [], []>} : vector<16x16xbf16>, vector<16x32xbf16>, vector<16x32xf32> -> vector<16x32xf32>
    %83 = vector.extract_strided_slice %25 {offsets = [0, 96], sizes = [16, 32], strides = [1, 1]} : vector<16x384xbf16> to vector<16x32xbf16>
    %84 = vector.extract_strided_slice %25 {offsets = [0, 224], sizes = [16, 32], strides = [1, 1]} : vector<16x384xbf16> to vector<16x32xbf16>
    %85 = vector.extract_strided_slice %25 {offsets = [0, 352], sizes = [16, 32], strides = [1, 1]} : vector<16x384xbf16> to vector<16x32xbf16>
    "tpu.trace_start"() <{level = 10 : i32, message = "qd,kd->qk"}> : () -> ()
    %cst_28 = arith.constant dense<0.000000e+00> : vector<16x16xf32>
    %86 = tpu.matmul %83, %84, %cst_28 {dimension_numbers = #tpu.dot_dimension_numbers<[1], [1], [0], [0], [0, 0, 1, 0], [], []>} : vector<16x32xbf16>, vector<16x32xbf16>, vector<16x16xf32> -> vector<16x16xf32>
    "tpu.trace_stop"() : () -> ()
    %cst_29 = arith.constant 0.176776692 : f32
    %87 = vector.broadcast %cst_29 : f32 to vector<16x16xf32>
    %88 = arith.mulf %86, %87 : vector<16x16xf32>
    %89 = arith.addf %88, %2 : vector<16x16xf32>
    %cst_30 = arith.constant dense<0xFF800000> : vector<16xf32>
    %90 = vector.multi_reduction <maximumf>, %89, %cst_30 [1] : vector<16x16xf32> to vector<16xf32>
    %91 = vector.shape_cast %90 : vector<16xf32> to vector<16x1xf32>
    %92 = vector.broadcast %91 : vector<16x1xf32> to vector<16x16xf32>
    %93 = arith.subf %89, %92 : vector<16x16xf32>
    %94 = math.exp %93 : vector<16x16xf32>
    %cst_31 = arith.constant dense<0.000000e+00> : vector<16xf32>
    %95 = vector.multi_reduction <add>, %94, %cst_31 [1] : vector<16x16xf32> to vector<16xf32>
    %96 = vector.shape_cast %95 : vector<16xf32> to vector<16x1xf32>
    %97 = tpu.reciprocal %96 {approx = true} : vector<16x1xf32> -> vector<16x1xf32>
    %98 = vector.broadcast %97 : vector<16x1xf32> to vector<16x16xf32>
    %99 = arith.mulf %94, %98 : vector<16x16xf32>
    %100 = arith.truncf %99 : vector<16x16xf32> to vector<16x16xbf16>
    %cst_32 = arith.constant dense<0.000000e+00> : vector<16x32xf32>
    %101 = tpu.matmul %100, %85, %cst_32 {dimension_numbers = #tpu.dot_dimension_numbers<[1], [0], [0], [1], [0, 0, 1, 1], [], []>} : vector<16x16xbf16>, vector<16x32xbf16>, vector<16x32xf32> -> vector<16x32xf32>
    %102 = tpu.concatenate %44, %63, %82, %101 in 1 : vector<16x32xf32>, vector<16x32xf32>, vector<16x32xf32>, vector<16x32xf32> -> vector<16x128xf32>
    %103 = arith.truncf %102 : vector<16x128xf32> to vector<16x128xbf16>
    %cst_33 = arith.constant dense<0.000000e+00> : vector<16x128xf32>
    %104 = tpu.matmul %103, %3, %cst_33 {dimension_numbers = #tpu.dot_dimension_numbers<[1], [0], [0], [1], [0, 0, 1, 1], [], []>} : vector<16x128xbf16>, vector<128x128xbf16>, vector<16x128xf32> -> vector<16x128xf32>
    %105 = vector.broadcast %8 : vector<1x128xf32> to vector<16x128xf32>
    %106 = arith.addf %104, %105 : vector<16x128xf32>
    %107 = arith.addf %0, %106 : vector<16x128xf32>
    %cst_34 = arith.constant dense<0.000000e+00> : vector<16xf32>
    %108 = vector.multi_reduction <add>, %107, %cst_34 [1] : vector<16x128xf32> to vector<16xf32>
    %109 = vector.shape_cast %108 : vector<16xf32> to vector<16x1xf32>
    %cst_35 = arith.constant 1.280000e+02 : f32
    %110 = vector.broadcast %cst_35 : f32 to vector<16x1xf32>
    %111 = arith.divf %109, %110 : vector<16x1xf32>
    %112 = vector.broadcast %111 : vector<16x1xf32> to vector<16x128xf32>
    %113 = arith.subf %107, %112 : vector<16x128xf32>
    %114 = arith.mulf %113, %113 : vector<16x128xf32>
    %cst_36 = arith.constant dense<0.000000e+00> : vector<16xf32>
    %115 = vector.multi_reduction <add>, %114, %cst_36 [1] : vector<16x128xf32> to vector<16xf32>
    %116 = vector.shape_cast %115 : vector<16xf32> to vector<16x1xf32>
    %cst_37 = arith.constant 1.280000e+02 : f32
    %117 = vector.broadcast %cst_37 : f32 to vector<16x1xf32>
    %118 = arith.divf %116, %117 : vector<16x1xf32>
    %119 = vector.broadcast %111 : vector<16x1xf32> to vector<16x128xf32>
    %120 = arith.subf %107, %119 : vector<16x128xf32>
    %cst_38 = arith.constant 9.99999996E-13 : f32
    %121 = vector.broadcast %cst_38 : f32 to vector<16x1xf32>
    %122 = arith.addf %118, %121 : vector<16x1xf32>
    %123 = math.rsqrt %122 : vector<16x1xf32>
    %124 = vector.broadcast %123 : vector<16x1xf32> to vector<16x128xf32>
    %125 = arith.mulf %120, %124 : vector<16x128xf32>
    %126 = vector.broadcast %11 : vector<1x128xf32> to vector<16x128xf32>
    %127 = arith.mulf %125, %126 : vector<16x128xf32>
    %128 = vector.broadcast %12 : vector<1x128xf32> to vector<16x128xf32>
    %129 = arith.addf %127, %128 : vector<16x128xf32>
    %130 = arith.truncf %129 : vector<16x128xf32> to vector<16x128xbf16>
    %cst_39 = arith.constant dense<0.000000e+00> : vector<16x512xf32>
    %131 = tpu.matmul %130, %15, %cst_39 {dimension_numbers = #tpu.dot_dimension_numbers<[1], [0], [0], [1], [0, 0, 1, 1], [], []>} : vector<16x128xbf16>, vector<128x512xbf16>, vector<16x512xf32> -> vector<16x512xf32>
    %132 = vector.broadcast %17 : vector<1x512xf32> to vector<16x512xf32>
    %133 = arith.addf %131, %132 : vector<16x512xf32>
    %134 = arith.mulf %133, %133 : vector<16x512xf32>
    %135 = arith.mulf %133, %134 : vector<16x512xf32>
    %cst_40 = arith.constant 4.471500e-02 : f32
    %136 = vector.broadcast %cst_40 : f32 to vector<16x512xf32>
    %137 = arith.mulf %136, %135 : vector<16x512xf32>
    %138 = arith.addf %133, %137 : vector<16x512xf32>
    %cst_41 = arith.constant 0.797884583 : f32
    %139 = vector.broadcast %cst_41 : f32 to vector<16x512xf32>
    %140 = arith.mulf %139, %138 : vector<16x512xf32>
    %141 = math.tanh %140 : vector<16x512xf32>
    %cst_42 = arith.constant 1.000000e+00 : f32
    %142 = vector.broadcast %cst_42 : f32 to vector<16x512xf32>
    %143 = arith.addf %142, %141 : vector<16x512xf32>
    %cst_43 = arith.constant 5.000000e-01 : f32
    %144 = vector.broadcast %cst_43 : f32 to vector<16x512xf32>
    %145 = arith.mulf %144, %143 : vector<16x512xf32>
    %146 = arith.mulf %133, %145 : vector<16x512xf32>
    %147 = arith.truncf %146 : vector<16x512xf32> to vector<16x512xbf16>
    %cst_44 = arith.constant dense<0.000000e+00> : vector<16x128xf32>
    %148 = tpu.matmul %147, %4, %cst_44 {dimension_numbers = #tpu.dot_dimension_numbers<[1], [0], [0], [1], [0, 0, 1, 1], [], []>} : vector<16x512xbf16>, vector<512x128xbf16>, vector<16x128xf32> -> vector<16x128xf32>
    %149 = vector.broadcast %9 : vector<1x128xf32> to vector<16x128xf32>
    %150 = arith.addf %148, %149 : vector<16x128xf32>
    %151 = arith.addf %129, %150 : vector<16x128xf32>
    %cst_45 = arith.constant dense<0.000000e+00> : vector<16xf32>
    %152 = vector.multi_reduction <add>, %151, %cst_45 [1] : vector<16x128xf32> to vector<16xf32>
    %153 = vector.shape_cast %152 : vector<16xf32> to vector<16x1xf32>
    %cst_46 = arith.constant 1.280000e+02 : f32
    %154 = vector.broadcast %cst_46 : f32 to vector<16x1xf32>
    %155 = arith.divf %153, %154 : vector<16x1xf32>
    %156 = vector.broadcast %155 : vector<16x1xf32> to vector<16x128xf32>
    %157 = arith.subf %151, %156 : vector<16x128xf32>
    %158 = arith.mulf %157, %157 : vector<16x128xf32>
    %cst_47 = arith.constant dense<0.000000e+00> : vector<16xf32>
    %159 = vector.multi_reduction <add>, %158, %cst_47 [1] : vector<16x128xf32> to vector<16xf32>
    %160 = vector.shape_cast %159 : vector<16xf32> to vector<16x1xf32>
    %cst_48 = arith.constant 1.280000e+02 : f32
    %161 = vector.broadcast %cst_48 : f32 to vector<16x1xf32>
    %162 = arith.divf %160, %161 : vector<16x1xf32>
    %163 = vector.broadcast %155 : vector<16x1xf32> to vector<16x128xf32>
    %164 = arith.subf %151, %163 : vector<16x128xf32>
    %cst_49 = arith.constant 9.99999996E-13 : f32
    %165 = vector.broadcast %cst_49 : f32 to vector<16x1xf32>
    %166 = arith.addf %162, %165 : vector<16x1xf32>
    %167 = math.rsqrt %166 : vector<16x1xf32>
    %168 = vector.broadcast %167 : vector<16x1xf32> to vector<16x128xf32>
    %169 = arith.mulf %164, %168 : vector<16x128xf32>
    %170 = vector.broadcast %13 : vector<1x128xf32> to vector<16x128xf32>
    %171 = arith.mulf %169, %170 : vector<16x128xf32>
    %172 = vector.broadcast %14 : vector<1x128xf32> to vector<16x128xf32>
    %173 = arith.addf %171, %172 : vector<16x128xf32>
    %174 = arith.truncf %173 : vector<16x128xf32> to vector<16x128xbf16>
    %175 = vector.extract_strided_slice %174 {offsets = [0, 0], sizes = [1, 128], strides = [1, 1]} : vector<16x128xbf16> to vector<1x128xbf16>
    %176 = vector.extract_strided_slice %174 {offsets = [8, 0], sizes = [1, 128], strides = [1, 1]} : vector<16x128xbf16> to vector<1x128xbf16>
    %177 = tpu.concatenate %175, %176 in 0 : vector<1x128xbf16>, vector<1x128xbf16> -> vector<2x128xbf16>
    %cst_50 = arith.constant dense<0.000000e+00> : vector<2x128xf32>
    %178 = tpu.matmul %177, %5, %cst_50 {dimension_numbers = #tpu.dot_dimension_numbers<[1], [0], [0], [1], [0, 0, 1, 1], [], []>} : vector<2x128xbf16>, vector<128x128xbf16>, vector<2x128xf32> -> vector<2x128xf32>
    %179 = vector.broadcast %10 : vector<1x128xf32> to vector<2x128xf32>
    %180 = arith.addf %178, %179 : vector<2x128xf32>
    %181 = math.tanh %180 : vector<2x128xf32>
    tpu.wait_dma2 semaphore(%arg7 : memref<!tpu.dma_semaphore, #tpu.memory_space<semaphore_mem>>) src(%arg3 : memref<1896x128xbf16, #tpu.memory_space<any>>) dst(%arg6 : memref<1896x128xbf16, #tpu.memory_space<vmem>>)
    %c1888 = arith.constant 1888 : index
    %c0_51 = arith.constant 0 : index
    %182 = vector.load %arg6[%c1888, %c0_51] : memref<1896x128xbf16, #tpu.memory_space<vmem>>, vector<8x128xbf16>
    %183 = arith.extf %182 : vector<8x128xbf16> to vector<8x128xf32>
    %184 = vector.extract_strided_slice %183 {offsets = [0, 0], sizes = [1, 128], strides = [1, 1]} : vector<8x128xf32> to vector<1x128xf32>
    %185 = vector.extract_strided_slice %183 {offsets = [1, 0], sizes = [1, 128], strides = [1, 1]} : vector<8x128xf32> to vector<1x128xf32>
    %186 = vector.extract_strided_slice %183 {offsets = [2, 0], sizes = [1, 128], strides = [1, 1]} : vector<8x128xf32> to vector<1x128xf32>
    %187 = vector.extract_strided_slice %183 {offsets = [3, 0], sizes = [1, 128], strides = [1, 1]} : vector<8x128xf32> to vector<1x128xf32>
    %188 = vector.extract_strided_slice %183 {offsets = [4, 0], sizes = [1, 32], strides = [1, 1]} : vector<8x128xf32> to vector<1x32xf32>
    %189 = vector.extract_strided_slice %183 {offsets = [5, 0], sizes = [1, 32], strides = [1, 1]} : vector<8x128xf32> to vector<1x32xf32>
    %190 = vector.extract_strided_slice %183 {offsets = [6, 0], sizes = [1, 32], strides = [1, 1]} : vector<8x128xf32> to vector<1x32xf32>
    %191 = vector.extract_strided_slice %183 {offsets = [7, 0], sizes = [1, 4], strides = [1, 1]} : vector<8x128xf32> to vector<1x4xf32>
    %192 = vector.extract_strided_slice %173 {offsets = [1, 0], sizes = [15, 128], strides = [1, 1]} : vector<16x128xf32> to vector<15x128xf32>
    %193 = vector.extract_strided_slice %173 {offsets = [0, 0], sizes = [1, 128], strides = [1, 1]} : vector<16x128xf32> to vector<1x128xf32>
    %194 = tpu.concatenate %192, %193 in 0 : vector<15x128xf32>, vector<1x128xf32> -> vector<16x128xf32>
    %195 = vector.extract_strided_slice %173 {offsets = [2, 0], sizes = [14, 128], strides = [1, 1]} : vector<16x128xf32> to vector<14x128xf32>
    %196 = vector.extract_strided_slice %173 {offsets = [0, 0], sizes = [2, 128], strides = [1, 1]} : vector<16x128xf32> to vector<2x128xf32>
    %197 = tpu.concatenate %195, %196 in 0 : vector<14x128xf32>, vector<2x128xf32> -> vector<16x128xf32>
    %198 = vector.extract_strided_slice %173 {offsets = [3, 0], sizes = [13, 128], strides = [1, 1]} : vector<16x128xf32> to vector<13x128xf32>
    %199 = vector.extract_strided_slice %173 {offsets = [0, 0], sizes = [3, 128], strides = [1, 1]} : vector<16x128xf32> to vector<3x128xf32>
    %200 = tpu.concatenate %198, %199 in 0 : vector<13x128xf32>, vector<3x128xf32> -> vector<16x128xf32>
    %201 = tpu.concatenate %173, %194, %197, %200 in 1 : vector<16x128xf32>, vector<16x128xf32>, vector<16x128xf32>, vector<16x128xf32> -> vector<16x512xf32>
    %202 = arith.truncf %201 : vector<16x512xf32> to vector<16x512xbf16>
    %203 = tpu.iota {dimensions = array<i32: 0>} : vector<16x1xi32>
    %c8_i32 = arith.constant 8 : i32
    %c0_i32 = arith.constant 0 : i32
    %204 = arith.cmpi eq, %c8_i32, %c0_i32 : i32
    %c1_i32 = arith.constant 1 : i32
    %205 = arith.select %204, %c1_i32, %c8_i32 : i32
    %206 = vector.broadcast %205 : i32 to vector<16x1xi32>
    %207 = arith.remsi %203, %206 : vector<16x1xi32>
    %c0_i32_52 = arith.constant 0 : i32
    %208 = vector.broadcast %c0_i32_52 : i32 to vector<16x1xi32>
    %209 = arith.cmpi ne, %207, %208 : vector<16x1xi32>
    %c0_i32_53 = arith.constant 0 : i32
    %210 = vector.broadcast %c0_i32_53 : i32 to vector<16x1xi32>
    %211 = arith.cmpi slt, %207, %210 : vector<16x1xi32>
    %c0_i32_54 = arith.constant 0 : i32
    %212 = arith.cmpi slt, %205, %c0_i32_54 : i32
    %213 = vector.broadcast %212 : i1 to vector<16x1xi1>
    %214 = vector.broadcast %213 : vector<16x1xi1> to vector<16x1xi1>
    %215 = arith.xori %211, %214 : vector<16x1xi1>
    %216 = arith.andi %215, %209 : vector<16x1xi1>
    %217 = vector.broadcast %205 : i32 to vector<16x1xi32>
    %218 = arith.addi %207, %217 : vector<16x1xi32>
    %219 = arith.select %216, %218, %207 : vector<16x1xi1>, vector<16x1xi32>
    %c0_55 = arith.constant 0 : index
    %c0_56 = arith.constant 0 : index
    %220 = vector.load %arg6[%c0_55, %c0_56] : memref<1896x128xbf16, #tpu.memory_space<vmem>>, vector<256x128xbf16>
    %221 = vector.extract_strided_slice %202 {offsets = [0, 0], sizes = [16, 256], strides = [1, 1]} : vector<16x512xbf16> to vector<16x256xbf16>
    %cst_57 = arith.constant dense<0.000000e+00> : vector<16x128xf32>
    %222 = tpu.matmul %221, %220, %cst_57 {dimension_numbers = #tpu.dot_dimension_numbers<[1], [0], [0], [1], [0, 0, 1, 1], [], []>} : vector<16x256xbf16>, vector<256x128xbf16>, vector<16x128xf32> -> vector<16x128xf32>
    %223 = vector.broadcast %185 : vector<1x128xf32> to vector<16x128xf32>
    %224 = arith.addf %222, %223 : vector<16x128xf32>
    %c7_i32 = arith.constant 7 : i32
    %225 = vector.broadcast %c7_i32 : i32 to vector<16x1xi32>
    %226 = arith.cmpi slt, %219, %225 : vector<16x1xi32>
    %cst_58 = arith.constant 0.000000e+00 : f32
    %227 = vector.broadcast %cst_58 : f32 to vector<16x128xf32>
    %228 = arith.maximumf %224, %227 : vector<16x128xf32>
    %cst_59 = arith.constant 0.000000e+00 : f32
    %229 = vector.shape_cast %226 : vector<16x1xi1> to vector<16x1xi1>
    %230 = vector.broadcast %229 : vector<16x1xi1> to vector<16x128xi1>
    %231 = vector.broadcast %cst_59 : f32 to vector<16x128xf32>
    %232 = arith.select %230, %228, %231 : vector<16x128xi1>, vector<16x128xf32>
    %233 = vector.shape_cast %232 : vector<16x128xf32> to vector<2x8x128xf32>
    %cst_60 = arith.constant dense<0xFF800000> : vector<2x128xf32>
    %234 = vector.multi_reduction <maximumf>, %233, %cst_60 [1] : vector<2x8x128xf32> to vector<2x128xf32>
    %c256 = arith.constant 256 : index
    %c0_61 = arith.constant 0 : index
    %235 = vector.load %arg6[%c256, %c0_61] : memref<1896x128xbf16, #tpu.memory_space<vmem>>, vector<384x128xbf16>
    %236 = vector.extract_strided_slice %202 {offsets = [0, 0], sizes = [16, 384], strides = [1, 1]} : vector<16x512xbf16> to vector<16x384xbf16>
    %cst_62 = arith.constant dense<0.000000e+00> : vector<16x128xf32>
    %237 = tpu.matmul %236, %235, %cst_62 {dimension_numbers = #tpu.dot_dimension_numbers<[1], [0], [0], [1], [0, 0, 1, 1], [], []>} : vector<16x384xbf16>, vector<384x128xbf16>, vector<16x128xf32> -> vector<16x128xf32>
    %238 = vector.broadcast %186 : vector<1x128xf32> to vector<16x128xf32>
    %239 = arith.addf %237, %238 : vector<16x128xf32>
    %c6_i32 = arith.constant 6 : i32
    %240 = vector.broadcast %c6_i32 : i32 to vector<16x1xi32>
    %241 = arith.cmpi slt, %219, %240 : vector<16x1xi32>
    %cst_63 = arith.constant 0.000000e+00 : f32
    %242 = vector.broadcast %cst_63 : f32 to vector<16x128xf32>
    %243 = arith.maximumf %239, %242 : vector<16x128xf32>
    %cst_64 = arith.constant 0.000000e+00 : f32
    %244 = vector.shape_cast %241 : vector<16x1xi1> to vector<16x1xi1>
    %245 = vector.broadcast %244 : vector<16x1xi1> to vector<16x128xi1>
    %246 = vector.broadcast %cst_64 : f32 to vector<16x128xf32>
    %247 = arith.select %245, %243, %246 : vector<16x128xi1>, vector<16x128xf32>
    %248 = vector.shape_cast %247 : vector<16x128xf32> to vector<2x8x128xf32>
    %cst_65 = arith.constant dense<0xFF800000> : vector<2x128xf32>
    %249 = vector.multi_reduction <maximumf>, %248, %cst_65 [1] : vector<2x8x128xf32> to vector<2x128xf32>
    %c640_66 = arith.constant 640 : index
    %c0_67 = arith.constant 0 : index
    %250 = vector.load %arg6[%c640_66, %c0_67] : memref<1896x128xbf16, #tpu.memory_space<vmem>>, vector<512x128xbf16>
    %cst_68 = arith.constant dense<0.000000e+00> : vector<16x128xf32>
    %251 = tpu.matmul %202, %250, %cst_68 {dimension_numbers = #tpu.dot_dimension_numbers<[1], [0], [0], [1], [0, 0, 1, 1], [], []>} : vector<16x512xbf16>, vector<512x128xbf16>, vector<16x128xf32> -> vector<16x128xf32>
    %252 = vector.broadcast %187 : vector<1x128xf32> to vector<16x128xf32>
    %253 = arith.addf %251, %252 : vector<16x128xf32>
    %c5_i32 = arith.constant 5 : i32
    %254 = vector.broadcast %c5_i32 : i32 to vector<16x1xi32>
    %255 = arith.cmpi slt, %219, %254 : vector<16x1xi32>
    %cst_69 = arith.constant 0.000000e+00 : f32
    %256 = vector.broadcast %cst_69 : f32 to vector<16x128xf32>
    %257 = arith.maximumf %253, %256 : vector<16x128xf32>
    %cst_70 = arith.constant 0.000000e+00 : f32
    %258 = vector.shape_cast %255 : vector<16x1xi1> to vector<16x1xi1>
    %259 = vector.broadcast %258 : vector<16x1xi1> to vector<16x128xi1>
    %260 = vector.broadcast %cst_70 : f32 to vector<16x128xf32>
    %261 = arith.select %259, %257, %260 : vector<16x128xi1>, vector<16x128xf32>
    %262 = vector.shape_cast %261 : vector<16x128xf32> to vector<2x8x128xf32>
    %cst_71 = arith.constant dense<0xFF800000> : vector<2x128xf32>
    %263 = vector.multi_reduction <maximumf>, %262, %cst_71 [1] : vector<2x8x128xf32> to vector<2x128xf32>
    %264 = tpu.concatenate %234, %249, %263 in 1 : vector<2x128xf32>, vector<2x128xf32>, vector<2x128xf32> -> vector<2x384xf32>
    %c1312 = arith.constant 1312 : index
    %c0_72 = arith.constant 0 : index
    %265 = vector.load %arg6[%c1312, %c0_72] : memref<1896x128xbf16, #tpu.memory_space<vmem>>, vector<384x128xbf16>
    %266 = arith.truncf %264 : vector<2x384xf32> to vector<2x384xbf16>
    %cst_73 = arith.constant dense<0.000000e+00> : vector<2x128xf32>
    %267 = tpu.matmul %266, %265, %cst_73 {dimension_numbers = #tpu.dot_dimension_numbers<[1], [0], [0], [1], [0, 0, 1, 1], [], []>} : vector<2x384xbf16>, vector<384x128xbf16>, vector<2x128xf32> -> vector<2x128xf32>
    %268 = vector.extract_strided_slice %267 {offsets = [0, 0], sizes = [2, 32], strides = [1, 1]} : vector<2x128xf32> to vector<2x32xf32>
    %269 = vector.broadcast %188 : vector<1x32xf32> to vector<2x32xf32>
    %270 = arith.addf %268, %269 : vector<2x32xf32>
    %c1152 = arith.constant 1152 : index
    %c0_74 = arith.constant 0 : index
    %271 = vector.load %arg6[%c1152, %c0_74] : memref<1896x128xbf16, #tpu.memory_space<vmem>>, vector<128x128xbf16>
    %c1280 = arith.constant 1280 : index
    %c0_75 = arith.constant 0 : index
    %272 = vector.load %arg6[%c1280, %c0_75] : memref<1896x128xbf16, #tpu.memory_space<vmem>>, vector<32x128xbf16>
    %cst_76 = arith.constant dense<0.000000e+00> : vector<16x128xf32>
    %273 = tpu.matmul %174, %271, %cst_76 {dimension_numbers = #tpu.dot_dimension_numbers<[1], [0], [0], [1], [0, 0, 1, 1], [], []>} : vector<16x128xbf16>, vector<128x128xbf16>, vector<16x128xf32> -> vector<16x128xf32>
    %274 = vector.broadcast %184 : vector<1x128xf32> to vector<16x128xf32>
    %275 = arith.addf %273, %274 : vector<16x128xf32>
    %276 = vector.shape_cast %275 : vector<16x128xf32> to vector<2x8x128xf32>
    %277 = tpu.iota {dimensions = array<i32: 1>} : vector<1x128xi32>
    %c32_i32 = arith.constant 32 : i32
    %c0_i32_77 = arith.constant 0 : i32
    %278 = arith.cmpi eq, %c32_i32, %c0_i32_77 : i32
    %c1_i32_78 = arith.constant 1 : i32
    %279 = arith.select %278, %c1_i32_78, %c32_i32 : i32
    %280 = vector.broadcast %279 : i32 to vector<1x128xi32>
    %281 = arith.remsi %277, %280 : vector<1x128xi32>
    %c0_i32_79 = arith.constant 0 : i32
    %282 = vector.broadcast %c0_i32_79 : i32 to vector<1x128xi32>
    %283 = arith.cmpi ne, %281, %282 : vector<1x128xi32>
    %c0_i32_80 = arith.constant 0 : i32
    %284 = vector.broadcast %c0_i32_80 : i32 to vector<1x128xi32>
    %285 = arith.cmpi slt, %281, %284 : vector<1x128xi32>
    %c0_i32_81 = arith.constant 0 : i32
    %286 = arith.cmpi slt, %279, %c0_i32_81 : i32
    %287 = vector.broadcast %286 : i1 to vector<1x128xi1>
    %288 = vector.broadcast %287 : vector<1x128xi1> to vector<1x128xi1>
    %289 = arith.xori %285, %288 : vector<1x128xi1>
    %290 = arith.andi %289, %283 : vector<1x128xi1>
    %291 = vector.broadcast %279 : i32 to vector<1x128xi32>
    %292 = arith.addi %281, %291 : vector<1x128xi32>
    %293 = arith.select %290, %292, %281 : vector<1x128xi1>, vector<1x128xi32>
    %c16_i32 = arith.constant 16 : i32
    %294 = vector.broadcast %c16_i32 : i32 to vector<1x128xi32>
    %295 = arith.cmpi slt, %293, %294 : vector<1x128xi32>
    %cst_82 = arith.constant 0.000000e+00 : f32
    %296 = vector.broadcast %cst_82 : f32 to vector<2x32xf32>
    %cst_83 = arith.constant 0.000000e+00 : f32
    %297 = vector.broadcast %cst_83 : f32 to vector<2x32xf32>
    %298 = vector.extract_strided_slice %276 {offsets = [0, 0, 0], sizes = [2, 1, 128], strides = [1, 1, 1]} : vector<2x8x128xf32> to vector<2x1x128xf32>
    %299 = vector.shape_cast %298 : vector<2x1x128xf32> to vector<2x128xf32>
    %300 = vector.extract_strided_slice %276 {offsets = [0, 7, 0], sizes = [2, 1, 128], strides = [1, 1, 1]} : vector<2x8x128xf32> to vector<2x1x128xf32>
    %301 = vector.shape_cast %300 : vector<2x1x128xf32> to vector<2x128xf32>
    %302 = vector.shape_cast %295 : vector<1x128xi1> to vector<1x128xi1>
    %303 = vector.broadcast %302 : vector<1x128xi1> to vector<2x128xi1>
    %304 = arith.select %303, %299, %301 : vector<2x128xi1>, vector<2x128xf32>
    %305 = arith.truncf %296 : vector<2x32xf32> to vector<2x32xbf16>
    %cst_84 = arith.constant dense<0.000000e+00> : vector<2x128xf32>
    %306 = tpu.matmul %305, %272, %cst_84 {dimension_numbers = #tpu.dot_dimension_numbers<[1], [0], [0], [1], [0, 0, 1, 1], [], []>} : vector<2x32xbf16>, vector<32x128xbf16>, vector<2x128xf32> -> vector<2x128xf32>
    %307 = arith.addf %304, %306 : vector<2x128xf32>
    %308 = vector.extract_strided_slice %307 {offsets = [0, 0], sizes = [2, 96], strides = [1, 1]} : vector<2x128xf32> to vector<2x96xf32>
    %309 = arith.negf %308 : vector<2x96xf32>
    %310 = math.exp %309 : vector<2x96xf32>
    %cst_85 = arith.constant 1.000000e+00 : f32
    %311 = vector.broadcast %cst_85 : f32 to vector<2x96xf32>
    %312 = arith.addf %311, %310 : vector<2x96xf32>
    %313 = arith.divf %311, %312 : vector<2x96xf32>
    %314 = vector.extract_strided_slice %307 {offsets = [0, 96], sizes = [2, 32], strides = [1, 1]} : vector<2x128xf32> to vector<2x32xf32>
    %315 = math.tanh %314 : vector<2x32xf32>
    %316 = vector.extract_strided_slice %313 {offsets = [0, 0], sizes = [2, 32], strides = [1, 1]} : vector<2x96xf32> to vector<2x32xf32>
    %317 = vector.extract_strided_slice %313 {offsets = [0, 32], sizes = [2, 32], strides = [1, 1]} : vector<2x96xf32> to vector<2x32xf32>
    %318 = vector.extract_strided_slice %313 {offsets = [0, 64], sizes = [2, 32], strides = [1, 1]} : vector<2x96xf32> to vector<2x32xf32>
    %319 = arith.mulf %317, %297 : vector<2x32xf32>
    %320 = arith.mulf %316, %315 : vector<2x32xf32>
    %321 = arith.addf %319, %320 : vector<2x32xf32>
    %322 = math.tanh %321 : vector<2x32xf32>
    %323 = arith.mulf %318, %322 : vector<2x32xf32>
    %324 = vector.extract_strided_slice %276 {offsets = [0, 1, 0], sizes = [2, 1, 128], strides = [1, 1, 1]} : vector<2x8x128xf32> to vector<2x1x128xf32>
    %325 = vector.shape_cast %324 : vector<2x1x128xf32> to vector<2x128xf32>
    %326 = vector.extract_strided_slice %276 {offsets = [0, 6, 0], sizes = [2, 1, 128], strides = [1, 1, 1]} : vector<2x8x128xf32> to vector<2x1x128xf32>
    %327 = vector.shape_cast %326 : vector<2x1x128xf32> to vector<2x128xf32>
    %328 = vector.shape_cast %295 : vector<1x128xi1> to vector<1x128xi1>
    %329 = vector.broadcast %328 : vector<1x128xi1> to vector<2x128xi1>
    %330 = arith.select %329, %325, %327 : vector<2x128xi1>, vector<2x128xf32>
    %331 = arith.truncf %323 : vector<2x32xf32> to vector<2x32xbf16>
    %cst_86 = arith.constant dense<0.000000e+00> : vector<2x128xf32>
    %332 = tpu.matmul %331, %272, %cst_86 {dimension_numbers = #tpu.dot_dimension_numbers<[1], [0], [0], [1], [0, 0, 1, 1], [], []>} : vector<2x32xbf16>, vector<32x128xbf16>, vector<2x128xf32> -> vector<2x128xf32>
    %333 = arith.addf %330, %332 : vector<2x128xf32>
    %334 = vector.extract_strided_slice %333 {offsets = [0, 0], sizes = [2, 96], strides = [1, 1]} : vector<2x128xf32> to vector<2x96xf32>
    %335 = arith.negf %334 : vector<2x96xf32>
    %336 = math.exp %335 : vector<2x96xf32>
    %cst_87 = arith.constant 1.000000e+00 : f32
    %337 = vector.broadcast %cst_87 : f32 to vector<2x96xf32>
    %338 = arith.addf %337, %336 : vector<2x96xf32>
    %339 = arith.divf %337, %338 : vector<2x96xf32>
    %340 = vector.extract_strided_slice %333 {offsets = [0, 96], sizes = [2, 32], strides = [1, 1]} : vector<2x128xf32> to vector<2x32xf32>
    %341 = math.tanh %340 : vector<2x32xf32>
    %342 = vector.extract_strided_slice %339 {offsets = [0, 0], sizes = [2, 32], strides = [1, 1]} : vector<2x96xf32> to vector<2x32xf32>
    %343 = vector.extract_strided_slice %339 {offsets = [0, 32], sizes = [2, 32], strides = [1, 1]} : vector<2x96xf32> to vector<2x32xf32>
    %344 = vector.extract_strided_slice %339 {offsets = [0, 64], sizes = [2, 32], strides = [1, 1]} : vector<2x96xf32> to vector<2x32xf32>
    %345 = arith.mulf %343, %321 : vector<2x32xf32>
    %346 = arith.mulf %342, %341 : vector<2x32xf32>
    %347 = arith.addf %345, %346 : vector<2x32xf32>
    %348 = math.tanh %347 : vector<2x32xf32>
    %349 = arith.mulf %344, %348 : vector<2x32xf32>
    %350 = vector.extract_strided_slice %276 {offsets = [0, 2, 0], sizes = [2, 1, 128], strides = [1, 1, 1]} : vector<2x8x128xf32> to vector<2x1x128xf32>
    %351 = vector.shape_cast %350 : vector<2x1x128xf32> to vector<2x128xf32>
    %352 = vector.extract_strided_slice %276 {offsets = [0, 5, 0], sizes = [2, 1, 128], strides = [1, 1, 1]} : vector<2x8x128xf32> to vector<2x1x128xf32>
    %353 = vector.shape_cast %352 : vector<2x1x128xf32> to vector<2x128xf32>
    %354 = vector.shape_cast %295 : vector<1x128xi1> to vector<1x128xi1>
    %355 = vector.broadcast %354 : vector<1x128xi1> to vector<2x128xi1>
    %356 = arith.select %355, %351, %353 : vector<2x128xi1>, vector<2x128xf32>
    %357 = arith.truncf %349 : vector<2x32xf32> to vector<2x32xbf16>
    %cst_88 = arith.constant dense<0.000000e+00> : vector<2x128xf32>
    %358 = tpu.matmul %357, %272, %cst_88 {dimension_numbers = #tpu.dot_dimension_numbers<[1], [0], [0], [1], [0, 0, 1, 1], [], []>} : vector<2x32xbf16>, vector<32x128xbf16>, vector<2x128xf32> -> vector<2x128xf32>
    %359 = arith.addf %356, %358 : vector<2x128xf32>
    %360 = vector.extract_strided_slice %359 {offsets = [0, 0], sizes = [2, 96], strides = [1, 1]} : vector<2x128xf32> to vector<2x96xf32>
    %361 = arith.negf %360 : vector<2x96xf32>
    %362 = math.exp %361 : vector<2x96xf32>
    %cst_89 = arith.constant 1.000000e+00 : f32
    %363 = vector.broadcast %cst_89 : f32 to vector<2x96xf32>
    %364 = arith.addf %363, %362 : vector<2x96xf32>
    %365 = arith.divf %363, %364 : vector<2x96xf32>
    %366 = vector.extract_strided_slice %359 {offsets = [0, 96], sizes = [2, 32], strides = [1, 1]} : vector<2x128xf32> to vector<2x32xf32>
    %367 = math.tanh %366 : vector<2x32xf32>
    %368 = vector.extract_strided_slice %365 {offsets = [0, 0], sizes = [2, 32], strides = [1, 1]} : vector<2x96xf32> to vector<2x32xf32>
    %369 = vector.extract_strided_slice %365 {offsets = [0, 32], sizes = [2, 32], strides = [1, 1]} : vector<2x96xf32> to vector<2x32xf32>
    %370 = vector.extract_strided_slice %365 {offsets = [0, 64], sizes = [2, 32], strides = [1, 1]} : vector<2x96xf32> to vector<2x32xf32>
    %371 = arith.mulf %369, %347 : vector<2x32xf32>
    %372 = arith.mulf %368, %367 : vector<2x32xf32>
    %373 = arith.addf %371, %372 : vector<2x32xf32>
    %374 = math.tanh %373 : vector<2x32xf32>
    %375 = arith.mulf %370, %374 : vector<2x32xf32>
    %376 = vector.extract_strided_slice %276 {offsets = [0, 3, 0], sizes = [2, 1, 128], strides = [1, 1, 1]} : vector<2x8x128xf32> to vector<2x1x128xf32>
    %377 = vector.shape_cast %376 : vector<2x1x128xf32> to vector<2x128xf32>
    %378 = vector.extract_strided_slice %276 {offsets = [0, 4, 0], sizes = [2, 1, 128], strides = [1, 1, 1]} : vector<2x8x128xf32> to vector<2x1x128xf32>
    %379 = vector.shape_cast %378 : vector<2x1x128xf32> to vector<2x128xf32>
    %380 = vector.shape_cast %295 : vector<1x128xi1> to vector<1x128xi1>
    %381 = vector.broadcast %380 : vector<1x128xi1> to vector<2x128xi1>
    %382 = arith.select %381, %377, %379 : vector<2x128xi1>, vector<2x128xf32>
    %383 = arith.truncf %375 : vector<2x32xf32> to vector<2x32xbf16>
    %cst_90 = arith.constant dense<0.000000e+00> : vector<2x128xf32>
    %384 = tpu.matmul %383, %272, %cst_90 {dimension_numbers = #tpu.dot_dimension_numbers<[1], [0], [0], [1], [0, 0, 1, 1], [], []>} : vector<2x32xbf16>, vector<32x128xbf16>, vector<2x128xf32> -> vector<2x128xf32>
    %385 = arith.addf %382, %384 : vector<2x128xf32>
    %386 = vector.extract_strided_slice %385 {offsets = [0, 0], sizes = [2, 96], strides = [1, 1]} : vector<2x128xf32> to vector<2x96xf32>
    %387 = arith.negf %386 : vector<2x96xf32>
    %388 = math.exp %387 : vector<2x96xf32>
    %cst_91 = arith.constant 1.000000e+00 : f32
    %389 = vector.broadcast %cst_91 : f32 to vector<2x96xf32>
    %390 = arith.addf %389, %388 : vector<2x96xf32>
    %391 = arith.divf %389, %390 : vector<2x96xf32>
    %392 = vector.extract_strided_slice %385 {offsets = [0, 96], sizes = [2, 32], strides = [1, 1]} : vector<2x128xf32> to vector<2x32xf32>
    %393 = math.tanh %392 : vector<2x32xf32>
    %394 = vector.extract_strided_slice %391 {offsets = [0, 0], sizes = [2, 32], strides = [1, 1]} : vector<2x96xf32> to vector<2x32xf32>
    %395 = vector.extract_strided_slice %391 {offsets = [0, 32], sizes = [2, 32], strides = [1, 1]} : vector<2x96xf32> to vector<2x32xf32>
    %396 = vector.extract_strided_slice %391 {offsets = [0, 64], sizes = [2, 32], strides = [1, 1]} : vector<2x96xf32> to vector<2x32xf32>
    %397 = arith.mulf %395, %373 : vector<2x32xf32>
    %398 = arith.mulf %394, %393 : vector<2x32xf32>
    %399 = arith.addf %397, %398 : vector<2x32xf32>
    %400 = math.tanh %399 : vector<2x32xf32>
    %401 = arith.mulf %396, %400 : vector<2x32xf32>
    %402 = vector.extract_strided_slice %276 {offsets = [0, 4, 0], sizes = [2, 1, 128], strides = [1, 1, 1]} : vector<2x8x128xf32> to vector<2x1x128xf32>
    %403 = vector.shape_cast %402 : vector<2x1x128xf32> to vector<2x128xf32>
    %404 = vector.extract_strided_slice %276 {offsets = [0, 3, 0], sizes = [2, 1, 128], strides = [1, 1, 1]} : vector<2x8x128xf32> to vector<2x1x128xf32>
    %405 = vector.shape_cast %404 : vector<2x1x128xf32> to vector<2x128xf32>
    %406 = vector.shape_cast %295 : vector<1x128xi1> to vector<1x128xi1>
    %407 = vector.broadcast %406 : vector<1x128xi1> to vector<2x128xi1>
    %408 = arith.select %407, %403, %405 : vector<2x128xi1>, vector<2x128xf32>
    %409 = arith.truncf %401 : vector<2x32xf32> to vector<2x32xbf16>
    %cst_92 = arith.constant dense<0.000000e+00> : vector<2x128xf32>
    %410 = tpu.matmul %409, %272, %cst_92 {dimension_numbers = #tpu.dot_dimension_numbers<[1], [0], [0], [1], [0, 0, 1, 1], [], []>} : vector<2x32xbf16>, vector<32x128xbf16>, vector<2x128xf32> -> vector<2x128xf32>
    %411 = arith.addf %408, %410 : vector<2x128xf32>
    %412 = vector.extract_strided_slice %411 {offsets = [0, 0], sizes = [2, 96], strides = [1, 1]} : vector<2x128xf32> to vector<2x96xf32>
    %413 = arith.negf %412 : vector<2x96xf32>
    %414 = math.exp %413 : vector<2x96xf32>
    %cst_93 = arith.constant 1.000000e+00 : f32
    %415 = vector.broadcast %cst_93 : f32 to vector<2x96xf32>
    %416 = arith.addf %415, %414 : vector<2x96xf32>
    %417 = arith.divf %415, %416 : vector<2x96xf32>
    %418 = vector.extract_strided_slice %411 {offsets = [0, 96], sizes = [2, 32], strides = [1, 1]} : vector<2x128xf32> to vector<2x32xf32>
    %419 = math.tanh %418 : vector<2x32xf32>
    %420 = vector.extract_strided_slice %417 {offsets = [0, 0], sizes = [2, 32], strides = [1, 1]} : vector<2x96xf32> to vector<2x32xf32>
    %421 = vector.extract_strided_slice %417 {offsets = [0, 32], sizes = [2, 32], strides = [1, 1]} : vector<2x96xf32> to vector<2x32xf32>
    %422 = vector.extract_strided_slice %417 {offsets = [0, 64], sizes = [2, 32], strides = [1, 1]} : vector<2x96xf32> to vector<2x32xf32>
    %423 = arith.mulf %421, %399 : vector<2x32xf32>
    %424 = arith.mulf %420, %419 : vector<2x32xf32>
    %425 = arith.addf %423, %424 : vector<2x32xf32>
    %426 = math.tanh %425 : vector<2x32xf32>
    %427 = arith.mulf %422, %426 : vector<2x32xf32>
    %428 = vector.extract_strided_slice %276 {offsets = [0, 5, 0], sizes = [2, 1, 128], strides = [1, 1, 1]} : vector<2x8x128xf32> to vector<2x1x128xf32>
    %429 = vector.shape_cast %428 : vector<2x1x128xf32> to vector<2x128xf32>
    %430 = vector.extract_strided_slice %276 {offsets = [0, 2, 0], sizes = [2, 1, 128], strides = [1, 1, 1]} : vector<2x8x128xf32> to vector<2x1x128xf32>
    %431 = vector.shape_cast %430 : vector<2x1x128xf32> to vector<2x128xf32>
    %432 = vector.shape_cast %295 : vector<1x128xi1> to vector<1x128xi1>
    %433 = vector.broadcast %432 : vector<1x128xi1> to vector<2x128xi1>
    %434 = arith.select %433, %429, %431 : vector<2x128xi1>, vector<2x128xf32>
    %435 = arith.truncf %427 : vector<2x32xf32> to vector<2x32xbf16>
    %cst_94 = arith.constant dense<0.000000e+00> : vector<2x128xf32>
    %436 = tpu.matmul %435, %272, %cst_94 {dimension_numbers = #tpu.dot_dimension_numbers<[1], [0], [0], [1], [0, 0, 1, 1], [], []>} : vector<2x32xbf16>, vector<32x128xbf16>, vector<2x128xf32> -> vector<2x128xf32>
    %437 = arith.addf %434, %436 : vector<2x128xf32>
    %438 = vector.extract_strided_slice %437 {offsets = [0, 0], sizes = [2, 96], strides = [1, 1]} : vector<2x128xf32> to vector<2x96xf32>
    %439 = arith.negf %438 : vector<2x96xf32>
    %440 = math.exp %439 : vector<2x96xf32>
    %cst_95 = arith.constant 1.000000e+00 : f32
    %441 = vector.broadcast %cst_95 : f32 to vector<2x96xf32>
    %442 = arith.addf %441, %440 : vector<2x96xf32>
    %443 = arith.divf %441, %442 : vector<2x96xf32>
    %444 = vector.extract_strided_slice %437 {offsets = [0, 96], sizes = [2, 32], strides = [1, 1]} : vector<2x128xf32> to vector<2x32xf32>
    %445 = math.tanh %444 : vector<2x32xf32>
    %446 = vector.extract_strided_slice %443 {offsets = [0, 0], sizes = [2, 32], strides = [1, 1]} : vector<2x96xf32> to vector<2x32xf32>
    %447 = vector.extract_strided_slice %443 {offsets = [0, 32], sizes = [2, 32], strides = [1, 1]} : vector<2x96xf32> to vector<2x32xf32>
    %448 = vector.extract_strided_slice %443 {offsets = [0, 64], sizes = [2, 32], strides = [1, 1]} : vector<2x96xf32> to vector<2x32xf32>
    %449 = arith.mulf %447, %425 : vector<2x32xf32>
    %450 = arith.mulf %446, %445 : vector<2x32xf32>
    %451 = arith.addf %449, %450 : vector<2x32xf32>
    %452 = math.tanh %451 : vector<2x32xf32>
    %453 = arith.mulf %448, %452 : vector<2x32xf32>
    %454 = vector.extract_strided_slice %276 {offsets = [0, 6, 0], sizes = [2, 1, 128], strides = [1, 1, 1]} : vector<2x8x128xf32> to vector<2x1x128xf32>
    %455 = vector.shape_cast %454 : vector<2x1x128xf32> to vector<2x128xf32>
    %456 = vector.extract_strided_slice %276 {offsets = [0, 1, 0], sizes = [2, 1, 128], strides = [1, 1, 1]} : vector<2x8x128xf32> to vector<2x1x128xf32>
    %457 = vector.shape_cast %456 : vector<2x1x128xf32> to vector<2x128xf32>
    %458 = vector.shape_cast %295 : vector<1x128xi1> to vector<1x128xi1>
    %459 = vector.broadcast %458 : vector<1x128xi1> to vector<2x128xi1>
    %460 = arith.select %459, %455, %457 : vector<2x128xi1>, vector<2x128xf32>
    %461 = arith.truncf %453 : vector<2x32xf32> to vector<2x32xbf16>
    %cst_96 = arith.constant dense<0.000000e+00> : vector<2x128xf32>
    %462 = tpu.matmul %461, %272, %cst_96 {dimension_numbers = #tpu.dot_dimension_numbers<[1], [0], [0], [1], [0, 0, 1, 1], [], []>} : vector<2x32xbf16>, vector<32x128xbf16>, vector<2x128xf32> -> vector<2x128xf32>
    %463 = arith.addf %460, %462 : vector<2x128xf32>
    %464 = vector.extract_strided_slice %463 {offsets = [0, 0], sizes = [2, 96], strides = [1, 1]} : vector<2x128xf32> to vector<2x96xf32>
    %465 = arith.negf %464 : vector<2x96xf32>
    %466 = math.exp %465 : vector<2x96xf32>
    %cst_97 = arith.constant 1.000000e+00 : f32
    %467 = vector.broadcast %cst_97 : f32 to vector<2x96xf32>
    %468 = arith.addf %467, %466 : vector<2x96xf32>
    %469 = arith.divf %467, %468 : vector<2x96xf32>
    %470 = vector.extract_strided_slice %463 {offsets = [0, 96], sizes = [2, 32], strides = [1, 1]} : vector<2x128xf32> to vector<2x32xf32>
    %471 = math.tanh %470 : vector<2x32xf32>
    %472 = vector.extract_strided_slice %469 {offsets = [0, 0], sizes = [2, 32], strides = [1, 1]} : vector<2x96xf32> to vector<2x32xf32>
    %473 = vector.extract_strided_slice %469 {offsets = [0, 32], sizes = [2, 32], strides = [1, 1]} : vector<2x96xf32> to vector<2x32xf32>
    %474 = vector.extract_strided_slice %469 {offsets = [0, 64], sizes = [2, 32], strides = [1, 1]} : vector<2x96xf32> to vector<2x32xf32>
    %475 = arith.mulf %473, %451 : vector<2x32xf32>
    %476 = arith.mulf %472, %471 : vector<2x32xf32>
    %477 = arith.addf %475, %476 : vector<2x32xf32>
    %478 = math.tanh %477 : vector<2x32xf32>
    %479 = arith.mulf %474, %478 : vector<2x32xf32>
    %480 = vector.extract_strided_slice %276 {offsets = [0, 7, 0], sizes = [2, 1, 128], strides = [1, 1, 1]} : vector<2x8x128xf32> to vector<2x1x128xf32>
    %481 = vector.shape_cast %480 : vector<2x1x128xf32> to vector<2x128xf32>
    %482 = vector.extract_strided_slice %276 {offsets = [0, 0, 0], sizes = [2, 1, 128], strides = [1, 1, 1]} : vector<2x8x128xf32> to vector<2x1x128xf32>
    %483 = vector.shape_cast %482 : vector<2x1x128xf32> to vector<2x128xf32>
    %484 = vector.shape_cast %295 : vector<1x128xi1> to vector<1x128xi1>
    %485 = vector.broadcast %484 : vector<1x128xi1> to vector<2x128xi1>
    %486 = arith.select %485, %481, %483 : vector<2x128xi1>, vector<2x128xf32>
    %487 = arith.truncf %479 : vector<2x32xf32> to vector<2x32xbf16>
    %cst_98 = arith.constant dense<0.000000e+00> : vector<2x128xf32>
    %488 = tpu.matmul %487, %272, %cst_98 {dimension_numbers = #tpu.dot_dimension_numbers<[1], [0], [0], [1], [0, 0, 1, 1], [], []>} : vector<2x32xbf16>, vector<32x128xbf16>, vector<2x128xf32> -> vector<2x128xf32>
    %489 = arith.addf %486, %488 : vector<2x128xf32>
    %490 = vector.extract_strided_slice %489 {offsets = [0, 0], sizes = [2, 96], strides = [1, 1]} : vector<2x128xf32> to vector<2x96xf32>
    %491 = arith.negf %490 : vector<2x96xf32>
    %492 = math.exp %491 : vector<2x96xf32>
    %cst_99 = arith.constant 1.000000e+00 : f32
    %493 = vector.broadcast %cst_99 : f32 to vector<2x96xf32>
    %494 = arith.addf %493, %492 : vector<2x96xf32>
    %495 = arith.divf %493, %494 : vector<2x96xf32>
    %496 = vector.extract_strided_slice %489 {offsets = [0, 96], sizes = [2, 32], strides = [1, 1]} : vector<2x128xf32> to vector<2x32xf32>
    %497 = math.tanh %496 : vector<2x32xf32>
    %498 = vector.extract_strided_slice %495 {offsets = [0, 0], sizes = [2, 32], strides = [1, 1]} : vector<2x96xf32> to vector<2x32xf32>
    %499 = vector.extract_strided_slice %495 {offsets = [0, 32], sizes = [2, 32], strides = [1, 1]} : vector<2x96xf32> to vector<2x32xf32>
    %500 = vector.extract_strided_slice %495 {offsets = [0, 64], sizes = [2, 32], strides = [1, 1]} : vector<2x96xf32> to vector<2x32xf32>
    %501 = arith.mulf %499, %477 : vector<2x32xf32>
    %502 = arith.mulf %498, %497 : vector<2x32xf32>
    %503 = arith.addf %501, %502 : vector<2x32xf32>
    %504 = math.tanh %503 : vector<2x32xf32>
    %505 = arith.mulf %500, %504 : vector<2x32xf32>
    %506 = vector.shape_cast %323 : vector<2x32xf32> to vector<2x1x32xf32>
    %507 = vector.shape_cast %349 : vector<2x32xf32> to vector<2x1x32xf32>
    %508 = vector.shape_cast %375 : vector<2x32xf32> to vector<2x1x32xf32>
    %509 = vector.shape_cast %401 : vector<2x32xf32> to vector<2x1x32xf32>
    %510 = vector.shape_cast %427 : vector<2x32xf32> to vector<2x1x32xf32>
    %511 = vector.shape_cast %453 : vector<2x32xf32> to vector<2x1x32xf32>
    %512 = vector.shape_cast %479 : vector<2x32xf32> to vector<2x1x32xf32>
    %513 = vector.shape_cast %505 : vector<2x32xf32> to vector<2x1x32xf32>
    %514 = tpu.concatenate %506, %507, %508, %509, %510, %511, %512, %513 in 1 : vector<2x1x32xf32>, vector<2x1x32xf32>, vector<2x1x32xf32>, vector<2x1x32xf32>, vector<2x1x32xf32>, vector<2x1x32xf32>, vector<2x1x32xf32>, vector<2x1x32xf32> -> vector<2x8x32xf32>
    %515 = vector.shape_cast %505 : vector<2x32xf32> to vector<2x1x32xf32>
    %516 = vector.shape_cast %479 : vector<2x32xf32> to vector<2x1x32xf32>
    %517 = vector.shape_cast %453 : vector<2x32xf32> to vector<2x1x32xf32>
    %518 = vector.shape_cast %427 : vector<2x32xf32> to vector<2x1x32xf32>
    %519 = vector.shape_cast %401 : vector<2x32xf32> to vector<2x1x32xf32>
    %520 = vector.shape_cast %375 : vector<2x32xf32> to vector<2x1x32xf32>
    %521 = vector.shape_cast %349 : vector<2x32xf32> to vector<2x1x32xf32>
    %522 = vector.shape_cast %323 : vector<2x32xf32> to vector<2x1x32xf32>
    %523 = tpu.concatenate %515, %516, %517, %518, %519, %520, %521, %522 in 1 : vector<2x1x32xf32>, vector<2x1x32xf32>, vector<2x1x32xf32>, vector<2x1x32xf32>, vector<2x1x32xf32>, vector<2x1x32xf32>, vector<2x1x32xf32>, vector<2x1x32xf32> -> vector<2x8x32xf32>
    %524 = vector.extract_strided_slice %514 {offsets = [0, 0, 0], sizes = [2, 8, 16], strides = [1, 1, 1]} : vector<2x8x32xf32> to vector<2x8x16xf32>
    %525 = vector.extract_strided_slice %523 {offsets = [0, 0, 16], sizes = [2, 8, 16], strides = [1, 1, 1]} : vector<2x8x32xf32> to vector<2x8x16xf32>
    %526 = tpu.concatenate %524, %525 in 2 : vector<2x8x16xf32>, vector<2x8x16xf32> -> vector<2x8x32xf32>
    %527 = vector.shape_cast %190 : vector<1x32xf32> to vector<1x1x32xf32>
    %528 = vector.broadcast %527 : vector<1x1x32xf32> to vector<2x8x32xf32>
    %529 = arith.mulf %526, %528 : vector<2x8x32xf32>
    %cst_100 = arith.constant dense<0.000000e+00> : vector<2x8xf32>
    %530 = vector.multi_reduction <add>, %529, %cst_100 [2] : vector<2x8x32xf32> to vector<2x8xf32>
    %cst_101 = arith.constant dense<0xFF800000> : vector<2xf32>
    %531 = vector.multi_reduction <maximumf>, %530, %cst_101 [1] : vector<2x8xf32> to vector<2xf32>
    %532 = vector.shape_cast %531 : vector<2xf32> to vector<2x1xf32>
    %533 = vector.broadcast %532 : vector<2x1xf32> to vector<2x8xf32>
    %534 = arith.subf %530, %533 : vector<2x8xf32>
    %535 = math.exp %534 : vector<2x8xf32>
    %cst_102 = arith.constant dense<0.000000e+00> : vector<2xf32>
    %536 = vector.multi_reduction <add>, %535, %cst_102 [1] : vector<2x8xf32> to vector<2xf32>
    %537 = vector.shape_cast %536 : vector<2xf32> to vector<2x1xf32>
    %538 = tpu.reciprocal %537 {approx = true} : vector<2x1xf32> -> vector<2x1xf32>
    %539 = vector.broadcast %538 : vector<2x1xf32> to vector<2x8xf32>
    %540 = arith.mulf %535, %539 : vector<2x8xf32>
    %541 = vector.shape_cast %540 : vector<2x8xf32> to vector<2x8x1xf32>
    %542 = vector.broadcast %541 : vector<2x8x1xf32> to vector<2x8x32xf32>
    %543 = arith.mulf %542, %526 : vector<2x8x32xf32>
    %cst_103 = arith.constant dense<0.000000e+00> : vector<2x32xf32>
    %544 = vector.multi_reduction <add>, %543, %cst_103 [1] : vector<2x8x32xf32> to vector<2x32xf32>
    %c0_104 = arith.constant 0 : index
    %c0_105 = arith.constant 0 : index
    %545 = vector.load %arg5[%c0_104, %c0_105] : memref<2x8xf32, #tpu.memory_space<vmem>>, vector<2x8xf32>
    tpu.vector_store %arg5[%c0_104, %c0_105], %540 {strides = array<i32>} : memref<2x8xf32, #tpu.memory_space<vmem>>, vector<2x8xf32>,
    %c1696 = arith.constant 1696 : index
    %c0_106 = arith.constant 0 : index
    %546 = vector.load %arg6[%c1696, %c0_106] : memref<1896x128xbf16, #tpu.memory_space<vmem>>, vector<128x128xbf16>
    %547 = arith.truncf %181 : vector<2x128xf32> to vector<2x128xbf16>
    %cst_107 = arith.constant dense<0.000000e+00> : vector<2x128xf32>
    %548 = tpu.matmul %547, %546, %cst_107 {dimension_numbers = #tpu.dot_dimension_numbers<[1], [0], [0], [1], [0, 0, 1, 1], [], []>} : vector<2x128xbf16>, vector<128x128xbf16>, vector<2x128xf32> -> vector<2x128xf32>
    %549 = vector.extract_strided_slice %548 {offsets = [0, 0], sizes = [2, 32], strides = [1, 1]} : vector<2x128xf32> to vector<2x32xf32>
    %550 = vector.broadcast %189 : vector<1x32xf32> to vector<2x32xf32>
    %551 = arith.addf %549, %550 : vector<2x32xf32>
    %552 = math.tanh %270 : vector<2x32xf32>
    %553 = math.tanh %544 : vector<2x32xf32>
    %cst_108 = arith.constant 1.000000e+00 : f32
    %554 = vector.broadcast %cst_108 : f32 to vector<2x32xf32>
    %555 = arith.subf %554, %552 : vector<2x32xf32>
    %556 = arith.mulf %555, %270 : vector<2x32xf32>
    %557 = arith.mulf %552, %551 : vector<2x32xf32>
    %558 = arith.addf %556, %557 : vector<2x32xf32>
    %cst_109 = arith.constant 1.000000e+00 : f32
    %559 = vector.broadcast %cst_109 : f32 to vector<2x32xf32>
    %560 = arith.subf %559, %553 : vector<2x32xf32>
    %561 = arith.mulf %560, %544 : vector<2x32xf32>
    %562 = arith.mulf %553, %551 : vector<2x32xf32>
    %563 = arith.addf %561, %562 : vector<2x32xf32>
    %564 = tpu.concatenate %558, %563 in 1 : vector<2x32xf32>, vector<2x32xf32> -> vector<2x64xf32>
    %c1824 = arith.constant 1824 : index
    %c0_110 = arith.constant 0 : index
    %565 = vector.load %arg6[%c1824, %c0_110] : memref<1896x128xbf16, #tpu.memory_space<vmem>>, vector<64x128xbf16>
    %566 = arith.truncf %564 : vector<2x64xf32> to vector<2x64xbf16>
    %cst_111 = arith.constant dense<0.000000e+00> : vector<2x128xf32>
    %567 = tpu.matmul %566, %565, %cst_111 {dimension_numbers = #tpu.dot_dimension_numbers<[1], [0], [0], [1], [0, 0, 1, 1], [], []>} : vector<2x64xbf16>, vector<64x128xbf16>, vector<2x128xf32> -> vector<2x128xf32>
    %568 = vector.extract_strided_slice %567 {offsets = [0, 0], sizes = [2, 4], strides = [1, 1]} : vector<2x128xf32> to vector<2x4xf32>
    %569 = vector.broadcast %191 : vector<1x4xf32> to vector<2x4xf32>
    %570 = arith.addf %568, %569 : vector<2x4xf32>
    %cst_112 = arith.constant dense<0xFF800000> : vector<2xf32>
    %571 = vector.multi_reduction <maximumf>, %570, %cst_112 [1] : vector<2x4xf32> to vector<2xf32>
    %572 = vector.shape_cast %571 : vector<2xf32> to vector<2x1xf32>
    %573 = vector.broadcast %572 : vector<2x1xf32> to vector<2x4xf32>
    %574 = arith.subf %570, %573 : vector<2x4xf32>
    %575 = math.exp %574 : vector<2x4xf32>
    %cst_113 = arith.constant dense<0.000000e+00> : vector<2xf32>
    %576 = vector.multi_reduction <add>, %575, %cst_113 [1] : vector<2x4xf32> to vector<2xf32>
    %577 = vector.shape_cast %576 : vector<2xf32> to vector<2x1xf32>
    %578 = vector.broadcast %577 : vector<2x1xf32> to vector<2x4xf32>
    %579 = arith.divf %575, %578 : vector<2x4xf32>
    %c0_114 = arith.constant 0 : index
    %c0_115 = arith.constant 0 : index
    %580 = vector.load %arg4[%c0_114, %c0_115] : memref<2x4xf32, #tpu.memory_space<vmem>>, vector<2x4xf32>
    tpu.vector_store %arg4[%c0_114, %c0_115], %579 {strides = array<i32>} : memref<2x4xf32, #tpu.memory_space<vmem>>, vector<2x4xf32>,
    return
  }
}

</mosaic_0001>

<llo_original>
// kernel: bganet_forward.1
$region0: #{bganet_forward.1}
  #allocation0 [shape = 'u32[]', space=smem, size = 0x4, offset = 0x4, fixed_abs, tag = 'smem constant byte address 0x4 - core index']
  #allocation1 [shape = 'u32[144,128]{1,0:T(1,128)}', space=vmem, size = 0x12000, scoped, tag = 'internal scratch']
  #allocation2 [shape = 'bf16[1896,128]{1,0:T(8,128)(2,1)}', space=vmem, size = 0x76800, scoped, tag = 'scratch operand']
  #allocation3 [shape = 's32[1]{0}', space=sflag, size = 0x4, scoped, tag = 'scratch operand']
  #allocation12 [shape = 's32[]', space=sflag, size = 0x4, offset = 0, fixed_abs, tag = 'sflag constant byte address 0x0 - dummy sync flag']
  #allocation13 [shape = 's32[]', space=sflag, size = 0x4, offset = 0, fixed_abs, tag = 'sflag constant byte address 0x0 - dummy sync flag']
  #allocation14 [shape = 'u32[]', space=smem, size = 0x4, offset = 0x44, fixed_abs, tag = 'smem constant byte address 0x44 - assertion arg 0']
  #allocation15 [shape = 'u32[]', space=smem, size = 0x4, offset = 0x48, fixed_abs, tag = 'smem constant byte address 0x48 - assertion arg 1']
  %s0 = inlined_call_operand.vmem [shape: f32[32,128], index: 0, kind: input, shape index: {}]
  %s1 = inlined_call_operand.hbm [shape: bf16[288,512], index: 1, kind: input, shape index: {}]
  %s2 = inlined_call_operand.hbm [shape: bf16[776,128], index: 2, kind: input, shape index: {}]
  %s3 = inlined_call_operand.hbm [shape: bf16[1896,128], index: 3, kind: input, shape index: {}]
  %s4 = inlined_call_operand.hbm [shape: f32[2,4], index: 4, kind: output, shape index: {0}]
  %s5 = inlined_call_operand.hbm [shape: f32[2,8], index: 5, kind: output, shape index: {1}]
  %6 = xla_tuple %s4, %s5
  %s7 = sld [smem:[#allocation0]]
  $region42: #{bganet_forward.1} parent=0
    _
  %s9 = ssub.s32 1, %s7
  %s10 = scalar_select 0, %s9, %s7
  $region1: #{bganet_forward.1} parent=0
    #allocation4 [shape = 'u8[294912]{0}', space=vmem, size = 0x48000, scoped, tag = 'input window, operand 1, single buffered']
    #allocation5 [shape = 's32[1]{0}', space=sflag, size = 0x4, scoped, tag = 'scoped memory for bganet_forward.1']
    #allocation6 [shape = 's32[1]{0}', space=sflag, size = 0x4, scoped, tag = 'scoped memory for bganet_forward.1']
    #allocation7 [shape = 'u8[198656]{0}', space=vmem, size = 0x30800, scoped, tag = 'input window, operand 2, single buffered']
    #allocation8 [shape = 's32[1]{0}', space=sflag, size = 0x4, scoped, tag = 'scoped memory for bganet_forward.1']
    #allocation9 [shape = 'u8[1024]{0}', space=vmem, size = 0x400, scoped, tag = 'output window, operand 0, single buffered']
    #allocation10 [shape = 'u8[1024]{0}', space=vmem, size = 0x400, scoped, tag = 'output window, operand 1, single buffered']
    #allocation11 [shape = 's32[1]{0}', space=sflag, size = 0x4, scoped, tag = 'scoped memory for bganet_forward.1']
    %11 = vsyncpa [#allocation5], 0
    %12 = vsyncpa [#allocation8], 0
    %13 = vsyncpa [#allocation6], 0
    %14 = vsyncpa [#allocation11], 0
    // Predicated region
    $region2: #{bganet_forward.1} parent=1 // pred_check
      _
    $region3: #{bganet_forward.1} parent=1 // pred_check_branch
      %16 = sbr.rel (0) target = $region5
    $region4: #{bganet_forward.1} parent=1 // pred_region
      _
    $region5: #{bganet_forward.1} parent=1 // pred_fallthru
      _
    // Predicated region
    $region6: #{bganet_forward.1} parent=1 // pred_check
      _
    $region7: #{bganet_forward.1} parent=1 // pred_check_branch
      %18 = sbr.rel (0) target = $region9
    $region8: #{bganet_forward.1} parent=1 // pred_region
      %s20 = ssub.s32 9216, 9216
      %21 = vsyncadd [#allocation5], %s20
      %s22 = sshll.u32 [#allocation4], 4
      %s23 = int_to_ptr.vmem [resolvable:$true] %s22
      %28 = dma.hbm_to_vmem [thread:$0]  %s1, 9216, %s23, [#allocation5], 256, 256, 16
    $region9: #{bganet_forward.1} parent=1 // pred_fallthru
      _
    // Predicated region
    $region10: #{bganet_forward.1} parent=1 // pred_check
      _
    $region11: #{bganet_forward.1} parent=1 // pred_check_branch
      %30 = sbr.rel (0) target = $region13
    $region12: #{bganet_forward.1} parent=1 // pred_region
      %s32 = ssub.s32 6208, 6208
      %33 = vsyncadd [#allocation8], %s32
      %s34 = sshll.u32 [#allocation7], 4
      %s35 = int_to_ptr.vmem [resolvable:$true] %s34
      %40 = dma.hbm_to_vmem [thread:$0]  %s2, 6208, %s35, [#allocation8], 64, 64, 4
    $region13: #{bganet_forward.1} parent=1 // pred_fallthru
      _
    // Predicated region
    $region14: #{bganet_forward.1} parent=1 // pred_check
      _
    $region15: #{bganet_forward.1} parent=1 // pred_check_branch
      %42 = sbr.rel (0) target = $region17
    $region16: #{bganet_forward.1} parent=1 // pred_region
      %43 = dma.done [#allocation5], 9216
    $region17: #{bganet_forward.1} parent=1 // pred_fallthru
      _
    // Predicated region
    $region18: #{bganet_forward.1} parent=1 // pred_check
      _
    $region19: #{bganet_forward.1} parent=1 // pred_check_branch
      %45 = sbr.rel (0) target = $region21
    $region20: #{bganet_forward.1} parent=1 // pred_region
      %46 = dma.done [#allocation8], 6208
    $region21: #{bganet_forward.1} parent=1 // pred_fallthru
      _
    // Predicated region
    $region22: #{bganet_forward.1} parent=1 // pred_check
      _
    $region23: #{bganet_forward.1} parent=1 // pred_check_branch
      %49 = sbr.rel target = $region25
    $region24: #{bganet_forward.1} parent=1 // pred_region
      %50 = sst [smem:[#allocation14]] [#allocation13]
      %51 = sst [smem:[#allocation15]] [#allocation12]
    $region25: #{bganet_forward.1} parent=1 // pred_fallthru
      _
    %53 = shalt.err (0)
    %s55 = sshll.u32 [#allocation2], 4
    %s56 = int_to_ptr.vmem [resolvable:$true] %s55
    %58 = dma.hbm_to_vmem [thread:$0]  %s3, 15168, %s56, [#allocation3]
    %v59 = vld [vmem:[%s0] sm:$0xff]
    %v60 = vld [vmem:[%s0 + $0x8] sm:$0xff]
    %v61 = vld [vmem:[%s0 + $0x10] sm:$0xff]
    %v62 = vld [vmem:[%s0 + $0x18] sm:$0xff]
    %v63 = vld [vmem:[#allocation7] sm:$0xf]
    %v64 = vld [vmem:[#allocation7 + $0x4] sm:$0xf]
    %v65 = vld [vmem:[#allocation7 + $0x8] sm:$0xf]
    %v66 = vld [vmem:[#allocation7 + $0xc] sm:$0xf]
    %v67 = vld [vmem:[#allocation7 + $0x10] sm:$0xf]
    %v68 = vld [vmem:[#allocation7 + $0x14] sm:$0xf]
    %v69 = vld [vmem:[#allocation7 + $0x18] sm:$0xf]
    %v70 = vld [vmem:[#allocation7 + $0x1c] sm:$0xf]
    %v71 = vld [vmem:[#allocation7 + $0x20] sm:$0xf]
    %v72 = vld [vmem:[#allocation7 + $0x24] sm:$0xf]
    %v73 = vld [vmem:[#allocation7 + $0x28] sm:$0xf]
    %v74 = vld [vmem:[#allocation7 + $0x2c] sm:$0xf]
    %v75 = vld [vmem:[#allocation7 + $0x30] sm:$0xf]
    %v76 = vld [vmem:[#allocation7 + $0x34] sm:$0xf]
    %v77 = vld [vmem:[#allocation7 + $0x38] sm:$0xf]
    %v78 = vld [vmem:[#allocation7 + $0x3c] sm:$0xf]
    %v79 = vld [vmem:[#allocation7 + $0x40] sm:$0xf]
    %v80 = vld [vmem:[#allocation7 + $0x44] sm:$0xf]
    %v81 = vld [vmem:[#allocation7 + $0x48] sm:$0xf]
    %v82 = vld [vmem:[#allocation7 + $0x4c] sm:$0xf]
    %v83 = vld [vmem:[#allocation7 + $0x50] sm:$0xf]
    %v84 = vld [vmem:[#allocation7 + $0x54] sm:$0xf]
    %v85 = vld [vmem:[#allocation7 + $0x58] sm:$0xf]
    %v86 = vld [vmem:[#allocation7 + $0x5c] sm:$0xf]
    %v87 = vld [vmem:[#allocation7 + $0x60] sm:$0xf]
    %v88 = vld [vmem:[#allocation7 + $0x64] sm:$0xf]
    %v89 = vld [vmem:[#allocation7 + $0x68] sm:$0xf]
    %v90 = vld [vmem:[#allocation7 + $0x6c] sm:$0xf]
    %v91 = vld [vmem:[#allocation7 + $0x70] sm:$0xf]
    %v92 = vld [vmem:[#allocation7 + $0x74] sm:$0xf]
    %v93 = vld [vmem:[#allocation7 + $0x78] sm:$0xf]
    %v94 = vld [vmem:[#allocation7 + $0x7c] sm:$0xf]
    %v95 = vld [vmem:[#allocation7 + $0x80] sm:$0xf]
    %v96 = vld [vmem:[#allocation7 + $0x84] sm:$0xf]
    %v97 = vld [vmem:[#allocation7 + $0x88] sm:$0xf]
    %v98 = vld [vmem:[#allocation7 + $0x8c] sm:$0xf]
    %v99 = vld [vmem:[#allocation7 + $0x90] sm:$0xf]
    %v100 = vld [vmem:[#allocation7 + $0x94] sm:$0xf]
    %v101 = vld [vmem:[#allocation7 + $0x98] sm:$0xf]
    %v102 = vld [vmem:[#allocation7 + $0x9c] sm:$0xf]
    %v103 = vld [vmem:[#allocation7 + $0xa0] sm:$0xf]
    %v104 = vld [vmem:[#allocation7 + $0xa4] sm:$0xf]
    %v105 = vld [vmem:[#allocation7 + $0xa8] sm:$0xf]
    %v106 = vld [vmem:[#allocation7 + $0xac] sm:$0xf]
    %v107 = vld [vmem:[#allocation7 + $0xb0] sm:$0xf]
    %v108 = vld [vmem:[#allocation7 + $0xb4] sm:$0xf]
    %v109 = vld [vmem:[#allocation7 + $0xb8] sm:$0xf]
    %v110 = vld [vmem:[#allocation7 + $0xbc] sm:$0xf]
    %v111 = vld [vmem:[#allocation7 + $0xc0] sm:$0xf]
    %v112 = vld [vmem:[#allocation7 + $0xc4] sm:$0xf]
    %v113 = vld [vmem:[#allocation7 + $0xc8] sm:$0xf]
    %v114 = vld [vmem:[#allocation7 + $0xcc] sm:$0xf]
    %v115 = vld [vmem:[#allocation7 + $0xd0] sm:$0xf]
    %v116 = vld [vmem:[#allocation7 + $0xd4] sm:$0xf]
    %v117 = vld [vmem:[#allocation7 + $0xd8] sm:$0xf]
    %v118 = vld [vmem:[#allocation7 + $0xdc] sm:$0xf]
    %v119 = vld [vmem:[#allocation7 + $0xe0] sm:$0xf]
    %v120 = vld [vmem:[#allocation7 + $0xe4] sm:$0xf]
    %v121 = vld [vmem:[#allocation7 + $0xe8] sm:$0xf]
    %v122 = vld [vmem:[#allocation7 + $0xec] sm:$0xf]
    %v123 = vld [vmem:[#allocation7 + $0xf0] sm:$0xf]
    %v124 = vld [vmem:[#allocation7 + $0xf4] sm:$0xf]
    %v125 = vld [vmem:[#allocation7 + $0xf8] sm:$0xf]
    %v126 = vld [vmem:[#allocation7 + $0xfc] sm:$0xf]
    %v127 = vld [vmem:[#allocation7 + $0x100] sm:$0xf]
    %v128 = vld [vmem:[#allocation7 + $0x104] sm:$0xf]
    %v129 = vld [vmem:[#allocation7 + $0x108] sm:$0xf]
    %v130 = vld [vmem:[#allocation7 + $0x10c] sm:$0xf]
    %v131 = vld [vmem:[#allocation7 + $0x110] sm:$0xf]
    %v132 = vld [vmem:[#allocation7 + $0x114] sm:$0xf]
    %v133 = vld [vmem:[#allocation7 + $0x118] sm:$0xf]
    %v134 = vld [vmem:[#allocation7 + $0x11c] sm:$0xf]
    %v135 = vld [vmem:[#allocation7 + $0x120] sm:$0xf]
    %v136 = vld [vmem:[#allocation7 + $0x124] sm:$0xf]
    %v137 = vld [vmem:[#allocation7 + $0x128] sm:$0xf]
    %v138 = vld [vmem:[#allocation7 + $0x12c] sm:$0xf]
    %v139 = vld [vmem:[#allocation7 + $0x130] sm:$0xf]
    %v140 = vld [vmem:[#allocation7 + $0x134] sm:$0xf]
    %v141 = vld [vmem:[#allocation7 + $0x138] sm:$0xf]
    %v142 = vld [vmem:[#allocation7 + $0x13c] sm:$0xf]
    %v143 = vld [vmem:[#allocation7 + $0x140] sm:$0xf]
    %v144 = vld [vmem:[#allocation7 + $0x144] sm:$0xf]
    %v145 = vld [vmem:[#allocation7 + $0x148] sm:$0xf]
    %v146 = vld [vmem:[#allocation7 + $0x14c] sm:$0xf]
    %v147 = vld [vmem:[#allocation7 + $0x150] sm:$0xf]
    %v148 = vld [vmem:[#allocation7 + $0x154] sm:$0xf]
    %v149 = vld [vmem:[#allocation7 + $0x158] sm:$0xf]
    %v150 = vld [vmem:[#allocation7 + $0x15c] sm:$0xf]
    %v151 = vld [vmem:[#allocation7 + $0x160] sm:$0xf]
    %v152 = vld [vmem:[#allocation7 + $0x164] sm:$0xf]
    %v153 = vld [vmem:[#allocation7 + $0x168] sm:$0xf]
    %v154 = vld [vmem:[#allocation7 + $0x16c] sm:$0xf]
    %v155 = vld [vmem:[#allocation7 + $0x170] sm:$0xf]
    %v156 = vld [vmem:[#allocation7 + $0x174] sm:$0xf]
    %v157 = vld [vmem:[#allocation7 + $0x178] sm:$0xf]
    %v158 = vld [vmem:[#allocation7 + $0x17c] sm:$0xf]
    %v159 = vld [vmem:[#allocation7 + $0x180] sm:$0xf]
    %v160 = vunpack.c.l.bf16 %v159
    %v161 = vld [vmem:[#allocation4] sm:$0xff]
    %v162 = vld [vmem:[#allocation4 + $0x8] sm:$0xff]
    %v163 = vld [vmem:[#allocation4 + $0x10] sm:$0xff]
    %v164 = vld [vmem:[#allocation4 + $0x18] sm:$0xff]
    %v165 = vld [vmem:[#allocation4 + $0x20] sm:$0xff]
    %v166 = vld [vmem:[#allocation4 + $0x28] sm:$0xff]
    %v167 = vld [vmem:[#allocation4 + $0x30] sm:$0xff]
    %v168 = vld [vmem:[#allocation4 + $0x38] sm:$0xff]
    %v169 = vld [vmem:[#allocation4 + $0x40] sm:$0xff]
    %v170 = vld [vmem:[#allocation4 + $0x48] sm:$0xff]
    %v171 = vld [vmem:[#allocation4 + $0x50] sm:$0xff]
    %v172 = vld [vmem:[#allocation4 + $0x58] sm:$0xff]
    %v173 = vld [vmem:[#allocation4 + $0x60] sm:$0xff]
    %v174 = vld [vmem:[#allocation4 + $0x68] sm:$0xff]
    %v175 = vld [vmem:[#allocation4 + $0x70] sm:$0xff]
    %v176 = vld [vmem:[#allocation4 + $0x78] sm:$0xff]
    %v177 = vld [vmem:[#allocation4 + $0x80] sm:$0xff]
    %v178 = vld [vmem:[#allocation4 + $0x88] sm:$0xff]
    %v179 = vld [vmem:[#allocation4 + $0x90] sm:$0xff]
    %v180 = vld [vmem:[#allocation4 + $0x98] sm:$0xff]
    %v181 = vld [vmem:[#allocation4 + $0xa0] sm:$0xff]
    %v182 = vld [vmem:[#allocation4 + $0xa8] sm:$0xff]
    %v183 = vld [vmem:[#allocation4 + $0xb0] sm:$0xff]
    %v184 = vld [vmem:[#allocation4 + $0xb8] sm:$0xff]
    %v185 = vld [vmem:[#allocation4 + $0xc0] sm:$0xff]
    %v186 = vld [vmem:[#allocation4 + $0xc8] sm:$0xff]
    %v187 = vld [vmem:[#allocation4 + $0xd0] sm:$0xff]
    %v188 = vld [vmem:[#allocation4 + $0xd8] sm:$0xff]
    %v189 = vld [vmem:[#allocation4 + $0xe0] sm:$0xff]
    %v190 = vld [vmem:[#allocation4 + $0xe8] sm:$0xff]
    %v191 = vld [vmem:[#allocation4 + $0xf0] sm:$0xff]
    %v192 = vld [vmem:[#allocation4 + $0xf8] sm:$0xff]
    %v193 = vld [vmem:[#allocation4 + $0x100] sm:$0x11]
    %v194 = vld [vmem:[#allocation4 + $0x108] sm:$0x11]
    %v195 = vunpack.c.l.bf16 %v193
    %v196 = vunpack.c.h.bf16 %v193
    %v197 = vunpack.c.l.bf16 %v194
    %v198 = vunpack.c.h.bf16 %v194
    %v199 = vld [vmem:[#allocation4 + $0x120] sm:$0xff]
    %v200 = vld [vmem:[#allocation4 + $0x128] sm:$0xf]
    %v201 = vld [vmem:[#allocation4 + $0x130] sm:$0xff]
    %v202 = vld [vmem:[#allocation4 + $0x138] sm:$0xf]
    %v203 = vld [vmem:[#allocation4 + $0x140] sm:$0xff]
    %v204 = vld [vmem:[#allocation4 + $0x148] sm:$0xf]
    %v205 = vld [vmem:[#allocation4 + $0x150] sm:$0xff]
    %v206 = vld [vmem:[#allocation4 + $0x158] sm:$0xf]
    %v207 = vld [vmem:[#allocation4 + $0x160] sm:$0xff]
    %v208 = vld [vmem:[#allocation4 + $0x168] sm:$0xf]
    %v209 = vld [vmem:[#allocation4 + $0x170] sm:$0xff]
    %v210 = vld [vmem:[#allocation4 + $0x178] sm:$0xf]
    %v211 = vld [vmem:[#allocation4 + $0x180] sm:$0xff]
    %v212 = vld [vmem:[#allocation4 + $0x188] sm:$0xf]
    %v213 = vld [vmem:[#allocation4 + $0x190] sm:$0xff]
    %v214 = vld [vmem:[#allocation4 + $0x198] sm:$0xf]
    %v215 = vld [vmem:[#allocation4 + $0x1a0] sm:$0xff]
    %v216 = vld [vmem:[#allocation4 + $0x1a8] sm:$0xf]
    %v217 = vld [vmem:[#allocation4 + $0x1b0] sm:$0xff]
    %v218 = vld [vmem:[#allocation4 + $0x1b8] sm:$0xf]
    %v219 = vld [vmem:[#allocation4 + $0x1c0] sm:$0xff]
    %v220 = vld [vmem:[#allocation4 + $0x1c8] sm:$0xf]
    %v221 = vld [vmem:[#allocation4 + $0x1d0] sm:$0xff]
    %v222 = vld [vmem:[#allocation4 + $0x1d8] sm:$0xf]
    %v223 = vld [vmem:[#allocation4 + $0x1e0] sm:$0xff]
    %v224 = vld [vmem:[#allocation4 + $0x1e8] sm:$0xf]
    %v225 = vld [vmem:[#allocation4 + $0x1f0] sm:$0xff]
    %v226 = vld [vmem:[#allocation4 + $0x1f8] sm:$0xf]
    %v227 = vld [vmem:[#allocation4 + $0x200] sm:$0xff]
    %v228 = vld [vmem:[#allocation4 + $0x208] sm:$0xf]
    %v229 = vld [vmem:[#allocation4 + $0x210] sm:$0xff]
    %v230 = vld [vmem:[#allocation4 + $0x218] sm:$0xf]
    %v231 = vld [vmem:[#allocation4 + $0x220] sm:$0x11]
    %v232 = vld [vmem:[#allocation4 + $0x228] sm:$0x1]
    %v233 = vunpack.c.l.bf16 %v231
    %v234 = vunpack.c.h.bf16 %v231
    %v235 = vunpack.c.l.bf16 %v232
    %v236 = vpack.c.bf16 %v60, %v59
    %v237 = vlaneseq
    %v238 = vshrl.u32 %v237, 7
    %v239 = vsub.s32 0, %v238
    %v240 = vrot.slane %v233, %v239
    %v241 = vlaneseq
    %v242 = vshrl.u32 %v241, 7
    %v243 = vsub.s32 0, %v242
    %v244 = vrot.slane %v234, %v243
    %v245 = vlaneseq
    %v246 = vshrl.u32 %v245, 7
    %v247 = vsub.s32 0, %v246
    %v248 = vrot.slane %v235, %v247
    %v281 = vunpack.c.l.b16 %v199
    %v282 = vunpack.c.h.b16 %v199
    %v283 = vunpack.c.l.b16 %v200
    %v284 = vunpack.c.l.b16 %v201
    %v285 = vunpack.c.h.b16 %v201
    %v286 = vunpack.c.l.b16 %v202
    %v287 = vunpack.c.l.b16 %v203
    %v288 = vunpack.c.h.b16 %v203
    %v289 = vunpack.c.l.b16 %v204
    %v290 = vunpack.c.l.b16 %v205
    %v291 = vunpack.c.h.b16 %v205
    %v292 = vunpack.c.l.b16 %v206
    %v293 = vunpack.c.l.b16 %v207
    %v294 = vunpack.c.h.b16 %v207
    %v295 = vunpack.c.l.b16 %v208
    %v296 = vunpack.c.l.b16 %v209
    %v297 = vunpack.c.h.b16 %v209
    %v298 = vunpack.c.l.b16 %v210
    %v299 = vunpack.c.l.b16 %v211
    %v300 = vunpack.c.h.b16 %v211
    %v301 = vunpack.c.l.b16 %v212
    %v302 = vunpack.c.l.b16 %v213
    %v303 = vunpack.c.h.b16 %v213
    %v304 = vunpack.c.l.b16 %v214
    %v305 = vunpack.c.l.b16 %v215
    %v306 = vunpack.c.h.b16 %v215
    %v307 = vunpack.c.l.b16 %v216
    %v308 = vunpack.c.l.b16 %v217
    %v309 = vunpack.c.h.b16 %v217
    %v310 = vunpack.c.l.b16 %v218
    %v311 = vunpack.c.l.b16 %v219
    %v312 = vunpack.c.h.b16 %v219
    %v313 = vunpack.c.l.b16 %v220
    %v314 = vunpack.c.l.b16 %v221
    %v315 = vunpack.c.h.b16 %v221
    %v316 = vunpack.c.l.b16 %v222
    %v317 = vunpack.c.l.b16 %v223
    %v318 = vunpack.c.h.b16 %v223
    %v319 = vunpack.c.l.b16 %v224
    %v320 = vunpack.c.l.b16 %v225
    %v321 = vunpack.c.h.b16 %v225
    %v322 = vunpack.c.l.b16 %v226
    %v323 = vunpack.c.l.b16 %v227
    %v324 = vunpack.c.h.b16 %v227
    %v325 = vunpack.c.l.b16 %v228
    %v326 = vunpack.c.l.b16 %v229
    %v327 = vunpack.c.h.b16 %v229
    %v328 = vunpack.c.l.b16 %v230
    %v329 = vpack.c.b16 %v284, %v281
    %v330 = vpack.c.b16 %v285, %v282
    %v331 = vpack.c.b16 %v286, %v283
    %v332 = vpack.c.b16 %v290, %v287
    %v333 = vpack.c.b16 %v291, %v288
    %v334 = vpack.c.b16 %v292, %v289
    %v335 = vpack.c.b16 %v296, %v293
    %v336 = vpack.c.b16 %v297, %v294
    %v337 = vpack.c.b16 %v298, %v295
    %v338 = vpack.c.b16 %v302, %v299
    %v339 = vpack.c.b16 %v303, %v300
    %v340 = vpack.c.b16 %v304, %v301
    %v341 = vpack.c.b16 %v308, %v305
    %v342 = vpack.c.b16 %v309, %v306
    %v343 = vpack.c.b16 %v310, %v307
    %v344 = vpack.c.b16 %v314, %v311
    %v345 = vpack.c.b16 %v315, %v312
    %v346 = vpack.c.b16 %v316, %v313
    %v347 = vpack.c.b16 %v320, %v317
    %v348 = vpack.c.b16 %v321, %v318
    %v349 = vpack.c.b16 %v322, %v319
    %v350 = vpack.c.b16 %v326, %v323
    %v351 = vpack.c.b16 %v327, %v324
    %v352 = vpack.c.b16 %v328, %v325
    %377 = vmatprep.subr.bf16.mxu0 %v351
    %378 = vmatpush1.bf16.msra.mxu0 %v350
    %379 = vmatprep.subr.bf16.mxu0 %v348
    %380 = vmatpush1.bf16.msra.mxu0 %v347
    %381 = vmatprep.subr.bf16.mxu0 %v345
    %382 = vmatpush1.bf16.msra.mxu0 %v344
    %383 = vmatprep.subr.bf16.mxu0 %v342
    %384 = vmatpush1.bf16.msra.mxu0 %v341
    %385 = vmatprep.subr.bf16.mxu0 %v339
    %386 = vmatpush1.bf16.msra.mxu0 %v338
    %387 = vmatprep.subr.bf16.mxu0 %v336
    %388 = vmatpush1.bf16.msra.mxu0 %v335
    %389 = vmatprep.subr.bf16.mxu0 %v333
    %390 = vmatpush1.bf16.msra.mxu0 %v332
    %391 = vmatprep.subr.bf16.mxu0 %v330
    %392 = vmatpush1.bf16.msra.mxu0 %v329
    %393 = vmatprep.subr.bf16.mxu0 0
    %394 = vmatpush2.bf16.msra.mxu0 0
    %395 = vmatprep.subr.bf16.mxu0 0
    %396 = vmatpush2.bf16.msra.mxu0 0
    %397 = vmatprep.subr.bf16.mxu0 0
    %398 = vmatpush2.bf16.msra.mxu0 0
    %399 = vmatprep.subr.bf16.mxu0 0
    %400 = vmatpush2.bf16.msra.mxu0 0
    %401 = vmatprep.subr.bf16.mxu0 0
    %402 = vmatpush2.bf16.msra.mxu0 0
    %403 = vmatprep.subr.bf16.mxu0 0
    %404 = vmatpush2.bf16.msra.mxu0 0
    %405 = vmatprep.subr.bf16.mxu0 0
    %406 = vmatpush2.bf16.msra.mxu0 0
    %407 = vmatprep.subr.bf16.mxu0 0
    %408 = vmatpush2.bf16.msra.mxu0 0
    %409 = vmatprep.mubr.bf16.mxu0 0
    %410 = vmatmul.mubr.bf16.gmra.mxu0 %v236
    %v411 = vpop.f32.mrf.mxu0
    %v412 = vadd.f32 %v240, %v411
    %v413 = vpop.f32.mrf.mxu0
    %v414 = vadd.f32 %v244, %v413
    %v415 = vpop.f32.mrf.mxu0
    %v416 = vadd.f32 %v240, %v415
    %v417 = vpop.f32.mrf.mxu0
    %v418 = vadd.f32 %v244, %v417
    %419 = vdwg.mxu0
    %420 = vmatprep.subr.bf16.mxu0 0
    %421 = vmatpush1.bf16.msra.mxu0 %v352
    %422 = vmatprep.subr.bf16.mxu0 0
    %423 = vmatpush1.bf16.msra.mxu0 %v349
    %424 = vmatprep.subr.bf16.mxu0 0
    %425 = vmatpush1.bf16.msra.mxu0 %v346
    %426 = vmatprep.subr.bf16.mxu0 0
    %427 = vmatpush1.bf16.msra.mxu0 %v343
    %428 = vmatprep.subr.bf16.mxu0 0
    %429 = vmatpush1.bf16.msra.mxu0 %v340
    %430 = vmatprep.subr.bf16.mxu0 0
    %431 = vmatpush1.bf16.msra.mxu0 %v337
    %432 = vmatprep.subr.bf16.mxu0 0
    %433 = vmatpush1.bf16.msra.mxu0 %v334
    %434 = vmatprep.subr.bf16.mxu0 0
    %435 = vmatpush1.bf16.msra.mxu0 %v331
    %436 = vmatprep.subr.bf16.mxu0 0
    %437 = vmatpush2.bf16.msra.mxu0 0
    %438 = vmatprep.subr.bf16.mxu0 0
    %439 = vmatpush2.bf16.msra.mxu0 0
    %440 = vmatprep.subr.bf16.mxu0 0
    %441 = vmatpush2.bf16.msra.mxu0 0
    %442 = vmatprep.subr.bf16.mxu0 0
    %443 = vmatpush2.bf16.msra.mxu0 0
    %444 = vmatprep.subr.bf16.mxu0 0
    %445 = vmatpush2.bf16.msra.mxu0 0
    %446 = vmatprep.subr.bf16.mxu0 0
    %447 = vmatpush2.bf16.msra.mxu0 0
    %448 = vmatprep.subr.bf16.mxu0 0
    %449 = vmatpush2.bf16.msra.mxu0 0
    %450 = vmatprep.subr.bf16.mxu0 0
    %451 = vmatpush2.bf16.msra.mxu0 0
    %452 = vmatprep.mubr.bf16.mxu0 0
    %453 = vmatmul.mubr.bf16.gmra.mxu0 %v236
    %v454 = vpop.f32.mrf.mxu0
    %v455 = vadd.f32 %v248, %v454
    %v456 = vpop.f32.mrf.mxu0
    %v457 = vpop.f32.mrf.mxu0
    %v458 = vadd.f32 %v248, %v457
    %v459 = vpop.f32.mrf.mxu0
    %460 = vdwg.mxu0
    %v461 = vpack.c.bf16 %v416, %v412
    %v462 = vpack.c.bf16 %v418, %v414
    %v463 = vpack.c.bf16 %v458, %v455
    %vm464 = vcmask 261120
    %v466 = vsel %vm464, %v461, 0
    %v469 = vsel %vm464, %v462, 0
    %471 = vmatprep.subr.bf16.mxu0 0
    %472 = vmatpush1.bf16.xpose.msra.mxu0 0
    %473 = vmatprep.subr.bf16.mxu0 0
    %474 = vmatpush1.bf16.xpose.msra.mxu0 0
    %475 = vmatprep.subr.bf16.mxu0 0
    %476 = vmatpush1.bf16.xpose.msra.mxu0 0
    %477 = vmatprep.subr.bf16.mxu0 0
    %478 = vmatpush1.bf16.xpose.msra.mxu0 0
    %479 = vmatprep.subr.bf16.mxu0 0
    %480 = vmatpush1.bf16.xpose.msra.mxu0 0
    %481 = vmatprep.subr.bf16.mxu0 0
    %482 = vmatpush1.bf16.xpose.msra.mxu0 0
    %483 = vmatprep.subr.bf16.mxu0 0
    %484 = vmatpush1.bf16.xpose.msra.mxu0 0
    %485 = vmatprep.subr.bf16.mxu0 0
    %486 = vmatpush1.bf16.xpose.msra.mxu0 %v469
    %487 = vmatprep.subr.bf16.mxu0 0
    %488 = vmatpush2.bf16.xpose.msra.mxu0 0
    %489 = vmatprep.subr.bf16.mxu0 0
    %490 = vmatpush2.bf16.xpose.msra.mxu0 0
    %491 = vmatprep.subr.bf16.mxu0 0
    %492 = vmatpush2.bf16.xpose.msra.mxu0 0
    %493 = vmatprep.subr.bf16.mxu0 0
    %494 = vmatpush2.bf16.xpose.msra.mxu0 0
    %495 = vmatprep.subr.bf16.mxu0 0
    %496 = vmatpush2.bf16.xpose.msra.mxu0 0
    %497 = vmatprep.subr.bf16.mxu0 0
    %498 = vmatpush2.bf16.xpose.msra.mxu0 0
    %499 = vmatprep.subr.bf16.mxu0 0
    %500 = vmatpush2.bf16.xpose.msra.mxu0 0
    %501 = vmatprep.subr.bf16.mxu0 0
    %502 = vmatpush2.bf16.xpose.msra.mxu0 0
    %503 = vmatprep.mubr.bf16.mxu0 0
    %504 = vmatmul.mubr.bf16.gmra.mxu0 %v466
    %v505 = vpop.f32.mrf.mxu0
    %v506 = vadd.f32 0.0, %v505
    %v507 = vpop.f32.mrf.mxu0
    %v508 = vpop.f32.mrf.mxu0
    %v509 = vadd.f32 0.0, %v508
    %v510 = vpop.f32.mrf.mxu0
    %511 = vdwg.mxu0
    %v512 = vmul.f32 %v506, 0.17677669
    %v513 = vmul.f32 %v509, 0.17677669
    %v514 = vadd.f32 %v512, %v61
    %v515 = vadd.f32 %v513, %v62
    %vm516 = vcmask 130048
    %v517 = vsel %vm516, %v514, -inf
    %518 = vmax.xlane.f32.xlu0 %v517
    %v519 = vpop.xlane.xlu0 %518
    %v520 = vsel %vm516, %v515, -inf
    %521 = vmax.xlane.f32.xlu0 %v520
    %v522 = vpop.xlane.xlu0 %521
    %v523 = vsub.f32 %v514, %v519
    %v524 = vsub.f32 %v515, %v522
    %v525 = vmul.f32 %v523, 1.442695
    %v526 = vpow.pop %v525
    %v527 = vmul.f32 %v524, 1.442695
    %v528 = vpow.pop %v527
    %v529 = vsel %vm516, %v526, 0.0
    %530 = vadd.xlane.f32.xlu0 %v529
    %v531 = vpop.xlane.xlu0 %530
    %v532 = vsel %vm516, %v528, 0.0
    %533 = vadd.xlane.f32.xlu0 %v532
    %v534 = vpop.xlane.xlu0 %533
    %v535 = vrcp.pop %v531
    %v536 = vrcp.pop %v534
    %v537 = vmul.f32 %v526, %v535
    %v538 = vmul.f32 %v528, %v536
    %v539 = vpack.c.bf16 %v538, %v537
    %v541 = vsel %vm516, %v539, 0
    %543 = vmatprep.subr.bf16.mxu0 0
    %544 = vmatpush1.bf16.msra.mxu0 0
    %545 = vmatprep.subr.bf16.mxu0 0
    %546 = vmatpush1.bf16.msra.mxu0 0
    %547 = vmatprep.subr.bf16.mxu0 0
    %548 = vmatpush1.bf16.msra.mxu0 0
    %549 = vmatprep.subr.bf16.mxu0 0
    %550 = vmatpush1.bf16.msra.mxu0 0
    %551 = vmatprep.subr.bf16.mxu0 0
    %552 = vmatpush1.bf16.msra.mxu0 0
    %553 = vmatprep.subr.bf16.mxu0 0
    %554 = vmatpush1.bf16.msra.mxu0 0
    %555 = vmatprep.subr.bf16.mxu0 0
    %556 = vmatpush1.bf16.msra.mxu0 0
    %557 = vmatprep.subr.bf16.mxu0 0
    %558 = vmatpush1.bf16.msra.mxu0 %v463
    %559 = vmatprep.subr.bf16.mxu0 0
    %560 = vmatpush2.bf16.msra.mxu0 0
    %561 = vmatprep.subr.bf16.mxu0 0
    %562 = vmatpush2.bf16.msra.mxu0 0
    %563 = vmatprep.subr.bf16.mxu0 0
    %564 = vmatpush2.bf16.msra.mxu0 0
    %565 = vmatprep.subr.bf16.mxu0 0
    %566 = vmatpush2.bf16.msra.mxu0 0
    %567 = vmatprep.subr.bf16.mxu0 0
    %568 = vmatpush2.bf16.msra.mxu0 0
    %569 = vmatprep.subr.bf16.mxu0 0
    %570 = vmatpush2.bf16.msra.mxu0 0
    %571 = vmatprep.subr.bf16.mxu0 0
    %572 = vmatpush2.bf16.msra.mxu0 0
    %573 = vmatprep.subr.bf16.mxu0 0
    %574 = vmatpush2.bf16.msra.mxu0 0
    %575 = vmatprep.mubr.bf16.mxu0 0
    %576 = vmatmul.mubr.bf16.gmra.mxu0 %v541
    %v577 = vpop.f32.mrf.mxu0
    %v578 = vadd.f32 0.0, %v577
    %v579 = vpop.f32.mrf.mxu0
    %v580 = vpop.f32.mrf.mxu0
    %v581 = vadd.f32 0.0, %v580
    %v582 = vpop.f32.mrf.mxu0
    %583 = vdwg.mxu0
    %585 = vrot.lane.b32.xlu0 %v461, 96
    %v586 = vpop.permute.xlu0 %585
    %588 = vrot.lane.b32.xlu0 %v462, 96
    %v589 = vpop.permute.xlu0 %588
    %v591 = vsel %vm464, %v586, 0
    %v594 = vsel %vm464, %v589, 0
    %596 = vmatprep.subr.bf16.mxu0 0
    %597 = vmatpush1.bf16.xpose.msra.mxu0 0
    %598 = vmatprep.subr.bf16.mxu0 0
    %599 = vmatpush1.bf16.xpose.msra.mxu0 0
    %600 = vmatprep.subr.bf16.mxu0 0
    %601 = vmatpush1.bf16.xpose.msra.mxu0 0
    %602 = vmatprep.subr.bf16.mxu0 0
    %603 = vmatpush1.bf16.xpose.msra.mxu0 0
    %604 = vmatprep.subr.bf16.mxu0 0
    %605 = vmatpush1.bf16.xpose.msra.mxu0 0
    %606 = vmatprep.subr.bf16.mxu0 0
    %607 = vmatpush1.bf16.xpose.msra.mxu0 0
    %608 = vmatprep.subr.bf16.mxu0 0
    %609 = vmatpush1.bf16.xpose.msra.mxu0 0
    %610 = vmatprep.subr.bf16.mxu0 0
    %611 = vmatpush1.bf16.xpose.msra.mxu0 %v594
    %612 = vmatprep.subr.bf16.mxu0 0
    %613 = vmatpush2.bf16.xpose.msra.mxu0 0
    %614 = vmatprep.subr.bf16.mxu0 0
    %615 = vmatpush2.bf16.xpose.msra.mxu0 0
    %616 = vmatprep.subr.bf16.mxu0 0
    %617 = vmatpush2.bf16.xpose.msra.mxu0 0
    %618 = vmatprep.subr.bf16.mxu0 0
    %619 = vmatpush2.bf16.xpose.msra.mxu0 0
    %620 = vmatprep.subr.bf16.mxu0 0
    %621 = vmatpush2.bf16.xpose.msra.mxu0 0
    %622 = vmatprep.subr.bf16.mxu0 0
    %623 = vmatpush2.bf16.xpose.msra.mxu0 0
    %624 = vmatprep.subr.bf16.mxu0 0
    %625 = vmatpush2.bf16.xpose.msra.mxu0 0
    %626 = vmatprep.subr.bf16.mxu0 0
    %627 = vmatpush2.bf16.xpose.msra.mxu0 0
    %628 = vmatprep.mubr.bf16.mxu0 0
    %629 = vmatmul.mubr.bf16.gmra.mxu0 %v591
    %v630 = vpop.f32.mrf.mxu0
    %v631 = vadd.f32 0.0, %v630
    %v632 = vpop.f32.mrf.mxu0
    %v633 = vpop.f32.mrf.mxu0
    %v634 = vadd.f32 0.0, %v633
    %v635 = vpop.f32.mrf.mxu0
    %636 = vdwg.mxu0
    %v637 = vmul.f32 %v631, 0.17677669
    %v638 = vmul.f32 %v634, 0.17677669
    %v639 = vadd.f32 %v637, %v61
    %v640 = vadd.f32 %v638, %v62
    %v641 = vsel %vm516, %v639, -inf
    %642 = vmax.xlane.f32.xlu0 %v641
    %v643 = vpop.xlane.xlu0 %642
    %v644 = vsel %vm516, %v640, -inf
    %645 = vmax.xlane.f32.xlu0 %v644
    %v646 = vpop.xlane.xlu0 %645
    %v647 = vsub.f32 %v639, %v643
    %v648 = vsub.f32 %v640, %v646
    %v649 = vmul.f32 %v647, 1.442695
    %v650 = vpow.pop %v649
    %v651 = vmul.f32 %v648, 1.442695
    %v652 = vpow.pop %v651
    %v653 = vsel %vm516, %v650, 0.0
    %654 = vadd.xlane.f32.xlu0 %v653
    %v655 = vpop.xlane.xlu0 %654
    %v656 = vsel %vm516, %v652, 0.0
    %657 = vadd.xlane.f32.xlu0 %v656
    %v658 = vpop.xlane.xlu0 %657
    %v659 = vrcp.pop %v655
    %v660 = vrcp.pop %v658
    %v661 = vmul.f32 %v650, %v659
    %v662 = vmul.f32 %v652, %v660
    %v663 = vpack.c.bf16 %v662, %v661
    %665 = vrot.lane.b32.xlu0 %v463, 96
    %v666 = vpop.permute.xlu0 %665
    %v669 = vsel %vm516, %v663, 0
    %671 = vmatprep.subr.bf16.mxu0 0
    %672 = vmatpush1.bf16.msra.mxu0 0
    %673 = vmatprep.subr.bf16.mxu0 0
    %674 = vmatpush1.bf16.msra.mxu0 0
    %675 = vmatprep.subr.bf16.mxu0 0
    %676 = vmatpush1.bf16.msra.mxu0 0
    %677 = vmatprep.subr.bf16.mxu0 0
    %678 = vmatpush1.bf16.msra.mxu0 0
    %679 = vmatprep.subr.bf16.mxu0 0
    %680 = vmatpush1.bf16.msra.mxu0 0
    %681 = vmatprep.subr.bf16.mxu0 0
    %682 = vmatpush1.bf16.msra.mxu0 0
    %683 = vmatprep.subr.bf16.mxu0 0
    %684 = vmatpush1.bf16.msra.mxu0 0
    %685 = vmatprep.subr.bf16.mxu0 0
    %686 = vmatpush1.bf16.msra.mxu0 %v666
    %687 = vmatprep.subr.bf16.mxu0 0
    %688 = vmatpush2.bf16.msra.mxu0 0
    %689 = vmatprep.subr.bf16.mxu0 0
    %690 = vmatpush2.bf16.msra.mxu0 0
    %691 = vmatprep.subr.bf16.mxu0 0
    %692 = vmatpush2.bf16.msra.mxu0 0
    %693 = vmatprep.subr.bf16.mxu0 0
    %694 = vmatpush2.bf16.msra.mxu0 0
    %695 = vmatprep.subr.bf16.mxu0 0
    %696 = vmatpush2.bf16.msra.mxu0 0
    %697 = vmatprep.subr.bf16.mxu0 0
    %698 = vmatpush2.bf16.msra.mxu0 0
    %699 = vmatprep.subr.bf16.mxu0 0
    %700 = vmatpush2.bf16.msra.mxu0 0
    %701 = vmatprep.subr.bf16.mxu0 0
    %702 = vmatpush2.bf16.msra.mxu0 0
    %703 = vmatprep.mubr.bf16.mxu0 0
    %704 = vmatmul.mubr.bf16.gmra.mxu0 %v669
    %v705 = vpop.f32.mrf.mxu0
    %v706 = vadd.f32 0.0, %v705
    %v707 = vpop.f32.mrf.mxu0
    %v708 = vpop.f32.mrf.mxu0
    %v709 = vadd.f32 0.0, %v708
    %v710 = vpop.f32.mrf.mxu0
    %711 = vdwg.mxu0
    %712 = vrot.lane.b32.xlu0 %v461, 64
    %v713 = vpop.permute.xlu0 %712
    %714 = vrot.lane.b32.xlu0 %v462, 64
    %v715 = vpop.permute.xlu0 %714
    %v717 = vsel %vm464, %v713, 0
    %v720 = vsel %vm464, %v715, 0
    %722 = vmatprep.subr.bf16.mxu0 0
    %723 = vmatpush1.bf16.xpose.msra.mxu0 0
    %724 = vmatprep.subr.bf16.mxu0 0
    %725 = vmatpush1.bf16.xpose.msra.mxu0 0
    %726 = vmatprep.subr.bf16.mxu0 0
    %727 = vmatpush1.bf16.xpose.msra.mxu0 0
    %728 = vmatprep.subr.bf16.mxu0 0
    %729 = vmatpush1.bf16.xpose.msra.mxu0 0
    %730 = vmatprep.subr.bf16.mxu0 0
    %731 = vmatpush1.bf16.xpose.msra.mxu0 0
    %732 = vmatprep.subr.bf16.mxu0 0
    %733 = vmatpush1.bf16.xpose.msra.mxu0 0
    %734 = vmatprep.subr.bf16.mxu0 0
    %735 = vmatpush1.bf16.xpose.msra.mxu0 0
    %736 = vmatprep.subr.bf16.mxu0 0
    %737 = vmatpush1.bf16.xpose.msra.mxu0 %v720
    %738 = vmatprep.subr.bf16.mxu0 0
    %739 = vmatpush2.bf16.xpose.msra.mxu0 0
    %740 = vmatprep.subr.bf16.mxu0 0
    %741 = vmatpush2.bf16.xpose.msra.mxu0 0
    %742 = vmatprep.subr.bf16.mxu0 0
    %743 = vmatpush2.bf16.xpose.msra.mxu0 0
    %744 = vmatprep.subr.bf16.mxu0 0
    %745 = vmatpush2.bf16.xpose.msra.mxu0 0
    %746 = vmatprep.subr.bf16.mxu0 0
    %747 = vmatpush2.bf16.xpose.msra.mxu0 0
    %748 = vmatprep.subr.bf16.mxu0 0
    %749 = vmatpush2.bf16.xpose.msra.mxu0 0
    %750 = vmatprep.subr.bf16.mxu0 0
    %751 = vmatpush2.bf16.xpose.msra.mxu0 0
    %752 = vmatprep.subr.bf16.mxu0 0
    %753 = vmatpush2.bf16.xpose.msra.mxu0 0
    %754 = vmatprep.mubr.bf16.mxu0 0
    %755 = vmatmul.mubr.bf16.gmra.mxu0 %v717
    %v756 = vpop.f32.mrf.mxu0
    %v757 = vadd.f32 0.0, %v756
    %v758 = vpop.f32.mrf.mxu0
    %v759 = vpop.f32.mrf.mxu0
    %v760 = vadd.f32 0.0, %v759
    %v761 = vpop.f32.mrf.mxu0
    %762 = vdwg.mxu0
    %v763 = vmul.f32 %v757, 0.17677669
    %v764 = vmul.f32 %v760, 0.17677669
    %v765 = vadd.f32 %v763, %v61
    %v766 = vadd.f32 %v764, %v62
    %v767 = vsel %vm516, %v765, -inf
    %768 = vmax.xlane.f32.xlu0 %v767
    %v769 = vpop.xlane.xlu0 %768
    %v770 = vsel %vm516, %v766, -inf
    %771 = vmax.xlane.f32.xlu0 %v770
    %v772 = vpop.xlane.xlu0 %771
    %v773 = vsub.f32 %v765, %v769
    %v774 = vsub.f32 %v766, %v772
    %v775 = vmul.f32 %v773, 1.442695
    %v776 = vpow.pop %v775
    %v777 = vmul.f32 %v774, 1.442695
    %v778 = vpow.pop %v777
    %v779 = vsel %vm516, %v776, 0.0
    %780 = vadd.xlane.f32.xlu0 %v779
    %v781 = vpop.xlane.xlu0 %780
    %v782 = vsel %vm516, %v778, 0.0
    %783 = vadd.xlane.f32.xlu0 %v782
    %v784 = vpop.xlane.xlu0 %783
    %v785 = vrcp.pop %v781
    %v786 = vrcp.pop %v784
    %v787 = vmul.f32 %v776, %v785
    %v788 = vmul.f32 %v778, %v786
    %v789 = vpack.c.bf16 %v788, %v787
    %790 = vrot.lane.b32.xlu0 %v463, 64
    %v791 = vpop.permute.xlu0 %790
    %v794 = vsel %vm516, %v789, 0
    %796 = vmatprep.subr.bf16.mxu0 0
    %797 = vmatpush1.bf16.msra.mxu0 0
    %798 = vmatprep.subr.bf16.mxu0 0
    %799 = vmatpush1.bf16.msra.mxu0 0
    %800 = vmatprep.subr.bf16.mxu0 0
    %801 = vmatpush1.bf16.msra.mxu0 0
    %802 = vmatprep.subr.bf16.mxu0 0
    %803 = vmatpush1.bf16.msra.mxu0 0
    %804 = vmatprep.subr.bf16.mxu0 0
    %805 = vmatpush1.bf16.msra.mxu0 0
    %806 = vmatprep.subr.bf16.mxu0 0
    %807 = vmatpush1.bf16.msra.mxu0 0
    %808 = vmatprep.subr.bf16.mxu0 0
    %809 = vmatpush1.bf16.msra.mxu0 0
    %810 = vmatprep.subr.bf16.mxu0 0
    %811 = vmatpush1.bf16.msra.mxu0 %v791
    %812 = vmatprep.subr.bf16.mxu0 0
    %813 = vmatpush2.bf16.msra.mxu0 0
    %814 = vmatprep.subr.bf16.mxu0 0
    %815 = vmatpush2.bf16.msra.mxu0 0
    %816 = vmatprep.subr.bf16.mxu0 0
    %817 = vmatpush2.bf16.msra.mxu0 0
    %818 = vmatprep.subr.bf16.mxu0 0
    %819 = vmatpush2.bf16.msra.mxu0 0
    %820 = vmatprep.subr.bf16.mxu0 0
    %821 = vmatpush2.bf16.msra.mxu0 0
    %822 = vmatprep.subr.bf16.mxu0 0
    %823 = vmatpush2.bf16.msra.mxu0 0
    %824 = vmatprep.subr.bf16.mxu0 0
    %825 = vmatpush2.bf16.msra.mxu0 0
    %826 = vmatprep.subr.bf16.mxu0 0
    %827 = vmatpush2.bf16.msra.mxu0 0
    %828 = vmatprep.mubr.bf16.mxu0 0
    %829 = vmatmul.mubr.bf16.gmra.mxu0 %v794
    %v830 = vpop.f32.mrf.mxu0
    %v831 = vadd.f32 0.0, %v830
    %v832 = vpop.f32.mrf.mxu0
    %v833 = vpop.f32.mrf.mxu0
    %v834 = vadd.f32 0.0, %v833
    %v835 = vpop.f32.mrf.mxu0
    %836 = vdwg.mxu0
    %837 = vrot.lane.b32.xlu0 %v461, 32
    %v838 = vpop.permute.xlu0 %837
    %839 = vrot.lane.b32.xlu0 %v462, 32
    %v840 = vpop.permute.xlu0 %839
    %v842 = vsel %vm464, %v838, 0
    %v845 = vsel %vm464, %v840, 0
    %847 = vmatprep.subr.bf16.mxu0 0
    %848 = vmatpush1.bf16.xpose.msra.mxu0 0
    %849 = vmatprep.subr.bf16.mxu0 0
    %850 = vmatpush1.bf16.xpose.msra.mxu0 0
    %851 = vmatprep.subr.bf16.mxu0 0
    %852 = vmatpush1.bf16.xpose.msra.mxu0 0
    %853 = vmatprep.subr.bf16.mxu0 0
    %854 = vmatpush1.bf16.xpose.msra.mxu0 0
    %855 = vmatprep.subr.bf16.mxu0 0
    %856 = vmatpush1.bf16.xpose.msra.mxu0 0
    %857 = vmatprep.subr.bf16.mxu0 0
    %858 = vmatpush1.bf16.xpose.msra.mxu0 0
    %859 = vmatprep.subr.bf16.mxu0 0
    %860 = vmatpush1.bf16.xpose.msra.mxu0 0
    %861 = vmatprep.subr.bf16.mxu0 0
    %862 = vmatpush1.bf16.xpose.msra.mxu0 %v845
    %863 = vmatprep.subr.bf16.mxu0 0
    %864 = vmatpush2.bf16.xpose.msra.mxu0 0
    %865 = vmatprep.subr.bf16.mxu0 0
    %866 = vmatpush2.bf16.xpose.msra.mxu0 0
    %867 = vmatprep.subr.bf16.mxu0 0
    %868 = vmatpush2.bf16.xpose.msra.mxu0 0
    %869 = vmatprep.subr.bf16.mxu0 0
    %870 = vmatpush2.bf16.xpose.msra.mxu0 0
    %871 = vmatprep.subr.bf16.mxu0 0
    %872 = vmatpush2.bf16.xpose.msra.mxu0 0
    %873 = vmatprep.subr.bf16.mxu0 0
    %874 = vmatpush2.bf16.xpose.msra.mxu0 0
    %875 = vmatprep.subr.bf16.mxu0 0
    %876 = vmatpush2.bf16.xpose.msra.mxu0 0
    %877 = vmatprep.subr.bf16.mxu0 0
    %878 = vmatpush2.bf16.xpose.msra.mxu0 0
    %879 = vmatprep.mubr.bf16.mxu0 0
    %880 = vmatmul.mubr.bf16.gmra.mxu0 %v842
    %v881 = vpop.f32.mrf.mxu0
    %v882 = vadd.f32 0.0, %v881
    %v883 = vpop.f32.mrf.mxu0
    %v884 = vpop.f32.mrf.mxu0
    %v885 = vadd.f32 0.0, %v884
    %v886 = vpop.f32.mrf.mxu0
    %887 = vdwg.mxu0
    %v888 = vmul.f32 %v882, 0.17677669
    %v889 = vmul.f32 %v885, 0.17677669
    %v890 = vadd.f32 %v888, %v61
    %v891 = vadd.f32 %v889, %v62
    %v892 = vsel %vm516, %v890, -inf
    %893 = vmax.xlane.f32.xlu0 %v892
    %v894 = vpop.xlane.xlu0 %893
    %v895 = vsel %vm516, %v891, -inf
    %896 = vmax.xlane.f32.xlu0 %v895
    %v897 = vpop.xlane.xlu0 %896
    %v898 = vsub.f32 %v890, %v894
    %v899 = vsub.f32 %v891, %v897
    %v900 = vmul.f32 %v898, 1.442695
    %v901 = vpow.pop %v900
    %v902 = vmul.f32 %v899, 1.442695
    %v903 = vpow.pop %v902
    %v904 = vsel %vm516, %v901, 0.0
    %905 = vadd.xlane.f32.xlu0 %v904
    %v906 = vpop.xlane.xlu0 %905
    %v907 = vsel %vm516, %v903, 0.0
    %908 = vadd.xlane.f32.xlu0 %v907
    %v909 = vpop.xlane.xlu0 %908
    %v910 = vrcp.pop %v906
    %v911 = vrcp.pop %v909
    %v912 = vmul.f32 %v901, %v910
    %v913 = vmul.f32 %v903, %v911
    %v914 = vpack.c.bf16 %v913, %v912
    %915 = vrot.lane.b32.xlu0 %v463, 32
    %v916 = vpop.permute.xlu0 %915
    %v919 = vsel %vm516, %v914, 0
    %921 = vmatprep.subr.bf16.mxu0 0
    %922 = vmatpush1.bf16.msra.mxu0 0
    %923 = vmatprep.subr.bf16.mxu0 0
    %924 = vmatpush1.bf16.msra.mxu0 0
    %925 = vmatprep.subr.bf16.mxu0 0
    %926 = vmatpush1.bf16.msra.mxu0 0
    %927 = vmatprep.subr.bf16.mxu0 0
    %928 = vmatpush1.bf16.msra.mxu0 0
    %929 = vmatprep.subr.bf16.mxu0 0
    %930 = vmatpush1.bf16.msra.mxu0 0
    %931 = vmatprep.subr.bf16.mxu0 0
    %932 = vmatpush1.bf16.msra.mxu0 0
    %933 = vmatprep.subr.bf16.mxu0 0
    %934 = vmatpush1.bf16.msra.mxu0 0
    %935 = vmatprep.subr.bf16.mxu0 0
    %936 = vmatpush1.bf16.msra.mxu0 %v916
    %937 = vmatprep.subr.bf16.mxu0 0
    %938 = vmatpush2.bf16.msra.mxu0 0
    %939 = vmatprep.subr.bf16.mxu0 0
    %940 = vmatpush2.bf16.msra.mxu0 0
    %941 = vmatprep.subr.bf16.mxu0 0
    %942 = vmatpush2.bf16.msra.mxu0 0
    %943 = vmatprep.subr.bf16.mxu0 0
    %944 = vmatpush2.bf16.msra.mxu0 0
    %945 = vmatprep.subr.bf16.mxu0 0
    %946 = vmatpush2.bf16.msra.mxu0 0
    %947 = vmatprep.subr.bf16.mxu0 0
    %948 = vmatpush2.bf16.msra.mxu0 0
    %949 = vmatprep.subr.bf16.mxu0 0
    %950 = vmatpush2.bf16.msra.mxu0 0
    %951 = vmatprep.subr.bf16.mxu0 0
    %952 = vmatpush2.bf16.msra.mxu0 0
    %953 = vmatprep.mubr.bf16.mxu0 0
    %954 = vmatmul.mubr.bf16.gmra.mxu0 %v919
    %v955 = vpop.f32.mrf.mxu0
    %v956 = vadd.f32 0.0, %v955
    %v957 = vpop.f32.mrf.mxu0
    %v958 = vpop.f32.mrf.mxu0
    %v959 = vadd.f32 0.0, %v958
    %v960 = vpop.f32.mrf.mxu0
    %961 = vdwg.mxu0
    %964 = vrot.lane.b32.xlu0 %v706, 32
    %v965 = vpop.permute.xlu0 %964
    %966 = vrot.lane.b32.xlu0 %v709, 32
    %v967 = vpop.permute.xlu0 %966
    %972 = vrot.lane.b32.xlu0 %v831, 64
    %v973 = vpop.permute.xlu0 %972
    %974 = vrot.lane.b32.xlu0 %v834, 64
    %v975 = vpop.permute.xlu0 %974
    %980 = vrot.lane.b32.xlu0 %v956, 96
    %v981 = vpop.permute.xlu0 %980
    %982 = vrot.lane.b32.xlu0 %v959, 96
    %v983 = vpop.permute.xlu0 %982
    %v986 = vsel %vm464, %v578, %v965
    %v987 = vsel %vm464, %v581, %v967
    %vm988 = vcmask 523264
    %v989 = vsel %vm988, %v986, %v973
    %v990 = vsel %vm988, %v987, %v975
    %vm991 = vcmask 785408
    %v992 = vsel %vm991, %v989, %v981
    %v993 = vsel %vm991, %v990, %v983
    %v994 = vpack.c.bf16 %v993, %v992
    %v995 = vlaneseq
    %v996 = vshrl.u32 %v995, 7
    %v997 = vsub.s32 0, %v996
    %v998 = vrot.slane %v160, %v997
    %v1015 = vunpack.c.l.b16 %v63
    %v1016 = vunpack.c.l.b16 %v64
    %v1017 = vunpack.c.l.b16 %v65
    %v1018 = vunpack.c.l.b16 %v66
    %v1019 = vunpack.c.l.b16 %v67
    %v1020 = vunpack.c.l.b16 %v68
    %v1021 = vunpack.c.l.b16 %v69
    %v1022 = vunpack.c.l.b16 %v70
    %v1023 = vunpack.c.l.b16 %v71
    %v1024 = vunpack.c.l.b16 %v72
    %v1025 = vunpack.c.l.b16 %v73
    %v1026 = vunpack.c.l.b16 %v74
    %v1027 = vunpack.c.l.b16 %v75
    %v1028 = vunpack.c.l.b16 %v76
    %v1029 = vunpack.c.l.b16 %v77
    %v1030 = vunpack.c.l.b16 %v78
    %v1031 = vpack.c.b16 %v1016, %v1015
    %v1032 = vpack.c.b16 %v1018, %v1017
    %v1033 = vpack.c.b16 %v1020, %v1019
    %v1034 = vpack.c.b16 %v1022, %v1021
    %v1035 = vpack.c.b16 %v1024, %v1023
    %v1036 = vpack.c.b16 %v1026, %v1025
    %v1037 = vpack.c.b16 %v1028, %v1027
    %v1038 = vpack.c.b16 %v1030, %v1029
    %1047 = vmatprep.subr.bf16.mxu0 0
    %1048 = vmatpush1.bf16.msra.mxu0 %v1038
    %1049 = vmatprep.subr.bf16.mxu0 0
    %1050 = vmatpush1.bf16.msra.mxu0 %v1037
    %1051 = vmatprep.subr.bf16.mxu0 0
    %1052 = vmatpush1.bf16.msra.mxu0 %v1036
    %1053 = vmatprep.subr.bf16.mxu0 0
    %1054 = vmatpush1.bf16.msra.mxu0 %v1035
    %1055 = vmatprep.subr.bf16.mxu0 0
    %1056 = vmatpush1.bf16.msra.mxu0 %v1034
    %1057 = vmatprep.subr.bf16.mxu0 0
    %1058 = vmatpush1.bf16.msra.mxu0 %v1033
    %1059 = vmatprep.subr.bf16.mxu0 0
    %1060 = vmatpush1.bf16.msra.mxu0 %v1032
    %1061 = vmatprep.subr.bf16.mxu0 0
    %1062 = vmatpush1.bf16.msra.mxu0 %v1031
    %1063 = vmatprep.subr.bf16.mxu0 0
    %1064 = vmatpush2.bf16.msra.mxu0 0
    %1065 = vmatprep.subr.bf16.mxu0 0
    %1066 = vmatpush2.bf16.msra.mxu0 0
    %1067 = vmatprep.subr.bf16.mxu0 0
    %1068 = vmatpush2.bf16.msra.mxu0 0
    %1069 = vmatprep.subr.bf16.mxu0 0
    %1070 = vmatpush2.bf16.msra.mxu0 0
    %1071 = vmatprep.subr.bf16.mxu0 0
    %1072 = vmatpush2.bf16.msra.mxu0 0
    %1073 = vmatprep.subr.bf16.mxu0 0
    %1074 = vmatpush2.bf16.msra.mxu0 0
    %1075 = vmatprep.subr.bf16.mxu0 0
    %1076 = vmatpush2.bf16.msra.mxu0 0
    %1077 = vmatprep.subr.bf16.mxu0 0
    %1078 = vmatpush2.bf16.msra.mxu0 0
    %1079 = vmatprep.mubr.bf16.mxu0 0
    %1080 = vmatmul.mubr.bf16.gmra.mxu0 %v994
    %v1081 = vpop.f32.mrf.mxu0
    %v1082 = vadd.f32 %v998, %v1081
    %v1083 = vpop.f32.mrf.mxu0
    %v1084 = vpop.f32.mrf.mxu0
    %v1085 = vadd.f32 %v998, %v1084
    %v1086 = vpop.f32.mrf.mxu0
    %1087 = vdwg.mxu0
    %v1088 = vadd.f32 %v59, %v1082
    %v1089 = vadd.f32 %v60, %v1085
    %1090 = vadd.xlane.f32.xlu0 %v1088
    %v1091 = vpop.xlane.xlu0 %1090
    %1092 = vadd.xlane.f32.xlu0 %v1089
    %v1093 = vpop.xlane.xlu0 %1092
    %v1094 = vrcp.pop 128.0
    %v1095 = vmul.f32 %v1091, %v1094
    %v1096 = vmul.f32 %v1093, %v1094
    %v1097 = vsub.f32 %v1088, %v1095
    %v1098 = vsub.f32 %v1089, %v1096
    %v1099 = vmul.f32 %v1097, %v1097
    %v1100 = vmul.f32 %v1098, %v1098
    %1101 = vadd.xlane.f32.xlu0 %v1099
    %v1102 = vpop.xlane.xlu0 %1101
    %1103 = vadd.xlane.f32.xlu0 %v1100
    %v1104 = vpop.xlane.xlu0 %1103
    %v1105 = vmul.f32 %v1102, %v1094
    %v1106 = vmul.f32 %v1104, %v1094
    %v1107 = vadd.f32 %v1105, 1e-12
    %v1108 = vadd.f32 %v1106, 1e-12
    %v1109 = vrsqrt.pop %v1107
    %v1110 = vrsqrt.pop %v1108
    %v1111 = vmul.f32 %v1097, %v1109
    %v1112 = vmul.f32 %v1098, %v1110
    %v1113 = vlaneseq
    %v1114 = vshrl.u32 %v1113, 7
    %v1115 = vsub.s32 3, %v1114
    %v1116 = vrot.slane %v160, %v1115
    %v1117 = vmul.f32 %v1111, %v1116
    %v1118 = vmul.f32 %v1112, %v1116
    %v1119 = vlaneseq
    %v1120 = vshrl.u32 %v1119, 7
    %v1121 = vsub.s32 4, %v1120
    %v1122 = vrot.slane %v160, %v1121
    %v1123 = vadd.f32 %v1117, %v1122
    %v1124 = vadd.f32 %v1118, %v1122
    %v1125 = vpack.c.bf16 %v1124, %v1123
    %v1126 = vlaneseq
    %v1127 = vshrl.u32 %v1126, 7
    %v1128 = vsub.s32 0, %v1127
    %v1129 = vrot.slane %v195, %v1128
    %v1130 = vlaneseq
    %v1131 = vshrl.u32 %v1130, 7
    %v1132 = vsub.s32 0, %v1131
    %v1133 = vrot.slane %v196, %v1132
    %v1134 = vlaneseq
    %v1135 = vshrl.u32 %v1134, 7
    %v1136 = vsub.s32 0, %v1135
    %v1137 = vrot.slane %v197, %v1136
    %v1138 = vlaneseq
    %v1139 = vshrl.u32 %v1138, 7
    %v1140 = vsub.s32 0, %v1139
    %v1141 = vrot.slane %v198, %v1140
    %v1174 = vunpack.c.l.b16 %v161
    %v1175 = vunpack.c.h.b16 %v161
    %v1176 = vunpack.c.l.b16 %v162
    %v1177 = vunpack.c.h.b16 %v162
    %v1178 = vunpack.c.l.b16 %v163
    %v1179 = vunpack.c.h.b16 %v163
    %v1180 = vunpack.c.l.b16 %v164
    %v1181 = vunpack.c.h.b16 %v164
    %v1182 = vunpack.c.l.b16 %v165
    %v1183 = vunpack.c.h.b16 %v165
    %v1184 = vunpack.c.l.b16 %v166
    %v1185 = vunpack.c.h.b16 %v166
    %v1186 = vunpack.c.l.b16 %v167
    %v1187 = vunpack.c.h.b16 %v167
    %v1188 = vunpack.c.l.b16 %v168
    %v1189 = vunpack.c.h.b16 %v168
    %v1190 = vunpack.c.l.b16 %v169
    %v1191 = vunpack.c.h.b16 %v169
    %v1192 = vunpack.c.l.b16 %v170
    %v1193 = vunpack.c.h.b16 %v170
    %v1194 = vunpack.c.l.b16 %v171
    %v1195 = vunpack.c.h.b16 %v171
    %v1196 = vunpack.c.l.b16 %v172
    %v1197 = vunpack.c.h.b16 %v172
    %v1198 = vunpack.c.l.b16 %v173
    %v1199 = vunpack.c.h.b16 %v173
    %v1200 = vunpack.c.l.b16 %v174
    %v1201 = vunpack.c.h.b16 %v174
    %v1202 = vunpack.c.l.b16 %v175
    %v1203 = vunpack.c.h.b16 %v175
    %v1204 = vunpack.c.l.b16 %v176
    %v1205 = vunpack.c.h.b16 %v176
    %v1206 = vunpack.c.l.b16 %v177
    %v1207 = vunpack.c.h.b16 %v177
    %v1208 = vunpack.c.l.b16 %v178
    %v1209 = vunpack.c.h.b16 %v178
    %v1210 = vunpack.c.l.b16 %v179
    %v1211 = vunpack.c.h.b16 %v179
    %v1212 = vunpack.c.l.b16 %v180
    %v1213 = vunpack.c.h.b16 %v180
    %v1214 = vunpack.c.l.b16 %v181
    %v1215 = vunpack.c.h.b16 %v181
    %v1216 = vunpack.c.l.b16 %v182
    %v1217 = vunpack.c.h.b16 %v182
    %v1218 = vunpack.c.l.b16 %v183
    %v1219 = vunpack.c.h.b16 %v183
    %v1220 = vunpack.c.l.b16 %v184
    %v1221 = vunpack.c.h.b16 %v184
    %v1222 = vunpack.c.l.b16 %v185
    %v1223 = vunpack.c.h.b16 %v185
    %v1224 = vunpack.c.l.b16 %v186
    %v1225 = vunpack.c.h.b16 %v186
    %v1226 = vunpack.c.l.b16 %v187
    %v1227 = vunpack.c.h.b16 %v187
    %v1228 = vunpack.c.l.b16 %v188
    %v1229 = vunpack.c.h.b16 %v188
    %v1230 = vunpack.c.l.b16 %v189
    %v1231 = vunpack.c.h.b16 %v189
    %v1232 = vunpack.c.l.b16 %v190
    %v1233 = vunpack.c.h.b16 %v190
    %v1234 = vunpack.c.l.b16 %v191
    %v1235 = vunpack.c.h.b16 %v191
    %v1236 = vunpack.c.l.b16 %v192
    %v1237 = vunpack.c.h.b16 %v192
    %v1238 = vpack.c.b16 %v1178, %v1174
    %v1239 = vpack.c.b16 %v1179, %v1175
    %v1240 = vpack.c.b16 %v1180, %v1176
    %v1241 = vpack.c.b16 %v1181, %v1177
    %v1242 = vpack.c.b16 %v1186, %v1182
    %v1243 = vpack.c.b16 %v1187, %v1183
    %v1244 = vpack.c.b16 %v1188, %v1184
    %v1245 = vpack.c.b16 %v1189, %v1185
    %v1246 = vpack.c.b16 %v1194, %v1190
    %v1247 = vpack.c.b16 %v1195, %v1191
    %v1248 = vpack.c.b16 %v1196, %v1192
    %v1249 = vpack.c.b16 %v1197, %v1193
    %v1250 = vpack.c.b16 %v1202, %v1198
    %v1251 = vpack.c.b16 %v1203, %v1199
    %v1252 = vpack.c.b16 %v1204, %v1200
    %v1253 = vpack.c.b16 %v1205, %v1201
    %v1254 = vpack.c.b16 %v1210, %v1206
    %v1255 = vpack.c.b16 %v1211, %v1207
    %v1256 = vpack.c.b16 %v1212, %v1208
    %v1257 = vpack.c.b16 %v1213, %v1209
    %v1258 = vpack.c.b16 %v1218, %v1214
    %v1259 = vpack.c.b16 %v1219, %v1215
    %v1260 = vpack.c.b16 %v1220, %v1216
    %v1261 = vpack.c.b16 %v1221, %v1217
    %v1262 = vpack.c.b16 %v1226, %v1222
    %v1263 = vpack.c.b16 %v1227, %v1223
    %v1264 = vpack.c.b16 %v1228, %v1224
    %v1265 = vpack.c.b16 %v1229, %v1225
    %v1266 = vpack.c.b16 %v1234, %v1230
    %v1267 = vpack.c.b16 %v1235, %v1231
    %v1268 = vpack.c.b16 %v1236, %v1232
    %v1269 = vpack.c.b16 %v1237, %v1233
    %1302 = vmatprep.subr.bf16.mxu0 %v1267
    %1303 = vmatpush1.bf16.msra.mxu0 %v1266
    %1304 = vmatprep.subr.bf16.mxu0 %v1263
    %1305 = vmatpush1.bf16.msra.mxu0 %v1262
    %1306 = vmatprep.subr.bf16.mxu0 %v1259
    %1307 = vmatpush1.bf16.msra.mxu0 %v1258
    %1308 = vmatprep.subr.bf16.mxu0 %v1255
    %1309 = vmatpush1.bf16.msra.mxu0 %v1254
    %1310 = vmatprep.subr.bf16.mxu0 %v1251
    %1311 = vmatpush1.bf16.msra.mxu0 %v1250
    %1312 = vmatprep.subr.bf16.mxu0 %v1247
    %1313 = vmatpush1.bf16.msra.mxu0 %v1246
    %1314 = vmatprep.subr.bf16.mxu0 %v1243
    %1315 = vmatpush1.bf16.msra.mxu0 %v1242
    %1316 = vmatprep.subr.bf16.mxu0 %v1239
    %1317 = vmatpush1.bf16.msra.mxu0 %v1238
    %1318 = vmatprep.subr.bf16.mxu0 0
    %1319 = vmatpush2.bf16.msra.mxu0 0
    %1320 = vmatprep.subr.bf16.mxu0 0
    %1321 = vmatpush2.bf16.msra.mxu0 0
    %1322 = vmatprep.subr.bf16.mxu0 0
    %1323 = vmatpush2.bf16.msra.mxu0 0
    %1324 = vmatprep.subr.bf16.mxu0 0
    %1325 = vmatpush2.bf16.msra.mxu0 0
    %1326 = vmatprep.subr.bf16.mxu0 0
    %1327 = vmatpush2.bf16.msra.mxu0 0
    %1328 = vmatprep.subr.bf16.mxu0 0
    %1329 = vmatpush2.bf16.msra.mxu0 0
    %1330 = vmatprep.subr.bf16.mxu0 0
    %1331 = vmatpush2.bf16.msra.mxu0 0
    %1332 = vmatprep.subr.bf16.mxu0 0
    %1333 = vmatpush2.bf16.msra.mxu0 0
    %1334 = vmatprep.mubr.bf16.mxu0 0
    %1335 = vmatmul.mubr.bf16.gmra.mxu0 %v1125
    %v1336 = vpop.f32.mrf.mxu0
    %v1337 = vadd.f32 %v1129, %v1336
    %v1338 = vpop.f32.mrf.mxu0
    %v1339 = vadd.f32 %v1133, %v1338
    %v1340 = vpop.f32.mrf.mxu0
    %v1341 = vadd.f32 %v1129, %v1340
    %v1342 = vpop.f32.mrf.mxu0
    %v1343 = vadd.f32 %v1133, %v1342
    %1344 = vdwg.mxu0
    %1345 = vmatprep.subr.bf16.mxu0 %v1269
    %1346 = vmatpush1.bf16.msra.mxu0 %v1268
    %1347 = vmatprep.subr.bf16.mxu0 %v1265
    %1348 = vmatpush1.bf16.msra.mxu0 %v1264
    %1349 = vmatprep.subr.bf16.mxu0 %v1261
    %1350 = vmatpush1.bf16.msra.mxu0 %v1260
    %1351 = vmatprep.subr.bf16.mxu0 %v1257
    %1352 = vmatpush1.bf16.msra.mxu0 %v1256
    %1353 = vmatprep.subr.bf16.mxu0 %v1253
    %1354 = vmatpush1.bf16.msra.mxu0 %v1252
    %1355 = vmatprep.subr.bf16.mxu0 %v1249
    %1356 = vmatpush1.bf16.msra.mxu0 %v1248
    %1357 = vmatprep.subr.bf16.mxu0 %v1245
    %1358 = vmatpush1.bf16.msra.mxu0 %v1244
    %1359 = vmatprep.subr.bf16.mxu0 %v1241
    %1360 = vmatpush1.bf16.msra.mxu0 %v1240
    %1361 = vmatprep.subr.bf16.mxu0 0
    %1362 = vmatpush2.bf16.msra.mxu0 0
    %1363 = vmatprep.subr.bf16.mxu0 0
    %1364 = vmatpush2.bf16.msra.mxu0 0
    %1365 = vmatprep.subr.bf16.mxu0 0
    %1366 = vmatpush2.bf16.msra.mxu0 0
    %1367 = vmatprep.subr.bf16.mxu0 0
    %1368 = vmatpush2.bf16.msra.mxu0 0
    %1369 = vmatprep.subr.bf16.mxu0 0
    %1370 = vmatpush2.bf16.msra.mxu0 0
    %1371 = vmatprep.subr.bf16.mxu0 0
    %1372 = vmatpush2.bf16.msra.mxu0 0
    %1373 = vmatprep.subr.bf16.mxu0 0
    %1374 = vmatpush2.bf16.msra.mxu0 0
    %1375 = vmatprep.subr.bf16.mxu0 0
    %1376 = vmatpush2.bf16.msra.mxu0 0
    %1377 = vmatprep.mubr.bf16.mxu0 0
    %1378 = vmatmul.mubr.bf16.gmra.mxu0 %v1125
    %v1379 = vpop.f32.mrf.mxu0
    %v1380 = vadd.f32 %v1137, %v1379
    %v1381 = vpop.f32.mrf.mxu0
    %v1382 = vadd.f32 %v1141, %v1381
    %v1383 = vpop.f32.mrf.mxu0
    %v1384 = vadd.f32 %v1137, %v1383
    %v1385 = vpop.f32.mrf.mxu0
    %v1386 = vadd.f32 %v1141, %v1385
    %1387 = vdwg.mxu0
    %v1388 = vmul.f32 %v1337, %v1337
    %v1389 = vmul.f32 %v1339, %v1339
    %v1390 = vmul.f32 %v1380, %v1380
    %v1391 = vmul.f32 %v1382, %v1382
    %v1392 = vmul.f32 %v1341, %v1341
    %v1393 = vmul.f32 %v1343, %v1343
    %v1394 = vmul.f32 %v1384, %v1384
    %v1395 = vmul.f32 %v1386, %v1386
    %v1396 = vmul.f32 %v1337, %v1388
    %v1397 = vmul.f32 %v1339, %v1389
    %v1398 = vmul.f32 %v1380, %v1390
    %v1399 = vmul.f32 %v1382, %v1391
    %v1400 = vmul.f32 %v1341, %v1392
    %v1401 = vmul.f32 %v1343, %v1393
    %v1402 = vmul.f32 %v1384, %v1394
    %v1403 = vmul.f32 %v1386, %v1395
    %v1404 = vmul.f32 %v1396, 0.044715
    %v1405 = vmul.f32 %v1397, 0.044715
    %v1406 = vmul.f32 %v1398, 0.044715
    %v1407 = vmul.f32 %v1399, 0.044715
    %v1408 = vmul.f32 %v1400, 0.044715
    %v1409 = vmul.f32 %v1401, 0.044715
    %v1410 = vmul.f32 %v1402, 0.044715
    %v1411 = vmul.f32 %v1403, 0.044715
    %v1412 = vadd.f32 %v1337, %v1404
    %v1413 = vadd.f32 %v1339, %v1405
    %v1414 = vadd.f32 %v1380, %v1406
    %v1415 = vadd.f32 %v1382, %v1407
    %v1416 = vadd.f32 %v1341, %v1408
    %v1417 = vadd.f32 %v1343, %v1409
    %v1418 = vadd.f32 %v1384, %v1410
    %v1419 = vadd.f32 %v1386, %v1411
    %v1420 = vmul.f32 %v1412, 0.7978846
    %v1421 = vmul.f32 %v1413, 0.7978846
    %v1422 = vmul.f32 %v1414, 0.7978846
    %v1423 = vmul.f32 %v1415, 0.7978846
    %v1424 = vmul.f32 %v1416, 0.7978846
    %v1425 = vmul.f32 %v1417, 0.7978846
    %v1426 = vmul.f32 %v1418, 0.7978846
    %v1427 = vmul.f32 %v1419, 0.7978846
    %v1428 = vtanh.pop %v1420
    %v1429 = vtanh.pop %v1421
    %v1430 = vtanh.pop %v1422
    %v1431 = vtanh.pop %v1423
    %v1432 = vtanh.pop %v1424
    %v1433 = vtanh.pop %v1425
    %v1434 = vtanh.pop %v1426
    %v1435 = vtanh.pop %v1427
    %v1436 = vadd.f32 %v1428, 1.0
    %v1437 = vadd.f32 %v1429, 1.0
    %v1438 = vadd.f32 %v1430, 1.0
    %v1439 = vadd.f32 %v1431, 1.0
    %v1440 = vadd.f32 %v1432, 1.0
    %v1441 = vadd.f32 %v1433, 1.0
    %v1442 = vadd.f32 %v1434, 1.0
    %v1443 = vadd.f32 %v1435, 1.0
    %v1444 = vmul.f32 %v1436, 0.5
    %v1445 = vmul.f32 %v1437, 0.5
    %v1446 = vmul.f32 %v1438, 0.5
    %v1447 = vmul.f32 %v1439, 0.5
    %v1448 = vmul.f32 %v1440, 0.5
    %v1449 = vmul.f32 %v1441, 0.5
    %v1450 = vmul.f32 %v1442, 0.5
    %v1451 = vmul.f32 %v1443, 0.5
    %v1452 = vmul.f32 %v1337, %v1444
    %v1453 = vmul.f32 %v1339, %v1445
    %v1454 = vmul.f32 %v1380, %v1446
    %v1455 = vmul.f32 %v1382, %v1447
    %v1456 = vmul.f32 %v1341, %v1448
    %v1457 = vmul.f32 %v1343, %v1449
    %v1458 = vmul.f32 %v1384, %v1450
    %v1459 = vmul.f32 %v1386, %v1451
    %v1460 = vpack.c.bf16 %v1456, %v1452
    %v1461 = vpack.c.bf16 %v1457, %v1453
    %v1462 = vpack.c.bf16 %v1458, %v1454
    %v1463 = vpack.c.bf16 %v1459, %v1455
    %v1464 = vlaneseq
    %v1465 = vshrl.u32 %v1464, 7
    %v1466 = vsub.s32 1, %v1465
    %v1467 = vrot.slane %v160, %v1466
    %v1532 = vunpack.c.l.b16 %v79
    %v1533 = vunpack.c.l.b16 %v80
    %v1534 = vunpack.c.l.b16 %v81
    %v1535 = vunpack.c.l.b16 %v82
    %v1536 = vunpack.c.l.b16 %v83
    %v1537 = vunpack.c.l.b16 %v84
    %v1538 = vunpack.c.l.b16 %v85
    %v1539 = vunpack.c.l.b16 %v86
    %v1540 = vunpack.c.l.b16 %v87
    %v1541 = vunpack.c.l.b16 %v88
    %v1542 = vunpack.c.l.b16 %v89
    %v1543 = vunpack.c.l.b16 %v90
    %v1544 = vunpack.c.l.b16 %v91
    %v1545 = vunpack.c.l.b16 %v92
    %v1546 = vunpack.c.l.b16 %v93
    %v1547 = vunpack.c.l.b16 %v94
    %v1548 = vunpack.c.l.b16 %v95
    %v1549 = vunpack.c.l.b16 %v96
    %v1550 = vunpack.c.l.b16 %v97
    %v1551 = vunpack.c.l.b16 %v98
    %v1552 = vunpack.c.l.b16 %v99
    %v1553 = vunpack.c.l.b16 %v100
    %v1554 = vunpack.c.l.b16 %v101
    %v1555 = vunpack.c.l.b16 %v102
    %v1556 = vunpack.c.l.b16 %v103
    %v1557 = vunpack.c.l.b16 %v104
    %v1558 = vunpack.c.l.b16 %v105
    %v1559 = vunpack.c.l.b16 %v106
    %v1560 = vunpack.c.l.b16 %v107
    %v1561 = vunpack.c.l.b16 %v108
    %v1562 = vunpack.c.l.b16 %v109
    %v1563 = vunpack.c.l.b16 %v110
    %v1564 = vunpack.c.l.b16 %v111
    %v1565 = vunpack.c.l.b16 %v112
    %v1566 = vunpack.c.l.b16 %v113
    %v1567 = vunpack.c.l.b16 %v114
    %v1568 = vunpack.c.l.b16 %v115
    %v1569 = vunpack.c.l.b16 %v116
    %v1570 = vunpack.c.l.b16 %v117
    %v1571 = vunpack.c.l.b16 %v118
    %v1572 = vunpack.c.l.b16 %v119
    %v1573 = vunpack.c.l.b16 %v120
    %v1574 = vunpack.c.l.b16 %v121
    %v1575 = vunpack.c.l.b16 %v122
    %v1576 = vunpack.c.l.b16 %v123
    %v1577 = vunpack.c.l.b16 %v124
    %v1578 = vunpack.c.l.b16 %v125
    %v1579 = vunpack.c.l.b16 %v126
    %v1580 = vunpack.c.l.b16 %v127
    %v1581 = vunpack.c.l.b16 %v128
    %v1582 = vunpack.c.l.b16 %v129
    %v1583 = vunpack.c.l.b16 %v130
    %v1584 = vunpack.c.l.b16 %v131
    %v1585 = vunpack.c.l.b16 %v132
    %v1586 = vunpack.c.l.b16 %v133
    %v1587 = vunpack.c.l.b16 %v134
    %v1588 = vunpack.c.l.b16 %v135
    %v1589 = vunpack.c.l.b16 %v136
    %v1590 = vunpack.c.l.b16 %v137
    %v1591 = vunpack.c.l.b16 %v138
    %v1592 = vunpack.c.l.b16 %v139
    %v1593 = vunpack.c.l.b16 %v140
    %v1594 = vunpack.c.l.b16 %v141
    %v1595 = vunpack.c.l.b16 %v142
    %v1596 = vpack.c.b16 %v1533, %v1532
    %v1597 = vpack.c.b16 %v1535, %v1534
    %v1598 = vpack.c.b16 %v1537, %v1536
    %v1599 = vpack.c.b16 %v1539, %v1538
    %v1600 = vpack.c.b16 %v1541, %v1540
    %v1601 = vpack.c.b16 %v1543, %v1542
    %v1602 = vpack.c.b16 %v1545, %v1544
    %v1603 = vpack.c.b16 %v1547, %v1546
    %v1604 = vpack.c.b16 %v1549, %v1548
    %v1605 = vpack.c.b16 %v1551, %v1550
    %v1606 = vpack.c.b16 %v1553, %v1552
    %v1607 = vpack.c.b16 %v1555, %v1554
    %v1608 = vpack.c.b16 %v1557, %v1556
    %v1609 = vpack.c.b16 %v1559, %v1558
    %v1610 = vpack.c.b16 %v1561, %v1560
    %v1611 = vpack.c.b16 %v1563, %v1562
    %v1612 = vpack.c.b16 %v1565, %v1564
    %v1613 = vpack.c.b16 %v1567, %v1566
    %v1614 = vpack.c.b16 %v1569, %v1568
    %v1615 = vpack.c.b16 %v1571, %v1570
    %v1616 = vpack.c.b16 %v1573, %v1572
    %v1617 = vpack.c.b16 %v1575, %v1574
    %v1618 = vpack.c.b16 %v1577, %v1576
    %v1619 = vpack.c.b16 %v1579, %v1578
    %v1620 = vpack.c.b16 %v1581, %v1580
    %v1621 = vpack.c.b16 %v1583, %v1582
    %v1622 = vpack.c.b16 %v1585, %v1584
    %v1623 = vpack.c.b16 %v1587, %v1586
    %v1624 = vpack.c.b16 %v1589, %v1588
    %v1625 = vpack.c.b16 %v1591, %v1590
    %v1626 = vpack.c.b16 %v1593, %v1592
    %v1627 = vpack.c.b16 %v1595, %v1594
    %1660 = vmatprep.subr.bf16.mxu0 0
    %1661 = vmatpush1.bf16.msra.mxu0 %v1603
    %1662 = vmatprep.subr.bf16.mxu0 0
    %1663 = vmatpush1.bf16.msra.mxu0 %v1602
    %1664 = vmatprep.subr.bf16.mxu0 0
    %1665 = vmatpush1.bf16.msra.mxu0 %v1601
    %1666 = vmatprep.subr.bf16.mxu0 0
    %1667 = vmatpush1.bf16.msra.mxu0 %v1600
    %1668 = vmatprep.subr.bf16.mxu0 0
    %1669 = vmatpush1.bf16.msra.mxu0 %v1599
    %1670 = vmatprep.subr.bf16.mxu0 0
    %1671 = vmatpush1.bf16.msra.mxu0 %v1598
    %1672 = vmatprep.subr.bf16.mxu0 0
    %1673 = vmatpush1.bf16.msra.mxu0 %v1597
    %1674 = vmatprep.subr.bf16.mxu0 0
    %1675 = vmatpush1.bf16.msra.mxu0 %v1596
    %1676 = vmatprep.subr.bf16.mxu0 0
    %1677 = vmatpush2.bf16.msra.mxu0 %v1611
    %1678 = vmatprep.subr.bf16.mxu0 0
    %1679 = vmatpush2.bf16.msra.mxu0 %v1610
    %1680 = vmatprep.subr.bf16.mxu0 0
    %1681 = vmatpush2.bf16.msra.mxu0 %v1609
    %1682 = vmatprep.subr.bf16.mxu0 0
    %1683 = vmatpush2.bf16.msra.mxu0 %v1608
    %1684 = vmatprep.subr.bf16.mxu0 0
    %1685 = vmatpush2.bf16.msra.mxu0 %v1607
    %1686 = vmatprep.subr.bf16.mxu0 0
    %1687 = vmatpush2.bf16.msra.mxu0 %v1606
    %1688 = vmatprep.subr.bf16.mxu0 0
    %1689 = vmatpush2.bf16.msra.mxu0 %v1605
    %1690 = vmatprep.subr.bf16.mxu0 0
    %1691 = vmatpush2.bf16.msra.mxu0 %v1604
    %1692 = vmatprep.mubr.bf16.mxu0 %v1461
    %1693 = vmatmul.mubr.bf16.gmra.mxu0 %v1460
    %v1694 = vpop.f32.mrf.mxu0
    %v1695 = vadd.f32 %v1467, %v1694
    %v1696 = vpop.f32.mrf.mxu0
    %v1697 = vpop.f32.mrf.mxu0
    %v1698 = vadd.f32 %v1467, %v1697
    %v1699 = vpop.f32.mrf.mxu0
    %1700 = vdwg.mxu0
    %1701 = vmatprep.subr.bf16.mxu0 0
    %1702 = vmatpush1.bf16.msra.mxu0 %v1619
    %1703 = vmatprep.subr.bf16.mxu0 0
    %1704 = vmatpush1.bf16.msra.mxu0 %v1618
    %1705 = vmatprep.subr.bf16.mxu0 0
    %1706 = vmatpush1.bf16.msra.mxu0 %v1617
    %1707 = vmatprep.subr.bf16.mxu0 0
    %1708 = vmatpush1.bf16.msra.mxu0 %v1616
    %1709 = vmatprep.subr.bf16.mxu0 0
    %1710 = vmatpush1.bf16.msra.mxu0 %v1615
    %1711 = vmatprep.subr.bf16.mxu0 0
    %1712 = vmatpush1.bf16.msra.mxu0 %v1614
    %1713 = vmatprep.subr.bf16.mxu0 0
    %1714 = vmatpush1.bf16.msra.mxu0 %v1613
    %1715 = vmatprep.subr.bf16.mxu0 0
    %1716 = vmatpush1.bf16.msra.mxu0 %v1612
    %1717 = vmatprep.subr.bf16.mxu0 0
    %1718 = vmatpush2.bf16.msra.mxu0 %v1627
    %1719 = vmatprep.subr.bf16.mxu0 0
    %1720 = vmatpush2.bf16.msra.mxu0 %v1626
    %1721 = vmatprep.subr.bf16.mxu0 0
    %1722 = vmatpush2.bf16.msra.mxu0 %v1625
    %1723 = vmatprep.subr.bf16.mxu0 0
    %1724 = vmatpush2.bf16.msra.mxu0 %v1624
    %1725 = vmatprep.subr.bf16.mxu0 0
    %1726 = vmatpush2.bf16.msra.mxu0 %v1623
    %1727 = vmatprep.subr.bf16.mxu0 0
    %1728 = vmatpush2.bf16.msra.mxu0 %v1622
    %1729 = vmatprep.subr.bf16.mxu0 0
    %1730 = vmatpush2.bf16.msra.mxu0 %v1621
    %1731 = vmatprep.subr.bf16.mxu0 0
    %1732 = vmatpush2.bf16.msra.mxu0 %v1620
    %1733 = vmatprep.mubr.bf16.mxu0 %v1463
    %1734 = vmatmul.mubr.bf16.gmra.mxu0 %v1462
    %v1735 = vpop.f32.mrf.mxu0
    %v1736 = vadd.f32 %v1695, %v1735
    %v1737 = vpop.f32.mrf.mxu0
    %v1738 = vpop.f32.mrf.mxu0
    %v1739 = vadd.f32 %v1698, %v1738
    %v1740 = vpop.f32.mrf.mxu0
    %1741 = vdwg.mxu0
    %v1742 = vadd.f32 %v1123, %v1736
    %v1743 = vadd.f32 %v1124, %v1739
    %1744 = vadd.xlane.f32.xlu0 %v1742
    %v1745 = vpop.xlane.xlu0 %1744
    %1746 = vadd.xlane.f32.xlu0 %v1743
    %v1747 = vpop.xlane.xlu0 %1746
    %v1748 = vmul.f32 %v1745, %v1094
    %v1749 = vmul.f32 %v1747, %v1094
    %v1750 = vsub.f32 %v1742, %v1748
    %v1751 = vsub.f32 %v1743, %v1749
    %v1752 = vmul.f32 %v1750, %v1750
    %v1753 = vmul.f32 %v1751, %v1751
    %1754 = vadd.xlane.f32.xlu0 %v1752
    %v1755 = vpop.xlane.xlu0 %1754
    %1756 = vadd.xlane.f32.xlu0 %v1753
    %v1757 = vpop.xlane.xlu0 %1756
    %v1758 = vmul.f32 %v1755, %v1094
    %v1759 = vmul.f32 %v1757, %v1094
    %v1760 = vadd.f32 %v1758, 1e-12
    %v1761 = vadd.f32 %v1759, 1e-12
    %v1762 = vrsqrt.pop %v1760
    %v1763 = vrsqrt.pop %v1761
    %v1764 = vmul.f32 %v1750, %v1762
    %v1765 = vmul.f32 %v1751, %v1763
    %v1766 = vlaneseq
    %v1767 = vshrl.u32 %v1766, 7
    %v1768 = vsub.s32 5, %v1767
    %v1769 = vrot.slane %v160, %v1768
    %v1770 = vmul.f32 %v1764, %v1769
    %v1771 = vmul.f32 %v1765, %v1769
    %v1772 = vlaneseq
    %v1773 = vshrl.u32 %v1772, 7
    %v1774 = vsub.s32 6, %v1773
    %v1775 = vrot.slane %v160, %v1774
    %v1776 = vadd.f32 %v1770, %v1775
    %v1777 = vadd.f32 %v1771, %v1775
    %v1778 = vpack.c.bf16 %v1777, %v1776
    %v1780 = vshll.u32 %v1778, 16
    %v1782 = vrot.slane %v1780, 4
    %vm1784 = vcmask 1040384
    %vm1785 = vsmask.f32 256
    %vm1786 = vmand %vm1784, %vm1785
    %v1787 = vsel %vm1786, %v1778, %v1782
    %v1788 = vlaneseq
    %v1789 = vshrl.u32 %v1788, 7
    %v1790 = vsub.s32 2, %v1789
    %v1791 = vrot.slane %v160, %v1790
    %v1808 = vunpack.c.l.b16 %v143
    %v1809 = vunpack.c.l.b16 %v144
    %v1810 = vunpack.c.l.b16 %v145
    %v1811 = vunpack.c.l.b16 %v146
    %v1812 = vunpack.c.l.b16 %v147
    %v1813 = vunpack.c.l.b16 %v148
    %v1814 = vunpack.c.l.b16 %v149
    %v1815 = vunpack.c.l.b16 %v150
    %v1816 = vunpack.c.l.b16 %v151
    %v1817 = vunpack.c.l.b16 %v152
    %v1818 = vunpack.c.l.b16 %v153
    %v1819 = vunpack.c.l.b16 %v154
    %v1820 = vunpack.c.l.b16 %v155
    %v1821 = vunpack.c.l.b16 %v156
    %v1822 = vunpack.c.l.b16 %v157
    %v1823 = vunpack.c.l.b16 %v158
    %v1824 = vpack.c.b16 %v1809, %v1808
    %v1825 = vpack.c.b16 %v1811, %v1810
    %v1826 = vpack.c.b16 %v1813, %v1812
    %v1827 = vpack.c.b16 %v1815, %v1814
    %v1828 = vpack.c.b16 %v1817, %v1816
    %v1829 = vpack.c.b16 %v1819, %v1818
    %v1830 = vpack.c.b16 %v1821, %v1820
    %v1831 = vpack.c.b16 %v1823, %v1822
    %1840 = vmatprep.subr.bf16.mxu0 0
    %1841 = vmatpush1.bf16.msra.mxu0 %v1831
    %1842 = vmatprep.subr.bf16.mxu0 0
    %1843 = vmatpush1.bf16.msra.mxu0 %v1830
    %1844 = vmatprep.subr.bf16.mxu0 0
    %1845 = vmatpush1.bf16.msra.mxu0 %v1829
    %1846 = vmatprep.subr.bf16.mxu0 0
    %1847 = vmatpush1.bf16.msra.mxu0 %v1828
    %1848 = vmatprep.subr.bf16.mxu0 0
    %1849 = vmatpush1.bf16.msra.mxu0 %v1827
    %1850 = vmatprep.subr.bf16.mxu0 0
    %1851 = vmatpush1.bf16.msra.mxu0 %v1826
    %1852 = vmatprep.subr.bf16.mxu0 0
    %1853 = vmatpush1.bf16.msra.mxu0 %v1825
    %1854 = vmatprep.subr.bf16.mxu0 0
    %1855 = vmatpush1.bf16.msra.mxu0 %v1824
    %1856 = vmatprep.subr.bf16.mxu0 0
    %1857 = vmatpush2.bf16.msra.mxu0 0
    %1858 = vmatprep.subr.bf16.mxu0 0
    %1859 = vmatpush2.bf16.msra.mxu0 0
    %1860 = vmatprep.subr.bf16.mxu0 0
    %1861 = vmatpush2.bf16.msra.mxu0 0
    %1862 = vmatprep.subr.bf16.mxu0 0
    %1863 = vmatpush2.bf16.msra.mxu0 0
    %1864 = vmatprep.subr.bf16.mxu0 0
    %1865 = vmatpush2.bf16.msra.mxu0 0
    %1866 = vmatprep.subr.bf16.mxu0 0
    %1867 = vmatpush2.bf16.msra.mxu0 0
    %1868 = vmatprep.subr.bf16.mxu0 0
    %1869 = vmatpush2.bf16.msra.mxu0 0
    %1870 = vmatprep.subr.bf16.mxu0 0
    %1871 = vmatpush2.bf16.msra.mxu0 0
    %1872 = vmatprep.mubr.bf16.mxu0 0
    %1873 = vmatmul.mubr.bf16.gmra.mxu0 %v1787
    %v1874 = vpop.f32.mrf.mxu0
    %v1875 = vadd.f32 %v1791, %v1874
    %v1876 = vpop.f32.mrf.mxu0
    %v1877 = vpop.f32.mrf.mxu0
    %v1878 = vpop.f32.mrf.mxu0
    %1879 = vdwg.mxu0
    %v1880 = vtanh.pop %v1875
    %s1881 = smul.u32 4, 237
    %s1882 = smul.u32 %s1881, 1
    %s1883 = sshll.u32 %s1882, 4
    %1884 = dma.done [#allocation3], %s1883
    %v1885 = vld [vmem:[#allocation2 + $0x3b0] sm:$0xf]
    %v1886 = vunpack.c.l.bf16 %v1885
    %vm1889 = vcmask 1046528
    %v1890 = vrot.slane %v1776, 1
    %v1891 = vrot.slane %v1777, 1
    %v1892 = vsel %vm1889, %v1890, %v1891
    %v1896 = vsel %vm1889, %v1891, %v1890
    %vm1897 = vcmask 1045504
    %v1898 = vrot.slane %v1776, 2
    %v1899 = vrot.slane %v1777, 2
    %v1900 = vsel %vm1897, %v1898, %v1899
    %v1904 = vsel %vm1897, %v1899, %v1898
    %vm1905 = vcmask 1044480
    %v1906 = vrot.slane %v1776, 3
    %v1907 = vrot.slane %v1777, 3
    %v1908 = vsel %vm1905, %v1906, %v1907
    %v1912 = vsel %vm1905, %v1907, %v1906
    %v1913 = vpack.c.bf16 %v1896, %v1892
    %v1914 = vpack.c.bf16 %v1904, %v1900
    %v1915 = vpack.c.bf16 %v1912, %v1908
    %v1916 = vlaneseq
    %v1917 = vshrl.u32 %v1916, 7
    %v1918 = vadd.s32 %v1917, 8
    %vm1919 = vcmp.lt.s32.totalorder %v1917, 0
    %v1920 = vsub.s32 0, %v1917
    %v1921 = vsel %vm1919, %v1920, %v1917
    %v1922 = vshrl.u32 %v1921, 3
    %v1923 = vand.u32 %v1921, 7
    %v1924 = vsub.s32 0, %v1923
    %v1925 = vsel %vm1919, %v1924, %v1923
    %vm1926 = vcmp.lt.s32.totalorder %v1918, 0
    %v1927 = vsub.s32 0, %v1918
    %v1928 = vsel %vm1926, %v1927, %v1918
    %v1929 = vshrl.u32 %v1928, 3
    %v1930 = vand.u32 %v1928, 7
    %v1931 = vsub.s32 0, %v1930
    %v1932 = vsel %vm1926, %v1931, %v1930
    %vm1933 = vcmp.ne.s32.totalorder %v1925, 0
    %vm1934 = vcmp.ne.s32.totalorder %v1932, 0
    %vm1935 = vcmp.lt.s32.totalorder %v1925, 0
    %vm1936 = vcmp.lt.s32.totalorder %v1932, 0
    %vm1937 = vmand %vm1935, %vm1933
    %vm1938 = vmand %vm1936, %vm1934
    %v1939 = vadd.s32 %v1925, 8
    %v1940 = vadd.s32 %v1932, 8
    %v1941 = vsel %vm1937, %v1939, %v1925
    %v1942 = vsel %vm1938, %v1940, %v1932
    %v1943 = vld [vmem:[#allocation2] sm:$0xf]
    %v1944 = vld [vmem:[#allocation2 + $0x4] sm:$0xf]
    %v1945 = vld [vmem:[#allocation2 + $0x8] sm:$0xf]
    %v1946 = vld [vmem:[#allocation2 + $0xc] sm:$0xf]
    %v1947 = vld [vmem:[#allocation2 + $0x10] sm:$0xf]
    %v1948 = vld [vmem:[#allocation2 + $0x14] sm:$0xf]
    %v1949 = vld [vmem:[#allocation2 + $0x18] sm:$0xf]
    %v1950 = vld [vmem:[#allocation2 + $0x1c] sm:$0xf]
    %v1951 = vld [vmem:[#allocation2 + $0x20] sm:$0xf]
    %v1952 = vld [vmem:[#allocation2 + $0x24] sm:$0xf]
    %v1953 = vld [vmem:[#allocation2 + $0x28] sm:$0xf]
    %v1954 = vld [vmem:[#allocation2 + $0x2c] sm:$0xf]
    %v1955 = vld [vmem:[#allocation2 + $0x30] sm:$0xf]
    %v1956 = vld [vmem:[#allocation2 + $0x34] sm:$0xf]
    %v1957 = vld [vmem:[#allocation2 + $0x38] sm:$0xf]
    %v1958 = vld [vmem:[#allocation2 + $0x3c] sm:$0xf]
    %v1959 = vld [vmem:[#allocation2 + $0x40] sm:$0xf]
    %v1960 = vld [vmem:[#allocation2 + $0x44] sm:$0xf]
    %v1961 = vld [vmem:[#allocation2 + $0x48] sm:$0xf]
    %v1962 = vld [vmem:[#allocation2 + $0x4c] sm:$0xf]
    %v1963 = vld [vmem:[#allocation2 + $0x50] sm:$0xf]
    %v1964 = vld [vmem:[#allocation2 + $0x54] sm:$0xf]
    %v1965 = vld [vmem:[#allocation2 + $0x58] sm:$0xf]
    %v1966 = vld [vmem:[#allocation2 + $0x5c] sm:$0xf]
    %v1967 = vld [vmem:[#allocation2 + $0x60] sm:$0xf]
    %v1968 = vld [vmem:[#allocation2 + $0x64] sm:$0xf]
    %v1969 = vld [vmem:[#allocation2 + $0x68] sm:$0xf]
    %v1970 = vld [vmem:[#allocation2 + $0x6c] sm:$0xf]
    %v1971 = vld [vmem:[#allocation2 + $0x70] sm:$0xf]
    %v1972 = vld [vmem:[#allocation2 + $0x74] sm:$0xf]
    %v1973 = vld [vmem:[#allocation2 + $0x78] sm:$0xf]
    %v1974 = vld [vmem:[#allocation2 + $0x7c] sm:$0xf]
    %v1975 = vlaneseq
    %v1976 = vshrl.u32 %v1975, 7
    %v1977 = vsub.s32 1, %v1976
    %v1978 = vrot.slane %v1886, %v1977
    %v2011 = vunpack.c.l.b16 %v1943
    %v2012 = vunpack.c.l.b16 %v1944
    %v2013 = vunpack.c.l.b16 %v1945
    %v2014 = vunpack.c.l.b16 %v1946
    %v2015 = vunpack.c.l.b16 %v1947
    %v2016 = vunpack.c.l.b16 %v1948
    %v2017 = vunpack.c.l.b16 %v1949
    %v2018 = vunpack.c.l.b16 %v1950
    %v2019 = vunpack.c.l.b16 %v1951
    %v2020 = vunpack.c.l.b16 %v1952
    %v2021 = vunpack.c.l.b16 %v1953
    %v2022 = vunpack.c.l.b16 %v1954
    %v2023 = vunpack.c.l.b16 %v1955
    %v2024 = vunpack.c.l.b16 %v1956
    %v2025 = vunpack.c.l.b16 %v1957
    %v2026 = vunpack.c.l.b16 %v1958
    %v2027 = vunpack.c.l.b16 %v1959
    %v2028 = vunpack.c.l.b16 %v1960
    %v2029 = vunpack.c.l.b16 %v1961
    %v2030 = vunpack.c.l.b16 %v1962
    %v2031 = vunpack.c.l.b16 %v1963
    %v2032 = vunpack.c.l.b16 %v1964
    %v2033 = vunpack.c.l.b16 %v1965
    %v2034 = vunpack.c.l.b16 %v1966
    %v2035 = vunpack.c.l.b16 %v1967
    %v2036 = vunpack.c.l.b16 %v1968
    %v2037 = vunpack.c.l.b16 %v1969
    %v2038 = vunpack.c.l.b16 %v1970
    %v2039 = vunpack.c.l.b16 %v1971
    %v2040 = vunpack.c.l.b16 %v1972
    %v2041 = vunpack.c.l.b16 %v1973
    %v2042 = vunpack.c.l.b16 %v1974
    %v2043 = vpack.c.b16 %v2012, %v2011
    %v2044 = vpack.c.b16 %v2014, %v2013
    %v2045 = vpack.c.b16 %v2016, %v2015
    %v2046 = vpack.c.b16 %v2018, %v2017
    %v2047 = vpack.c.b16 %v2020, %v2019
    %v2048 = vpack.c.b16 %v2022, %v2021
    %v2049 = vpack.c.b16 %v2024, %v2023
    %v2050 = vpack.c.b16 %v2026, %v2025
    %v2051 = vpack.c.b16 %v2028, %v2027
    %v2052 = vpack.c.b16 %v2030, %v2029
    %v2053 = vpack.c.b16 %v2032, %v2031
    %v2054 = vpack.c.b16 %v2034, %v2033
    %v2055 = vpack.c.b16 %v2036, %v2035
    %v2056 = vpack.c.b16 %v2038, %v2037
    %v2057 = vpack.c.b16 %v2040, %v2039
    %v2058 = vpack.c.b16 %v2042, %v2041
    %2075 = vmatprep.subr.bf16.mxu0 0
    %2076 = vmatpush1.bf16.msra.mxu0 %v2050
    %2077 = vmatprep.subr.bf16.mxu0 0
    %2078 = vmatpush1.bf16.msra.mxu0 %v2049
    %2079 = vmatprep.subr.bf16.mxu0 0
    %2080 = vmatpush1.bf16.msra.mxu0 %v2048
    %2081 = vmatprep.subr.bf16.mxu0 0
    %2082 = vmatpush1.bf16.msra.mxu0 %v2047
    %2083 = vmatprep.subr.bf16.mxu0 0
    %2084 = vmatpush1.bf16.msra.mxu0 %v2046
    %2085 = vmatprep.subr.bf16.mxu0 0
    %2086 = vmatpush1.bf16.msra.mxu0 %v2045
    %2087 = vmatprep.subr.bf16.mxu0 0
    %2088 = vmatpush1.bf16.msra.mxu0 %v2044
    %2089 = vmatprep.subr.bf16.mxu0 0
    %2090 = vmatpush1.bf16.msra.mxu0 %v2043
    %2091 = vmatprep.subr.bf16.mxu0 0
    %2092 = vmatpush2.bf16.msra.mxu0 %v2058
    %2093 = vmatprep.subr.bf16.mxu0 0
    %2094 = vmatpush2.bf16.msra.mxu0 %v2057
    %2095 = vmatprep.subr.bf16.mxu0 0
    %2096 = vmatpush2.bf16.msra.mxu0 %v2056
    %2097 = vmatprep.subr.bf16.mxu0 0
    %2098 = vmatpush2.bf16.msra.mxu0 %v2055
    %2099 = vmatprep.subr.bf16.mxu0 0
    %2100 = vmatpush2.bf16.msra.mxu0 %v2054
    %2101 = vmatprep.subr.bf16.mxu0 0
    %2102 = vmatpush2.bf16.msra.mxu0 %v2053
    %2103 = vmatprep.subr.bf16.mxu0 0
    %2104 = vmatpush2.bf16.msra.mxu0 %v2052
    %2105 = vmatprep.subr.bf16.mxu0 0
    %2106 = vmatpush2.bf16.msra.mxu0 %v2051
    %2107 = vmatprep.mubr.bf16.mxu0 %v1913
    %2108 = vmatmul.mubr.bf16.gmra.mxu0 %v1778
    %v2109 = vpop.f32.mrf.mxu0
    %v2110 = vadd.f32 %v1978, %v2109
    %v2111 = vpop.f32.mrf.mxu0
    %v2112 = vpop.f32.mrf.mxu0
    %v2113 = vadd.f32 %v1978, %v2112
    %v2114 = vpop.f32.mrf.mxu0
    %2115 = vdwg.mxu0
    %vm2116 = vcmp.lt.s32.totalorder %v1941, 7
    %vm2117 = vcmp.lt.s32.totalorder %v1942, 7
    %v2118 = vmax.f32 %v2110, 0.0
    %v2119 = vmax.f32 %v2113, 0.0
    %v2120 = vsel %vm2116, 1, 0
    %v2121 = vsel %vm2117, 1, 0
    %vm2122 = vcmp.eq.s32.totalorder %v2120, 1
    %vm2123 = vcmp.eq.s32.totalorder %v2121, 1
    %v2124 = vsel %vm2122, %v2118, 0.0
    %v2125 = vsel %vm2123, %v2119, 0.0
    %v2126 = vrot.slane %v2124, 4
    %v2127 = vmax.f32 %v2124, %v2126
    %v2128 = vrot.slane %v2127, 2
    %v2129 = vmax.f32 %v2127, %v2128
    %v2130 = vrot.slane %v2129, 1
    %v2131 = vmax.f32 %v2129, %v2130
    %v2132 = vrot.slane %v2125, 4
    %v2133 = vmax.f32 %v2125, %v2132
    %v2134 = vrot.slane %v2133, 2
    %v2135 = vmax.f32 %v2133, %v2134
    %v2136 = vrot.slane %v2135, 1
    %v2137 = vmax.f32 %v2135, %v2136
    %v2138 = vld [vmem:[#allocation2 + $0x80] sm:$0xf]
    %v2139 = vld [vmem:[#allocation2 + $0x84] sm:$0xf]
    %v2140 = vld [vmem:[#allocation2 + $0x88] sm:$0xf]
    %v2141 = vld [vmem:[#allocation2 + $0x8c] sm:$0xf]
    %v2142 = vld [vmem:[#allocation2 + $0x90] sm:$0xf]
    %v2143 = vld [vmem:[#allocation2 + $0x94] sm:$0xf]
    %v2144 = vld [vmem:[#allocation2 + $0x98] sm:$0xf]
    %v2145 = vld [vmem:[#allocation2 + $0x9c] sm:$0xf]
    %v2146 = vld [vmem:[#allocation2 + $0xa0] sm:$0xf]
    %v2147 = vld [vmem:[#allocation2 + $0xa4] sm:$0xf]
    %v2148 = vld [vmem:[#allocation2 + $0xa8] sm:$0xf]
    %v2149 = vld [vmem:[#allocation2 + $0xac] sm:$0xf]
    %v2150 = vld [vmem:[#allocation2 + $0xb0] sm:$0xf]
    %v2151 = vld [vmem:[#allocation2 + $0xb4] sm:$0xf]
    %v2152 = vld [vmem:[#allocation2 + $0xb8] sm:$0xf]
    %v2153 = vld [vmem:[#allocation2 + $0xbc] sm:$0xf]
    %v2154 = vld [vmem:[#allocation2 + $0xc0] sm:$0xf]
    %v2155 = vld [vmem:[#allocation2 + $0xc4] sm:$0xf]
    %v2156 = vld [vmem:[#allocation2 + $0xc8] sm:$0xf]
    %v2157 = vld [vmem:[#allocation2 + $0xcc] sm:$0xf]
    %v2158 = vld [vmem:[#allocation2 + $0xd0] sm:$0xf]
    %v2159 = vld [vmem:[#allocation2 + $0xd4] sm:$0xf]
    %v2160 = vld [vmem:[#allocation2 + $0xd8] sm:$0xf]
    %v2161 = vld [vmem:[#allocation2 + $0xdc] sm:$0xf]
    %v2162 = vld [vmem:[#allocation2 + $0xe0] sm:$0xf]
    %v2163 = vld [vmem:[#allocation2 + $0xe4] sm:$0xf]
    %v2164 = vld [vmem:[#allocation2 + $0xe8] sm:$0xf]
    %v2165 = vld [vmem:[#allocation2 + $0xec] sm:$0xf]
    %v2166 = vld [vmem:[#allocation2 + $0xf0] sm:$0xf]
    %v2167 = vld [vmem:[#allocation2 + $0xf4] sm:$0xf]
    %v2168 = vld [vmem:[#allocation2 + $0xf8] sm:$0xf]
    %v2169 = vld [vmem:[#allocation2 + $0xfc] sm:$0xf]
    %v2170 = vld [vmem:[#allocation2 + $0x100] sm:$0xf]
    %v2171 = vld [vmem:[#allocation2 + $0x104] sm:$0xf]
    %v2172 = vld [vmem:[#allocation2 + $0x108] sm:$0xf]
    %v2173 = vld [vmem:[#allocation2 + $0x10c] sm:$0xf]
    %v2174 = vld [vmem:[#allocation2 + $0x110] sm:$0xf]
    %v2175 = vld [vmem:[#allocation2 + $0x114] sm:$0xf]
    %v2176 = vld [vmem:[#allocation2 + $0x118] sm:$0xf]
    %v2177 = vld [vmem:[#allocation2 + $0x11c] sm:$0xf]
    %v2178 = vld [vmem:[#allocation2 + $0x120] sm:$0xf]
    %v2179 = vld [vmem:[#allocation2 + $0x124] sm:$0xf]
    %v2180 = vld [vmem:[#allocation2 + $0x128] sm:$0xf]
    %v2181 = vld [vmem:[#allocation2 + $0x12c] sm:$0xf]
    %v2182 = vld [vmem:[#allocation2 + $0x130] sm:$0xf]
    %v2183 = vld [vmem:[#allocation2 + $0x134] sm:$0xf]
    %v2184 = vld [vmem:[#allocation2 + $0x138] sm:$0xf]
    %v2185 = vld [vmem:[#allocation2 + $0x13c] sm:$0xf]
    %v2186 = vlaneseq
    %v2187 = vshrl.u32 %v2186, 7
    %v2188 = vsub.s32 2, %v2187
    %v2189 = vrot.slane %v1886, %v2188
    %v2238 = vunpack.c.l.b16 %v2138
    %v2239 = vunpack.c.l.b16 %v2139
    %v2240 = vunpack.c.l.b16 %v2140
    %v2241 = vunpack.c.l.b16 %v2141
    %v2242 = vunpack.c.l.b16 %v2142
    %v2243 = vunpack.c.l.b16 %v2143
    %v2244 = vunpack.c.l.b16 %v2144
    %v2245 = vunpack.c.l.b16 %v2145
    %v2246 = vunpack.c.l.b16 %v2146
    %v2247 = vunpack.c.l.b16 %v2147
    %v2248 = vunpack.c.l.b16 %v2148
    %v2249 = vunpack.c.l.b16 %v2149
    %v2250 = vunpack.c.l.b16 %v2150
    %v2251 = vunpack.c.l.b16 %v2151
    %v2252 = vunpack.c.l.b16 %v2152
    %v2253 = vunpack.c.l.b16 %v2153
    %v2254 = vunpack.c.l.b16 %v2154
    %v2255 = vunpack.c.l.b16 %v2155
    %v2256 = vunpack.c.l.b16 %v2156
    %v2257 = vunpack.c.l.b16 %v2157
    %v2258 = vunpack.c.l.b16 %v2158
    %v2259 = vunpack.c.l.b16 %v2159
    %v2260 = vunpack.c.l.b16 %v2160
    %v2261 = vunpack.c.l.b16 %v2161
    %v2262 = vunpack.c.l.b16 %v2162
    %v2263 = vunpack.c.l.b16 %v2163
    %v2264 = vunpack.c.l.b16 %v2164
    %v2265 = vunpack.c.l.b16 %v2165
    %v2266 = vunpack.c.l.b16 %v2166
    %v2267 = vunpack.c.l.b16 %v2167
    %v2268 = vunpack.c.l.b16 %v2168
    %v2269 = vunpack.c.l.b16 %v2169
    %v2270 = vunpack.c.l.b16 %v2170
    %v2271 = vunpack.c.l.b16 %v2171
    %v2272 = vunpack.c.l.b16 %v2172
    %v2273 = vunpack.c.l.b16 %v2173
    %v2274 = vunpack.c.l.b16 %v2174
    %v2275 = vunpack.c.l.b16 %v2175
    %v2276 = vunpack.c.l.b16 %v2176
    %v2277 = vunpack.c.l.b16 %v2177
    %v2278 = vunpack.c.l.b16 %v2178
    %v2279 = vunpack.c.l.b16 %v2179
    %v2280 = vunpack.c.l.b16 %v2180
    %v2281 = vunpack.c.l.b16 %v2181
    %v2282 = vunpack.c.l.b16 %v2182
    %v2283 = vunpack.c.l.b16 %v2183
    %v2284 = vunpack.c.l.b16 %v2184
    %v2285 = vunpack.c.l.b16 %v2185
    %v2286 = vpack.c.b16 %v2239, %v2238
    %v2287 = vpack.c.b16 %v2241, %v2240
    %v2288 = vpack.c.b16 %v2243, %v2242
    %v2289 = vpack.c.b16 %v2245, %v2244
    %v2290 = vpack.c.b16 %v2247, %v2246
    %v2291 = vpack.c.b16 %v2249, %v2248
    %v2292 = vpack.c.b16 %v2251, %v2250
    %v2293 = vpack.c.b16 %v2253, %v2252
    %v2294 = vpack.c.b16 %v2255, %v2254
    %v2295 = vpack.c.b16 %v2257, %v2256
    %v2296 = vpack.c.b16 %v2259, %v2258
    %v2297 = vpack.c.b16 %v2261, %v2260
    %v2298 = vpack.c.b16 %v2263, %v2262
    %v2299 = vpack.c.b16 %v2265, %v2264
    %v2300 = vpack.c.b16 %v2267, %v2266
    %v2301 = vpack.c.b16 %v2269, %v2268
    %v2302 = vpack.c.b16 %v2271, %v2270
    %v2303 = vpack.c.b16 %v2273, %v2272
    %v2304 = vpack.c.b16 %v2275, %v2274
    %v2305 = vpack.c.b16 %v2277, %v2276
    %v2306 = vpack.c.b16 %v2279, %v2278
    %v2307 = vpack.c.b16 %v2281, %v2280
    %v2308 = vpack.c.b16 %v2283, %v2282
    %v2309 = vpack.c.b16 %v2285, %v2284
    %2334 = vmatprep.subr.bf16.mxu0 0
    %2335 = vmatpush1.bf16.msra.mxu0 %v2293
    %2336 = vmatprep.subr.bf16.mxu0 0
    %2337 = vmatpush1.bf16.msra.mxu0 %v2292
    %2338 = vmatprep.subr.bf16.mxu0 0
    %2339 = vmatpush1.bf16.msra.mxu0 %v2291
    %2340 = vmatprep.subr.bf16.mxu0 0
    %2341 = vmatpush1.bf16.msra.mxu0 %v2290
    %2342 = vmatprep.subr.bf16.mxu0 0
    %2343 = vmatpush1.bf16.msra.mxu0 %v2289
    %2344 = vmatprep.subr.bf16.mxu0 0
    %2345 = vmatpush1.bf16.msra.mxu0 %v2288
    %2346 = vmatprep.subr.bf16.mxu0 0
    %2347 = vmatpush1.bf16.msra.mxu0 %v2287
    %2348 = vmatprep.subr.bf16.mxu0 0
    %2349 = vmatpush1.bf16.msra.mxu0 %v2286
    %2350 = vmatprep.subr.bf16.mxu0 0
    %2351 = vmatpush2.bf16.msra.mxu0 %v2301
    %2352 = vmatprep.subr.bf16.mxu0 0
    %2353 = vmatpush2.bf16.msra.mxu0 %v2300
    %2354 = vmatprep.subr.bf16.mxu0 0
    %2355 = vmatpush2.bf16.msra.mxu0 %v2299
    %2356 = vmatprep.subr.bf16.mxu0 0
    %2357 = vmatpush2.bf16.msra.mxu0 %v2298
    %2358 = vmatprep.subr.bf16.mxu0 0
    %2359 = vmatpush2.bf16.msra.mxu0 %v2297
    %2360 = vmatprep.subr.bf16.mxu0 0
    %2361 = vmatpush2.bf16.msra.mxu0 %v2296
    %2362 = vmatprep.subr.bf16.mxu0 0
    %2363 = vmatpush2.bf16.msra.mxu0 %v2295
    %2364 = vmatprep.subr.bf16.mxu0 0
    %2365 = vmatpush2.bf16.msra.mxu0 %v2294
    %2366 = vmatprep.mubr.bf16.mxu0 %v1913
    %2367 = vmatmul.mubr.bf16.gmra.mxu0 %v1778
    %v2368 = vpop.f32.mrf.mxu0
    %v2369 = vadd.f32 %v2189, %v2368
    %v2370 = vpop.f32.mrf.mxu0
    %v2371 = vpop.f32.mrf.mxu0
    %v2372 = vadd.f32 %v2189, %v2371
    %v2373 = vpop.f32.mrf.mxu0
    %2374 = vdwg.mxu0
    %2375 = vmatprep.subr.bf16.mxu0 0
    %2376 = vmatpush1.bf16.msra.mxu0 %v2309
    %2377 = vmatprep.subr.bf16.mxu0 0
    %2378 = vmatpush1.bf16.msra.mxu0 %v2308
    %2379 = vmatprep.subr.bf16.mxu0 0
    %2380 = vmatpush1.bf16.msra.mxu0 %v2307
    %2381 = vmatprep.subr.bf16.mxu0 0
    %2382 = vmatpush1.bf16.msra.mxu0 %v2306
    %2383 = vmatprep.subr.bf16.mxu0 0
    %2384 = vmatpush1.bf16.msra.mxu0 %v2305
    %2385 = vmatprep.subr.bf16.mxu0 0
    %2386 = vmatpush1.bf16.msra.mxu0 %v2304
    %2387 = vmatprep.subr.bf16.mxu0 0
    %2388 = vmatpush1.bf16.msra.mxu0 %v2303
    %2389 = vmatprep.subr.bf16.mxu0 0
    %2390 = vmatpush1.bf16.msra.mxu0 %v2302
    %2391 = vmatprep.subr.bf16.mxu0 0
    %2392 = vmatpush2.bf16.msra.mxu0 0
    %2393 = vmatprep.subr.bf16.mxu0 0
    %2394 = vmatpush2.bf16.msra.mxu0 0
    %2395 = vmatprep.subr.bf16.mxu0 0
    %2396 = vmatpush2.bf16.msra.mxu0 0
    %2397 = vmatprep.subr.bf16.mxu0 0
    %2398 = vmatpush2.bf16.msra.mxu0 0
    %2399 = vmatprep.subr.bf16.mxu0 0
    %2400 = vmatpush2.bf16.msra.mxu0 0
    %2401 = vmatprep.subr.bf16.mxu0 0
    %2402 = vmatpush2.bf16.msra.mxu0 0
    %2403 = vmatprep.subr.bf16.mxu0 0
    %2404 = vmatpush2.bf16.msra.mxu0 0
    %2405 = vmatprep.subr.bf16.mxu0 0
    %2406 = vmatpush2.bf16.msra.mxu0 0
    %2407 = vmatprep.mubr.bf16.mxu0 0
    %2408 = vmatmul.mubr.bf16.gmra.mxu0 %v1914
    %v2409 = vpop.f32.mrf.mxu0
    %v2410 = vadd.f32 %v2369, %v2409
    %v2411 = vpop.f32.mrf.mxu0
    %v2412 = vpop.f32.mrf.mxu0
    %v2413 = vadd.f32 %v2372, %v2412
    %v2414 = vpop.f32.mrf.mxu0
    %2415 = vdwg.mxu0
    %vm2416 = vcmp.lt.s32.totalorder %v1941, 6
    %vm2417 = vcmp.lt.s32.totalorder %v1942, 6
    %v2418 = vmax.f32 %v2410, 0.0
    %v2419 = vmax.f32 %v2413, 0.0
    %v2420 = vsel %vm2416, 1, 0
    %v2421 = vsel %vm2417, 1, 0
    %vm2422 = vcmp.eq.s32.totalorder %v2420, 1
    %vm2423 = vcmp.eq.s32.totalorder %v2421, 1
    %v2424 = vsel %vm2422, %v2418, 0.0
    %v2425 = vsel %vm2423, %v2419, 0.0
    %v2426 = vrot.slane %v2424, 4
    %v2427 = vmax.f32 %v2424, %v2426
    %v2428 = vrot.slane %v2427, 2
    %v2429 = vmax.f32 %v2427, %v2428
    %v2430 = vrot.slane %v2429, 1
    %v2431 = vmax.f32 %v2429, %v2430
    %v2432 = vrot.slane %v2425, 4
    %v2433 = vmax.f32 %v2425, %v2432
    %v2434 = vrot.slane %v2433, 2
    %v2435 = vmax.f32 %v2433, %v2434
    %v2436 = vrot.slane %v2435, 1
    %v2437 = vmax.f32 %v2435, %v2436
    %v2438 = vld [vmem:[#allocation2 + $0x140] sm:$0xf]
    %v2439 = vld [vmem:[#allocation2 + $0x144] sm:$0xf]
    %v2440 = vld [vmem:[#allocation2 + $0x148] sm:$0xf]
    %v2441 = vld [vmem:[#allocation2 + $0x14c] sm:$0xf]
    %v2442 = vld [vmem:[#allocation2 + $0x150] sm:$0xf]
    %v2443 = vld [vmem:[#allocation2 + $0x154] sm:$0xf]
    %v2444 = vld [vmem:[#allocation2 + $0x158] sm:$0xf]
    %v2445 = vld [vmem:[#allocation2 + $0x15c] sm:$0xf]
    %v2446 = vld [vmem:[#allocation2 + $0x160] sm:$0xf]
    %v2447 = vld [vmem:[#allocation2 + $0x164] sm:$0xf]
    %v2448 = vld [vmem:[#allocation2 + $0x168] sm:$0xf]
    %v2449 = vld [vmem:[#allocation2 + $0x16c] sm:$0xf]
    %v2450 = vld [vmem:[#allocation2 + $0x170] sm:$0xf]
    %v2451 = vld [vmem:[#allocation2 + $0x174] sm:$0xf]
    %v2452 = vld [vmem:[#allocation2 + $0x178] sm:$0xf]
    %v2453 = vld [vmem:[#allocation2 + $0x17c] sm:$0xf]
    %v2454 = vld [vmem:[#allocation2 + $0x180] sm:$0xf]
    %v2455 = vld [vmem:[#allocation2 + $0x184] sm:$0xf]
    %v2456 = vld [vmem:[#allocation2 + $0x188] sm:$0xf]
    %v2457 = vld [vmem:[#allocation2 + $0x18c] sm:$0xf]
    %v2458 = vld [vmem:[#allocation2 + $0x190] sm:$0xf]
    %v2459 = vld [vmem:[#allocation2 + $0x194] sm:$0xf]
    %v2460 = vld [vmem:[#allocation2 + $0x198] sm:$0xf]
    %v2461 = vld [vmem:[#allocation2 + $0x19c] sm:$0xf]
    %v2462 = vld [vmem:[#allocation2 + $0x1a0] sm:$0xf]
    %v2463 = vld [vmem:[#allocation2 + $0x1a4] sm:$0xf]
    %v2464 = vld [vmem:[#allocation2 + $0x1a8] sm:$0xf]
    %v2465 = vld [vmem:[#allocation2 + $0x1ac] sm:$0xf]
    %v2466 = vld [vmem:[#allocation2 + $0x1b0] sm:$0xf]
    %v2467 = vld [vmem:[#allocation2 + $0x1b4] sm:$0xf]
    %v2468 = vld [vmem:[#allocation2 + $0x1b8] sm:$0xf]
    %v2469 = vld [vmem:[#allocation2 + $0x1bc] sm:$0xf]
    %v2470 = vld [vmem:[#allocation2 + $0x1c0] sm:$0xf]
    %v2471 = vld [vmem:[#allocation2 + $0x1c4] sm:$0xf]
    %v2472 = vld [vmem:[#allocation2 + $0x1c8] sm:$0xf]
    %v2473 = vld [vmem:[#allocation2 + $0x1cc] sm:$0xf]
    %v2474 = vld [vmem:[#allocation2 + $0x1d0] sm:$0xf]
    %v2475 = vld [vmem:[#allocation2 + $0x1d4] sm:$0xf]
    %v2476 = vld [vmem:[#allocation2 + $0x1d8] sm:$0xf]
    %v2477 = vld [vmem:[#allocation2 + $0x1dc] sm:$0xf]
    %v2478 = vld [vmem:[#allocation2 + $0x1e0] sm:$0xf]
    %v2479 = vld [vmem:[#allocation2 + $0x1e4] sm:$0xf]
    %v2480 = vld [vmem:[#allocation2 + $0x1e8] sm:$0xf]
    %v2481 = vld [vmem:[#allocation2 + $0x1ec] sm:$0xf]
    %v2482 = vld [vmem:[#allocation2 + $0x1f0] sm:$0xf]
    %v2483 = vld [vmem:[#allocation2 + $0x1f4] sm:$0xf]
    %v2484 = vld [vmem:[#allocation2 + $0x1f8] sm:$0xf]
    %v2485 = vld [vmem:[#allocation2 + $0x1fc] sm:$0xf]
    %v2486 = vld [vmem:[#allocation2 + $0x200] sm:$0xf]
    %v2487 = vld [vmem:[#allocation2 + $0x204] sm:$0xf]
    %v2488 = vld [vmem:[#allocation2 + $0x208] sm:$0xf]
    %v2489 = vld [vmem:[#allocation2 + $0x20c] sm:$0xf]
    %v2490 = vld [vmem:[#allocation2 + $0x210] sm:$0xf]
    %v2491 = vld [vmem:[#allocation2 + $0x214] sm:$0xf]
    %v2492 = vld [vmem:[#allocation2 + $0x218] sm:$0xf]
    %v2493 = vld [vmem:[#allocation2 + $0x21c] sm:$0xf]
    %v2494 = vld [vmem:[#allocation2 + $0x220] sm:$0xf]
    %v2495 = vld [vmem:[#allocation2 + $0x224] sm:$0xf]
    %v2496 = vld [vmem:[#allocation2 + $0x228] sm:$0xf]
    %v2497 = vld [vmem:[#allocation2 + $0x22c] sm:$0xf]
    %v2498 = vld [vmem:[#allocation2 + $0x230] sm:$0xf]
    %v2499 = vld [vmem:[#allocation2 + $0x234] sm:$0xf]
    %v2500 = vld [vmem:[#allocation2 + $0x238] sm:$0xf]
    %v2501 = vld [vmem:[#allocation2 + $0x23c] sm:$0xf]
    %v2502 = vlaneseq
    %v2503 = vshrl.u32 %v2502, 7
    %v2504 = vsub.s32 3, %v2503
    %v2505 = vrot.slane %v1886, %v2504
    %v2570 = vunpack.c.l.b16 %v2438
    %v2571 = vunpack.c.l.b16 %v2439
    %v2572 = vunpack.c.l.b16 %v2440
    %v2573 = vunpack.c.l.b16 %v2441
    %v2574 = vunpack.c.l.b16 %v2442
    %v2575 = vunpack.c.l.b16 %v2443
    %v2576 = vunpack.c.l.b16 %v2444
    %v2577 = vunpack.c.l.b16 %v2445
    %v2578 = vunpack.c.l.b16 %v2446
    %v2579 = vunpack.c.l.b16 %v2447
    %v2580 = vunpack.c.l.b16 %v2448
    %v2581 = vunpack.c.l.b16 %v2449
    %v2582 = vunpack.c.l.b16 %v2450
    %v2583 = vunpack.c.l.b16 %v2451
    %v2584 = vunpack.c.l.b16 %v2452
    %v2585 = vunpack.c.l.b16 %v2453
    %v2586 = vunpack.c.l.b16 %v2454
    %v2587 = vunpack.c.l.b16 %v2455
    %v2588 = vunpack.c.l.b16 %v2456
    %v2589 = vunpack.c.l.b16 %v2457
    %v2590 = vunpack.c.l.b16 %v2458
    %v2591 = vunpack.c.l.b16 %v2459
    %v2592 = vunpack.c.l.b16 %v2460
    %v2593 = vunpack.c.l.b16 %v2461
    %v2594 = vunpack.c.l.b16 %v2462
    %v2595 = vunpack.c.l.b16 %v2463
    %v2596 = vunpack.c.l.b16 %v2464
    %v2597 = vunpack.c.l.b16 %v2465
    %v2598 = vunpack.c.l.b16 %v2466
    %v2599 = vunpack.c.l.b16 %v2467
    %v2600 = vunpack.c.l.b16 %v2468
    %v2601 = vunpack.c.l.b16 %v2469
    %v2602 = vunpack.c.l.b16 %v2470
    %v2603 = vunpack.c.l.b16 %v2471
    %v2604 = vunpack.c.l.b16 %v2472
    %v2605 = vunpack.c.l.b16 %v2473
    %v2606 = vunpack.c.l.b16 %v2474
    %v2607 = vunpack.c.l.b16 %v2475
    %v2608 = vunpack.c.l.b16 %v2476
    %v2609 = vunpack.c.l.b16 %v2477
    %v2610 = vunpack.c.l.b16 %v2478
    %v2611 = vunpack.c.l.b16 %v2479
    %v2612 = vunpack.c.l.b16 %v2480
    %v2613 = vunpack.c.l.b16 %v2481
    %v2614 = vunpack.c.l.b16 %v2482
    %v2615 = vunpack.c.l.b16 %v2483
    %v2616 = vunpack.c.l.b16 %v2484
    %v2617 = vunpack.c.l.b16 %v2485
    %v2618 = vunpack.c.l.b16 %v2486
    %v2619 = vunpack.c.l.b16 %v2487
    %v2620 = vunpack.c.l.b16 %v2488
    %v2621 = vunpack.c.l.b16 %v2489
    %v2622 = vunpack.c.l.b16 %v2490
    %v2623 = vunpack.c.l.b16 %v2491
    %v2624 = vunpack.c.l.b16 %v2492
    %v2625 = vunpack.c.l.b16 %v2493
    %v2626 = vunpack.c.l.b16 %v2494
    %v2627 = vunpack.c.l.b16 %v2495
    %v2628 = vunpack.c.l.b16 %v2496
    %v2629 = vunpack.c.l.b16 %v2497
    %v2630 = vunpack.c.l.b16 %v2498
    %v2631 = vunpack.c.l.b16 %v2499
    %v2632 = vunpack.c.l.b16 %v2500
    %v2633 = vunpack.c.l.b16 %v2501
    %v2634 = vpack.c.b16 %v2571, %v2570
    %v2635 = vpack.c.b16 %v2573, %v2572
    %v2636 = vpack.c.b16 %v2575, %v2574
    %v2637 = vpack.c.b16 %v2577, %v2576
    %v2638 = vpack.c.b16 %v2579, %v2578
    %v2639 = vpack.c.b16 %v2581, %v2580
    %v2640 = vpack.c.b16 %v2583, %v2582
    %v2641 = vpack.c.b16 %v2585, %v2584
    %v2642 = vpack.c.b16 %v2587, %v2586
    %v2643 = vpack.c.b16 %v2589, %v2588
    %v2644 = vpack.c.b16 %v2591, %v2590
    %v2645 = vpack.c.b16 %v2593, %v2592
    %v2646 = vpack.c.b16 %v2595, %v2594
    %v2647 = vpack.c.b16 %v2597, %v2596
    %v2648 = vpack.c.b16 %v2599, %v2598
    %v2649 = vpack.c.b16 %v2601, %v2600
    %v2650 = vpack.c.b16 %v2603, %v2602
    %v2651 = vpack.c.b16 %v2605, %v2604
    %v2652 = vpack.c.b16 %v2607, %v2606
    %v2653 = vpack.c.b16 %v2609, %v2608
    %v2654 = vpack.c.b16 %v2611, %v2610
    %v2655 = vpack.c.b16 %v2613, %v2612
    %v2656 = vpack.c.b16 %v2615, %v2614
    %v2657 = vpack.c.b16 %v2617, %v2616
    %v2658 = vpack.c.b16 %v2619, %v2618
    %v2659 = vpack.c.b16 %v2621, %v2620
    %v2660 = vpack.c.b16 %v2623, %v2622
    %v2661 = vpack.c.b16 %v2625, %v2624
    %v2662 = vpack.c.b16 %v2627, %v2626
    %v2663 = vpack.c.b16 %v2629, %v2628
    %v2664 = vpack.c.b16 %v2631, %v2630
    %v2665 = vpack.c.b16 %v2633, %v2632
    %2698 = vmatprep.subr.bf16.mxu0 0
    %2699 = vmatpush1.bf16.msra.mxu0 %v2641
    %2700 = vmatprep.subr.bf16.mxu0 0
    %2701 = vmatpush1.bf16.msra.mxu0 %v2640
    %2702 = vmatprep.subr.bf16.mxu0 0
    %2703 = vmatpush1.bf16.msra.mxu0 %v2639
    %2704 = vmatprep.subr.bf16.mxu0 0
    %2705 = vmatpush1.bf16.msra.mxu0 %v2638
    %2706 = vmatprep.subr.bf16.mxu0 0
    %2707 = vmatpush1.bf16.msra.mxu0 %v2637
    %2708 = vmatprep.subr.bf16.mxu0 0
    %2709 = vmatpush1.bf16.msra.mxu0 %v2636
    %2710 = vmatprep.subr.bf16.mxu0 0
    %2711 = vmatpush1.bf16.msra.mxu0 %v2635
    %2712 = vmatprep.subr.bf16.mxu0 0
    %2713 = vmatpush1.bf16.msra.mxu0 %v2634
    %2714 = vmatprep.subr.bf16.mxu0 0
    %2715 = vmatpush2.bf16.msra.mxu0 %v2649
    %2716 = vmatprep.subr.bf16.mxu0 0
    %2717 = vmatpush2.bf16.msra.mxu0 %v2648
    %2718 = vmatprep.subr.bf16.mxu0 0
    %2719 = vmatpush2.bf16.msra.mxu0 %v2647
    %2720 = vmatprep.subr.bf16.mxu0 0
    %2721 = vmatpush2.bf16.msra.mxu0 %v2646
    %2722 = vmatprep.subr.bf16.mxu0 0
    %2723 = vmatpush2.bf16.msra.mxu0 %v2645
    %2724 = vmatprep.subr.bf16.mxu0 0
    %2725 = vmatpush2.bf16.msra.mxu0 %v2644
    %2726 = vmatprep.subr.bf16.mxu0 0
    %2727 = vmatpush2.bf16.msra.mxu0 %v2643
    %2728 = vmatprep.subr.bf16.mxu0 0
    %2729 = vmatpush2.bf16.msra.mxu0 %v2642
    %2730 = vmatprep.mubr.bf16.mxu0 %v1913
    %2731 = vmatmul.mubr.bf16.gmra.mxu0 %v1778
    %v2732 = vpop.f32.mrf.mxu0
    %v2733 = vadd.f32 %v2505, %v2732
    %v2734 = vpop.f32.mrf.mxu0
    %v2735 = vpop.f32.mrf.mxu0
    %v2736 = vadd.f32 %v2505, %v2735
    %v2737 = vpop.f32.mrf.mxu0
    %2738 = vdwg.mxu0
    %2739 = vmatprep.subr.bf16.mxu0 0
    %2740 = vmatpush1.bf16.msra.mxu0 %v2657
    %2741 = vmatprep.subr.bf16.mxu0 0
    %2742 = vmatpush1.bf16.msra.mxu0 %v2656
    %2743 = vmatprep.subr.bf16.mxu0 0
    %2744 = vmatpush1.bf16.msra.mxu0 %v2655
    %2745 = vmatprep.subr.bf16.mxu0 0
    %2746 = vmatpush1.bf16.msra.mxu0 %v2654
    %2747 = vmatprep.subr.bf16.mxu0 0
    %2748 = vmatpush1.bf16.msra.mxu0 %v2653
    %2749 = vmatprep.subr.bf16.mxu0 0
    %2750 = vmatpush1.bf16.msra.mxu0 %v2652
    %2751 = vmatprep.subr.bf16.mxu0 0
    %2752 = vmatpush1.bf16.msra.mxu0 %v2651
    %2753 = vmatprep.subr.bf16.mxu0 0
    %2754 = vmatpush1.bf16.msra.mxu0 %v2650
    %2755 = vmatprep.subr.bf16.mxu0 0
    %2756 = vmatpush2.bf16.msra.mxu0 %v2665
    %2757 = vmatprep.subr.bf16.mxu0 0
    %2758 = vmatpush2.bf16.msra.mxu0 %v2664
    %2759 = vmatprep.subr.bf16.mxu0 0
    %2760 = vmatpush2.bf16.msra.mxu0 %v2663
    %2761 = vmatprep.subr.bf16.mxu0 0
    %2762 = vmatpush2.bf16.msra.mxu0 %v2662
    %2763 = vmatprep.subr.bf16.mxu0 0
    %2764 = vmatpush2.bf16.msra.mxu0 %v2661
    %2765 = vmatprep.subr.bf16.mxu0 0
    %2766 = vmatpush2.bf16.msra.mxu0 %v2660
    %2767 = vmatprep.subr.bf16.mxu0 0
    %2768 = vmatpush2.bf16.msra.mxu0 %v2659
    %2769 = vmatprep.subr.bf16.mxu0 0
    %2770 = vmatpush2.bf16.msra.mxu0 %v2658
    %2771 = vmatprep.mubr.bf16.mxu0 %v1915
    %2772 = vmatmul.mubr.bf16.gmra.mxu0 %v1914
    %v2773 = vpop.f32.mrf.mxu0
    %v2774 = vadd.f32 %v2733, %v2773
    %v2775 = vpop.f32.mrf.mxu0
    %v2776 = vpop.f32.mrf.mxu0
    %v2777 = vadd.f32 %v2736, %v2776
    %v2778 = vpop.f32.mrf.mxu0
    %2779 = vdwg.mxu0
    %vm2780 = vcmp.lt.s32.totalorder %v1941, 5
    %vm2781 = vcmp.lt.s32.totalorder %v1942, 5
    %v2782 = vmax.f32 %v2774, 0.0
    %v2783 = vmax.f32 %v2777, 0.0
    %v2784 = vsel %vm2780, 1, 0
    %v2785 = vsel %vm2781, 1, 0
    %vm2786 = vcmp.eq.s32.totalorder %v2784, 1
    %vm2787 = vcmp.eq.s32.totalorder %v2785, 1
    %v2788 = vsel %vm2786, %v2782, 0.0
    %v2789 = vsel %vm2787, %v2783, 0.0
    %v2790 = vrot.slane %v2788, 4
    %v2791 = vmax.f32 %v2788, %v2790
    %v2792 = vrot.slane %v2791, 2
    %v2793 = vmax.f32 %v2791, %v2792
    %v2794 = vrot.slane %v2793, 1
    %v2795 = vmax.f32 %v2793, %v2794
    %v2796 = vrot.slane %v2789, 4
    %v2797 = vmax.f32 %v2789, %v2796
    %v2798 = vrot.slane %v2797, 2
    %v2799 = vmax.f32 %v2797, %v2798
    %v2800 = vrot.slane %v2799, 1
    %v2801 = vmax.f32 %v2799, %v2800
    %vm2804 = vcmask 1041409
    %v2805 = vsel %vm2804, %v2137, %v2131
    %v2809 = vsel %vm2804, %v2437, %v2431
    %v2813 = vsel %vm2804, %v2801, %v2795
    %v2815 = vld [vmem:[#allocation2 + $0x290] sm:$0xf]
    %v2816 = vld [vmem:[#allocation2 + $0x294] sm:$0xf]
    %v2817 = vld [vmem:[#allocation2 + $0x298] sm:$0xf]
    %v2818 = vld [vmem:[#allocation2 + $0x29c] sm:$0xf]
    %v2819 = vld [vmem:[#allocation2 + $0x2a0] sm:$0xf]
    %v2820 = vld [vmem:[#allocation2 + $0x2a4] sm:$0xf]
    %v2821 = vld [vmem:[#allocation2 + $0x2a8] sm:$0xf]
    %v2822 = vld [vmem:[#allocation2 + $0x2ac] sm:$0xf]
    %v2823 = vld [vmem:[#allocation2 + $0x2b0] sm:$0xf]
    %v2824 = vld [vmem:[#allocation2 + $0x2b4] sm:$0xf]
    %v2825 = vld [vmem:[#allocation2 + $0x2b8] sm:$0xf]
    %v2826 = vld [vmem:[#allocation2 + $0x2bc] sm:$0xf]
    %v2827 = vld [vmem:[#allocation2 + $0x2c0] sm:$0xf]
    %v2828 = vld [vmem:[#allocation2 + $0x2c4] sm:$0xf]
    %v2829 = vld [vmem:[#allocation2 + $0x2c8] sm:$0xf]
    %v2830 = vld [vmem:[#allocation2 + $0x2cc] sm:$0xf]
    %v2831 = vld [vmem:[#allocation2 + $0x2d0] sm:$0xf]
    %v2832 = vld [vmem:[#allocation2 + $0x2d4] sm:$0xf]
    %v2833 = vld [vmem:[#allocation2 + $0x2d8] sm:$0xf]
    %v2834 = vld [vmem:[#allocation2 + $0x2dc] sm:$0xf]
    %v2835 = vld [vmem:[#allocation2 + $0x2e0] sm:$0xf]
    %v2836 = vld [vmem:[#allocation2 + $0x2e4] sm:$0xf]
    %v2837 = vld [vmem:[#allocation2 + $0x2e8] sm:$0xf]
    %v2838 = vld [vmem:[#allocation2 + $0x2ec] sm:$0xf]
    %v2839 = vld [vmem:[#allocation2 + $0x2f0] sm:$0xf]
    %v2840 = vld [vmem:[#allocation2 + $0x2f4] sm:$0xf]
    %v2841 = vld [vmem:[#allocation2 + $0x2f8] sm:$0xf]
    %v2842 = vld [vmem:[#allocation2 + $0x2fc] sm:$0xf]
    %v2843 = vld [vmem:[#allocation2 + $0x300] sm:$0xf]
    %v2844 = vld [vmem:[#allocation2 + $0x304] sm:$0xf]
    %v2845 = vld [vmem:[#allocation2 + $0x308] sm:$0xf]
    %v2846 = vld [vmem:[#allocation2 + $0x30c] sm:$0xf]
    %v2847 = vld [vmem:[#allocation2 + $0x310] sm:$0xf]
    %v2848 = vld [vmem:[#allocation2 + $0x314] sm:$0xf]
    %v2849 = vld [vmem:[#allocation2 + $0x318] sm:$0xf]
    %v2850 = vld [vmem:[#allocation2 + $0x31c] sm:$0xf]
    %v2851 = vld [vmem:[#allocation2 + $0x320] sm:$0xf]
    %v2852 = vld [vmem:[#allocation2 + $0x324] sm:$0xf]
    %v2853 = vld [vmem:[#allocation2 + $0x328] sm:$0xf]
    %v2854 = vld [vmem:[#allocation2 + $0x32c] sm:$0xf]
    %v2855 = vld [vmem:[#allocation2 + $0x330] sm:$0xf]
    %v2856 = vld [vmem:[#allocation2 + $0x334] sm:$0xf]
    %v2857 = vld [vmem:[#allocation2 + $0x338] sm:$0xf]
    %v2858 = vld [vmem:[#allocation2 + $0x33c] sm:$0xf]
    %v2859 = vld [vmem:[#allocation2 + $0x340] sm:$0xf]
    %v2860 = vld [vmem:[#allocation2 + $0x344] sm:$0xf]
    %v2861 = vld [vmem:[#allocation2 + $0x348] sm:$0xf]
    %v2862 = vld [vmem:[#allocation2 + $0x34c] sm:$0xf]
    %v2863 = vpack.c.bf16 %v2805, %v2805
    %v2864 = vpack.c.bf16 %v2809, %v2809
    %v2865 = vpack.c.bf16 %v2813, %v2813
    %v2914 = vunpack.c.l.b16 %v2815
    %v2915 = vunpack.c.l.b16 %v2816
    %v2916 = vunpack.c.l.b16 %v2817
    %v2917 = vunpack.c.l.b16 %v2818
    %v2918 = vunpack.c.l.b16 %v2819
    %v2919 = vunpack.c.l.b16 %v2820
    %v2920 = vunpack.c.l.b16 %v2821
    %v2921 = vunpack.c.l.b16 %v2822
    %v2922 = vunpack.c.l.b16 %v2823
    %v2923 = vunpack.c.l.b16 %v2824
    %v2924 = vunpack.c.l.b16 %v2825
    %v2925 = vunpack.c.l.b16 %v2826
    %v2926 = vunpack.c.l.b16 %v2827
    %v2927 = vunpack.c.l.b16 %v2828
    %v2928 = vunpack.c.l.b16 %v2829
    %v2929 = vunpack.c.l.b16 %v2830
    %v2930 = vunpack.c.l.b16 %v2831
    %v2931 = vunpack.c.l.b16 %v2832
    %v2932 = vunpack.c.l.b16 %v2833
    %v2933 = vunpack.c.l.b16 %v2834
    %v2934 = vunpack.c.l.b16 %v2835
    %v2935 = vunpack.c.l.b16 %v2836
    %v2936 = vunpack.c.l.b16 %v2837
    %v2937 = vunpack.c.l.b16 %v2838
    %v2938 = vunpack.c.l.b16 %v2839
    %v2939 = vunpack.c.l.b16 %v2840
    %v2940 = vunpack.c.l.b16 %v2841
    %v2941 = vunpack.c.l.b16 %v2842
    %v2942 = vunpack.c.l.b16 %v2843
    %v2943 = vunpack.c.l.b16 %v2844
    %v2944 = vunpack.c.l.b16 %v2845
    %v2945 = vunpack.c.l.b16 %v2846
    %v2946 = vunpack.c.l.b16 %v2847
    %v2947 = vunpack.c.l.b16 %v2848
    %v2948 = vunpack.c.l.b16 %v2849
    %v2949 = vunpack.c.l.b16 %v2850
    %v2950 = vunpack.c.l.b16 %v2851
    %v2951 = vunpack.c.l.b16 %v2852
    %v2952 = vunpack.c.l.b16 %v2853
    %v2953 = vunpack.c.l.b16 %v2854
    %v2954 = vunpack.c.l.b16 %v2855
    %v2955 = vunpack.c.l.b16 %v2856
    %v2956 = vunpack.c.l.b16 %v2857
    %v2957 = vunpack.c.l.b16 %v2858
    %v2958 = vunpack.c.l.b16 %v2859
    %v2959 = vunpack.c.l.b16 %v2860
    %v2960 = vunpack.c.l.b16 %v2861
    %v2961 = vunpack.c.l.b16 %v2862
    %v2962 = vpack.c.b16 %v2915, %v2914
    %v2963 = vpack.c.b16 %v2917, %v2916
    %v2964 = vpack.c.b16 %v2919, %v2918
    %v2965 = vpack.c.b16 %v2921, %v2920
    %v2966 = vpack.c.b16 %v2923, %v2922
    %v2967 = vpack.c.b16 %v2925, %v2924
    %v2968 = vpack.c.b16 %v2927, %v2926
    %v2969 = vpack.c.b16 %v2929, %v2928
    %v2970 = vpack.c.b16 %v2931, %v2930
    %v2971 = vpack.c.b16 %v2933, %v2932
    %v2972 = vpack.c.b16 %v2935, %v2934
    %v2973 = vpack.c.b16 %v2937, %v2936
    %v2974 = vpack.c.b16 %v2939, %v2938
    %v2975 = vpack.c.b16 %v2941, %v2940
    %v2976 = vpack.c.b16 %v2943, %v2942
    %v2977 = vpack.c.b16 %v2945, %v2944
    %v2978 = vpack.c.b16 %v2947, %v2946
    %v2979 = vpack.c.b16 %v2949, %v2948
    %v2980 = vpack.c.b16 %v2951, %v2950
    %v2981 = vpack.c.b16 %v2953, %v2952
    %v2982 = vpack.c.b16 %v2955, %v2954
    %v2983 = vpack.c.b16 %v2957, %v2956
    %v2984 = vpack.c.b16 %v2959, %v2958
    %v2985 = vpack.c.b16 %v2961, %v2960
    %3010 = vmatprep.subr.bf16.mxu0 0
    %3011 = vmatpush1.bf16.msra.mxu0 %v2969
    %3012 = vmatprep.subr.bf16.mxu0 0
    %3013 = vmatpush1.bf16.msra.mxu0 %v2968
    %3014 = vmatprep.subr.bf16.mxu0 0
    %3015 = vmatpush1.bf16.msra.mxu0 %v2967
    %3016 = vmatprep.subr.bf16.mxu0 0
    %3017 = vmatpush1.bf16.msra.mxu0 %v2966
    %3018 = vmatprep.subr.bf16.mxu0 0
    %3019 = vmatpush1.bf16.msra.mxu0 %v2965
    %3020 = vmatprep.subr.bf16.mxu0 0
    %3021 = vmatpush1.bf16.msra.mxu0 %v2964
    %3022 = vmatprep.subr.bf16.mxu0 0
    %3023 = vmatpush1.bf16.msra.mxu0 %v2963
    %3024 = vmatprep.subr.bf16.mxu0 0
    %3025 = vmatpush1.bf16.msra.mxu0 %v2962
    %3026 = vmatprep.subr.bf16.mxu0 0
    %3027 = vmatpush2.bf16.msra.mxu0 %v2977
    %3028 = vmatprep.subr.bf16.mxu0 0
    %3029 = vmatpush2.bf16.msra.mxu0 %v2976
    %3030 = vmatprep.subr.bf16.mxu0 0
    %3031 = vmatpush2.bf16.msra.mxu0 %v2975
    %3032 = vmatprep.subr.bf16.mxu0 0
    %3033 = vmatpush2.bf16.msra.mxu0 %v2974
    %3034 = vmatprep.subr.bf16.mxu0 0
    %3035 = vmatpush2.bf16.msra.mxu0 %v2973
    %3036 = vmatprep.subr.bf16.mxu0 0
    %3037 = vmatpush2.bf16.msra.mxu0 %v2972
    %3038 = vmatprep.subr.bf16.mxu0 0
    %3039 = vmatpush2.bf16.msra.mxu0 %v2971
    %3040 = vmatprep.subr.bf16.mxu0 0
    %3041 = vmatpush2.bf16.msra.mxu0 %v2970
    %3042 = vmatprep.mubr.bf16.mxu0 %v2864
    %3043 = vmatmul.mubr.bf16.gmra.mxu0 %v2863
    %v3044 = vpop.f32.mrf.mxu0
    %v3045 = vadd.f32 0.0, %v3044
    %v3046 = vpop.f32.mrf.mxu0
    %v3047 = vpop.f32.mrf.mxu0
    %v3048 = vpop.f32.mrf.mxu0
    %3049 = vdwg.mxu0
    %3050 = vmatprep.subr.bf16.mxu0 0
    %3051 = vmatpush1.bf16.msra.mxu0 %v2985
    %3052 = vmatprep.subr.bf16.mxu0 0
    %3053 = vmatpush1.bf16.msra.mxu0 %v2984
    %3054 = vmatprep.subr.bf16.mxu0 0
    %3055 = vmatpush1.bf16.msra.mxu0 %v2983
    %3056 = vmatprep.subr.bf16.mxu0 0
    %3057 = vmatpush1.bf16.msra.mxu0 %v2982
    %3058 = vmatprep.subr.bf16.mxu0 0
    %3059 = vmatpush1.bf16.msra.mxu0 %v2981
    %3060 = vmatprep.subr.bf16.mxu0 0
    %3061 = vmatpush1.bf16.msra.mxu0 %v2980
    %3062 = vmatprep.subr.bf16.mxu0 0
    %3063 = vmatpush1.bf16.msra.mxu0 %v2979
    %3064 = vmatprep.subr.bf16.mxu0 0
    %3065 = vmatpush1.bf16.msra.mxu0 %v2978
    %3066 = vmatprep.subr.bf16.mxu0 0
    %3067 = vmatpush2.bf16.msra.mxu0 0
    %3068 = vmatprep.subr.bf16.mxu0 0
    %3069 = vmatpush2.bf16.msra.mxu0 0
    %3070 = vmatprep.subr.bf16.mxu0 0
    %3071 = vmatpush2.bf16.msra.mxu0 0
    %3072 = vmatprep.subr.bf16.mxu0 0
    %3073 = vmatpush2.bf16.msra.mxu0 0
    %3074 = vmatprep.subr.bf16.mxu0 0
    %3075 = vmatpush2.bf16.msra.mxu0 0
    %3076 = vmatprep.subr.bf16.mxu0 0
    %3077 = vmatpush2.bf16.msra.mxu0 0
    %3078 = vmatprep.subr.bf16.mxu0 0
    %3079 = vmatpush2.bf16.msra.mxu0 0
    %3080 = vmatprep.subr.bf16.mxu0 0
    %3081 = vmatpush2.bf16.msra.mxu0 0
    %3082 = vmatprep.mubr.bf16.mxu0 0
    %3083 = vmatmul.mubr.bf16.gmra.mxu0 %v2865
    %v3084 = vpop.f32.mrf.mxu0
    %v3085 = vadd.f32 %v3045, %v3084
    %v3086 = vpop.f32.mrf.mxu0
    %v3087 = vpop.f32.mrf.mxu0
    %v3088 = vpop.f32.mrf.mxu0
    %3089 = vdwg.mxu0
    %v3090 = vlaneseq
    %v3091 = vshrl.u32 %v3090, 7
    %v3092 = vsub.s32 4, %v3091
    %v3093 = vrot.slane %v1886, %v3092
    %v3094 = vadd.f32 %v3085, %v3093
    %v3095 = vld [vmem:[#allocation2 + $0x240] sm:$0xf]
    %v3096 = vld [vmem:[#allocation2 + $0x244] sm:$0xf]
    %v3097 = vld [vmem:[#allocation2 + $0x248] sm:$0xf]
    %v3098 = vld [vmem:[#allocation2 + $0x24c] sm:$0xf]
    %v3099 = vld [vmem:[#allocation2 + $0x250] sm:$0xf]
    %v3100 = vld [vmem:[#allocation2 + $0x254] sm:$0xf]
    %v3101 = vld [vmem:[#allocation2 + $0x258] sm:$0xf]
    %v3102 = vld [vmem:[#allocation2 + $0x25c] sm:$0xf]
    %v3103 = vld [vmem:[#allocation2 + $0x260] sm:$0xf]
    %v3104 = vld [vmem:[#allocation2 + $0x264] sm:$0xf]
    %v3105 = vld [vmem:[#allocation2 + $0x268] sm:$0xf]
    %v3106 = vld [vmem:[#allocation2 + $0x26c] sm:$0xf]
    %v3107 = vld [vmem:[#allocation2 + $0x270] sm:$0xf]
    %v3108 = vld [vmem:[#allocation2 + $0x274] sm:$0xf]
    %v3109 = vld [vmem:[#allocation2 + $0x278] sm:$0xf]
    %v3110 = vld [vmem:[#allocation2 + $0x27c] sm:$0xf]
    %v3111 = vld [vmem:[#allocation2 + $0x280] sm:$0xf]
    %v3112 = vld [vmem:[#allocation2 + $0x284] sm:$0xf]
    %v3113 = vld [vmem:[#allocation2 + $0x288] sm:$0xf]
    %v3114 = vld [vmem:[#allocation2 + $0x28c] sm:$0xf]
    %v3115 = vlaneseq
    %v3116 = vshrl.u32 %v3115, 7
    %v3117 = vsub.s32 0, %v3116
    %v3118 = vrot.slane %v1886, %v3117
    %v3135 = vunpack.c.l.b16 %v3095
    %v3136 = vunpack.c.l.b16 %v3096
    %v3137 = vunpack.c.l.b16 %v3097
    %v3138 = vunpack.c.l.b16 %v3098
    %v3139 = vunpack.c.l.b16 %v3099
    %v3140 = vunpack.c.l.b16 %v3100
    %v3141 = vunpack.c.l.b16 %v3101
    %v3142 = vunpack.c.l.b16 %v3102
    %v3143 = vunpack.c.l.b16 %v3103
    %v3144 = vunpack.c.l.b16 %v3104
    %v3145 = vunpack.c.l.b16 %v3105
    %v3146 = vunpack.c.l.b16 %v3106
    %v3147 = vunpack.c.l.b16 %v3107
    %v3148 = vunpack.c.l.b16 %v3108
    %v3149 = vunpack.c.l.b16 %v3109
    %v3150 = vunpack.c.l.b16 %v3110
    %v3151 = vpack.c.b16 %v3136, %v3135
    %v3152 = vpack.c.b16 %v3138, %v3137
    %v3153 = vpack.c.b16 %v3140, %v3139
    %v3154 = vpack.c.b16 %v3142, %v3141
    %v3155 = vpack.c.b16 %v3144, %v3143
    %v3156 = vpack.c.b16 %v3146, %v3145
    %v3157 = vpack.c.b16 %v3148, %v3147
    %v3158 = vpack.c.b16 %v3150, %v3149
    %3167 = vmatprep.subr.bf16.mxu0 0
    %3168 = vmatpush1.bf16.msra.mxu0 %v3158
    %3169 = vmatprep.subr.bf16.mxu0 0
    %3170 = vmatpush1.bf16.msra.mxu0 %v3157
    %3171 = vmatprep.subr.bf16.mxu0 0
    %3172 = vmatpush1.bf16.msra.mxu0 %v3156
    %3173 = vmatprep.subr.bf16.mxu0 0
    %3174 = vmatpush1.bf16.msra.mxu0 %v3155
    %3175 = vmatprep.subr.bf16.mxu0 0
    %3176 = vmatpush1.bf16.msra.mxu0 %v3154
    %3177 = vmatprep.subr.bf16.mxu0 0
    %3178 = vmatpush1.bf16.msra.mxu0 %v3153
    %3179 = vmatprep.subr.bf16.mxu0 0
    %3180 = vmatpush1.bf16.msra.mxu0 %v3152
    %3181 = vmatprep.subr.bf16.mxu0 0
    %3182 = vmatpush1.bf16.msra.mxu0 %v3151
    %3183 = vmatprep.subr.bf16.mxu0 0
    %3184 = vmatpush2.bf16.msra.mxu0 0
    %3185 = vmatprep.subr.bf16.mxu0 0
    %3186 = vmatpush2.bf16.msra.mxu0 0
    %3187 = vmatprep.subr.bf16.mxu0 0
    %3188 = vmatpush2.bf16.msra.mxu0 0
    %3189 = vmatprep.subr.bf16.mxu0 0
    %3190 = vmatpush2.bf16.msra.mxu0 0
    %3191 = vmatprep.subr.bf16.mxu0 0
    %3192 = vmatpush2.bf16.msra.mxu0 0
    %3193 = vmatprep.subr.bf16.mxu0 0
    %3194 = vmatpush2.bf16.msra.mxu0 0
    %3195 = vmatprep.subr.bf16.mxu0 0
    %3196 = vmatpush2.bf16.msra.mxu0 0
    %3197 = vmatprep.subr.bf16.mxu0 0
    %3198 = vmatpush2.bf16.msra.mxu0 0
    %3199 = vmatprep.mubr.bf16.mxu0 0
    %3200 = vmatmul.mubr.bf16.gmra.mxu0 %v1778
    %v3201 = vpop.f32.mrf.mxu0
    %v3202 = vadd.f32 %v3118, %v3201
    %v3203 = vpop.f32.mrf.mxu0
    %v3204 = vpop.f32.mrf.mxu0
    %v3205 = vadd.f32 %v3118, %v3204
    %v3206 = vpop.f32.mrf.mxu0
    %3207 = vdwg.mxu0
    %v3208 = vlaneseq
    %v3209 = vand.u32 %v3208, 127
    %vm3210 = vcmp.lt.s32.totalorder %v3209, 0
    %v3211 = vsub.s32 0, %v3209
    %v3212 = vsel %vm3210, %v3211, %v3209
    %v3213 = vshrl.u32 %v3212, 5
    %v3214 = vand.u32 %v3212, 31
    %v3215 = vsub.s32 0, %v3214
    %v3216 = vsel %vm3210, %v3215, %v3214
    %vm3217 = vcmp.ne.s32.totalorder %v3216, 0
    %vm3218 = vcmp.lt.s32.totalorder %v3216, 0
    %vm3219 = vmand %vm3218, %vm3217
    %v3220 = vadd.s32 %v3216, 32
    %v3221 = vsel %vm3219, %v3220, %v3216
    %vm3222 = vcmp.lt.s32.totalorder %v3221, 16
    %v3223 = vsel %vm3222, 1, 0
    %vm3224 = vcmp.eq.s32.totalorder %v3223, 1
    %v3227 = vrot.slane %v3205, 7
    %v3228 = vsel %vm2804, %v3227, %v3202
    %v3230 = vrot.slane %v3202, 7
    %v3231 = vrot.slane %v3205, 6
    %v3232 = vsel %vm2804, %v3231, %v3230
    %v3234 = vsel %vm3224, %v3228, %v3232
    %v3239 = vunpack.c.l.b16 %v3111
    %v3240 = vunpack.c.l.b16 %v3112
    %v3241 = vunpack.c.l.b16 %v3113
    %v3242 = vunpack.c.l.b16 %v3114
    %v3243 = vpack.c.b16 %v3240, %v3239
    %v3244 = vpack.c.b16 %v3242, %v3241
    %v3248 = vsel %vm464, 0, 0
    %3250 = vmatprep.subr.bf16.mxu0 0
    %3251 = vmatpush1.bf16.msra.mxu0 0
    %3252 = vmatprep.subr.bf16.mxu0 0
    %3253 = vmatpush1.bf16.msra.mxu0 0
    %3254 = vmatprep.subr.bf16.mxu0 0
    %3255 = vmatpush1.bf16.msra.mxu0 0
    %3256 = vmatprep.subr.bf16.mxu0 0
    %3257 = vmatpush1.bf16.msra.mxu0 0
    %3258 = vmatprep.subr.bf16.mxu0 0
    %3259 = vmatpush1.bf16.msra.mxu0 0
    %3260 = vmatprep.subr.bf16.mxu0 0
    %3261 = vmatpush1.bf16.msra.mxu0 0
    %3262 = vmatprep.subr.bf16.mxu0 0
    %3263 = vmatpush1.bf16.msra.mxu0 %v3244
    %3264 = vmatprep.subr.bf16.mxu0 0
    %3265 = vmatpush1.bf16.msra.mxu0 %v3243
    %3266 = vmatprep.subr.bf16.mxu0 0
    %3267 = vmatpush2.bf16.msra.mxu0 0
    %3268 = vmatprep.subr.bf16.mxu0 0
    %3269 = vmatpush2.bf16.msra.mxu0 0
    %3270 = vmatprep.subr.bf16.mxu0 0
    %3271 = vmatpush2.bf16.msra.mxu0 0
    %3272 = vmatprep.subr.bf16.mxu0 0
    %3273 = vmatpush2.bf16.msra.mxu0 0
    %3274 = vmatprep.subr.bf16.mxu0 0
    %3275 = vmatpush2.bf16.msra.mxu0 0
    %3276 = vmatprep.subr.bf16.mxu0 0
    %3277 = vmatpush2.bf16.msra.mxu0 0
    %3278 = vmatprep.subr.bf16.mxu0 0
    %3279 = vmatpush2.bf16.msra.mxu0 0
    %3280 = vmatprep.subr.bf16.mxu0 0
    %3281 = vmatpush2.bf16.msra.mxu0 0
    %3282 = vmatprep.mubr.bf16.mxu0 0
    %3283 = vmatmul.mubr.bf16.gmra.mxu0 %v3248
    %v3284 = vpop.f32.mrf.mxu0
    %v3285 = vadd.f32 0.0, %v3284
    %v3286 = vpop.f32.mrf.mxu0
    %v3287 = vpop.f32.mrf.mxu0
    %v3288 = vpop.f32.mrf.mxu0
    %3289 = vdwg.mxu0
    %v3290 = vadd.f32 %v3234, %v3285
    %v3291 = vxor.u32 %v3290, 2147483648
    %v3292 = vmul.f32 %v3291, 1.442695
    %v3293 = vpow.pop %v3292
    %v3294 = vadd.f32 %v3293, 1.0
    %v3295 = vrcp.pop %v3294
    %v3296 = vmul.f32 1.0, %v3295
    %v3297 = vtanh.pop %v3290
    %v3298 = vmul.f32 %v3296, 0.0
    %3300 = vrot.lane.b32.xlu0 %v3297, 32
    %v3301 = vpop.permute.xlu0 %3300
    %v3303 = vmul.f32 %v3296, %v3301
    %3305 = vrot.lane.b32.xlu0 %v3303, 32
    %v3306 = vpop.permute.xlu0 %3305
    %v3308 = vadd.f32 %v3298, %v3306
    %v3309 = vtanh.pop %v3308
    %3311 = vrot.lane.b32.xlu0 %v3309, 32
    %v3312 = vpop.permute.xlu0 %3311
    %v3314 = vmul.f32 %v3296, %v3312
    %v3315 = vrot.slane %v3202, 1
    %v3316 = vsel %vm2804, %v3205, %v3315
    %v3318 = vrot.slane %v3202, 6
    %v3319 = vrot.slane %v3205, 5
    %v3320 = vsel %vm2804, %v3319, %v3318
    %v3322 = vsel %vm3224, %v3316, %v3320
    %v3323 = vpack.c.bf16 %v3314, %v3314
    %3325 = vrot.lane.b32.xlu0 %v3323, 64
    %v3326 = vpop.permute.xlu0 %3325
    %v3328 = vsel %vm464, %v3326, 0
    %3330 = vmatprep.subr.bf16.mxu0 0
    %3331 = vmatpush1.bf16.msra.mxu0 0
    %3332 = vmatprep.subr.bf16.mxu0 0
    %3333 = vmatpush1.bf16.msra.mxu0 0
    %3334 = vmatprep.subr.bf16.mxu0 0
    %3335 = vmatpush1.bf16.msra.mxu0 0
    %3336 = vmatprep.subr.bf16.mxu0 0
    %3337 = vmatpush1.bf16.msra.mxu0 0
    %3338 = vmatprep.subr.bf16.mxu0 0
    %3339 = vmatpush1.bf16.msra.mxu0 0
    %3340 = vmatprep.subr.bf16.mxu0 0
    %3341 = vmatpush1.bf16.msra.mxu0 0
    %3342 = vmatprep.subr.bf16.mxu0 0
    %3343 = vmatpush1.bf16.msra.mxu0 %v3244
    %3344 = vmatprep.subr.bf16.mxu0 0
    %3345 = vmatpush1.bf16.msra.mxu0 %v3243
    %3346 = vmatprep.subr.bf16.mxu0 0
    %3347 = vmatpush2.bf16.msra.mxu0 0
    %3348 = vmatprep.subr.bf16.mxu0 0
    %3349 = vmatpush2.bf16.msra.mxu0 0
    %3350 = vmatprep.subr.bf16.mxu0 0
    %3351 = vmatpush2.bf16.msra.mxu0 0
    %3352 = vmatprep.subr.bf16.mxu0 0
    %3353 = vmatpush2.bf16.msra.mxu0 0
    %3354 = vmatprep.subr.bf16.mxu0 0
    %3355 = vmatpush2.bf16.msra.mxu0 0
    %3356 = vmatprep.subr.bf16.mxu0 0
    %3357 = vmatpush2.bf16.msra.mxu0 0
    %3358 = vmatprep.subr.bf16.mxu0 0
    %3359 = vmatpush2.bf16.msra.mxu0 0
    %3360 = vmatprep.subr.bf16.mxu0 0
    %3361 = vmatpush2.bf16.msra.mxu0 0
    %3362 = vmatprep.mubr.bf16.mxu0 0
    %3363 = vmatmul.mubr.bf16.gmra.mxu0 %v3328
    %v3364 = vpop.f32.mrf.mxu0
    %v3365 = vadd.f32 0.0, %v3364
    %v3366 = vpop.f32.mrf.mxu0
    %v3367 = vpop.f32.mrf.mxu0
    %v3368 = vpop.f32.mrf.mxu0
    %3369 = vdwg.mxu0
    %v3370 = vadd.f32 %v3322, %v3365
    %v3371 = vxor.u32 %v3370, 2147483648
    %v3372 = vmul.f32 %v3371, 1.442695
    %v3373 = vpow.pop %v3372
    %v3374 = vadd.f32 %v3373, 1.0
    %v3375 = vrcp.pop %v3374
    %v3376 = vmul.f32 1.0, %v3375
    %v3377 = vtanh.pop %v3370
    %v3378 = vmul.f32 %v3376, %v3308
    %3380 = vrot.lane.b32.xlu0 %v3377, 32
    %v3381 = vpop.permute.xlu0 %3380
    %v3383 = vmul.f32 %v3376, %v3381
    %3385 = vrot.lane.b32.xlu0 %v3383, 32
    %v3386 = vpop.permute.xlu0 %3385
    %v3388 = vadd.f32 %v3378, %v3386
    %v3389 = vtanh.pop %v3388
    %3391 = vrot.lane.b32.xlu0 %v3389, 32
    %v3392 = vpop.permute.xlu0 %3391
    %v3394 = vmul.f32 %v3376, %v3392
    %v3395 = vrot.slane %v3202, 2
    %v3396 = vrot.slane %v3205, 1
    %v3397 = vsel %vm2804, %v3396, %v3395
    %v3399 = vrot.slane %v3202, 5
    %v3400 = vrot.slane %v3205, 4
    %v3401 = vsel %vm2804, %v3400, %v3399
    %v3403 = vsel %vm3224, %v3397, %v3401
    %v3404 = vpack.c.bf16 %v3394, %v3394
    %3406 = vrot.lane.b32.xlu0 %v3404, 64
    %v3407 = vpop.permute.xlu0 %3406
    %v3409 = vsel %vm464, %v3407, 0
    %3411 = vmatprep.subr.bf16.mxu0 0
    %3412 = vmatpush1.bf16.msra.mxu0 0
    %3413 = vmatprep.subr.bf16.mxu0 0
    %3414 = vmatpush1.bf16.msra.mxu0 0
    %3415 = vmatprep.subr.bf16.mxu0 0
    %3416 = vmatpush1.bf16.msra.mxu0 0
    %3417 = vmatprep.subr.bf16.mxu0 0
    %3418 = vmatpush1.bf16.msra.mxu0 0
    %3419 = vmatprep.subr.bf16.mxu0 0
    %3420 = vmatpush1.bf16.msra.mxu0 0
    %3421 = vmatprep.subr.bf16.mxu0 0
    %3422 = vmatpush1.bf16.msra.mxu0 0
    %3423 = vmatprep.subr.bf16.mxu0 0
    %3424 = vmatpush1.bf16.msra.mxu0 %v3244
    %3425 = vmatprep.subr.bf16.mxu0 0
    %3426 = vmatpush1.bf16.msra.mxu0 %v3243
    %3427 = vmatprep.subr.bf16.mxu0 0
    %3428 = vmatpush2.bf16.msra.mxu0 0
    %3429 = vmatprep.subr.bf16.mxu0 0
    %3430 = vmatpush2.bf16.msra.mxu0 0
    %3431 = vmatprep.subr.bf16.mxu0 0
    %3432 = vmatpush2.bf16.msra.mxu0 0
    %3433 = vmatprep.subr.bf16.mxu0 0
    %3434 = vmatpush2.bf16.msra.mxu0 0
    %3435 = vmatprep.subr.bf16.mxu0 0
    %3436 = vmatpush2.bf16.msra.mxu0 0
    %3437 = vmatprep.subr.bf16.mxu0 0
    %3438 = vmatpush2.bf16.msra.mxu0 0
    %3439 = vmatprep.subr.bf16.mxu0 0
    %3440 = vmatpush2.bf16.msra.mxu0 0
    %3441 = vmatprep.subr.bf16.mxu0 0
    %3442 = vmatpush2.bf16.msra.mxu0 0
    %3443 = vmatprep.mubr.bf16.mxu0 0
    %3444 = vmatmul.mubr.bf16.gmra.mxu0 %v3409
    %v3445 = vpop.f32.mrf.mxu0
    %v3446 = vadd.f32 0.0, %v3445
    %v3447 = vpop.f32.mrf.mxu0
    %v3448 = vpop.f32.mrf.mxu0
    %v3449 = vpop.f32.mrf.mxu0
    %3450 = vdwg.mxu0
    %v3451 = vadd.f32 %v3403, %v3446
    %v3452 = vxor.u32 %v3451, 2147483648
    %v3453 = vmul.f32 %v3452, 1.442695
    %v3454 = vpow.pop %v3453
    %v3455 = vadd.f32 %v3454, 1.0
    %v3456 = vrcp.pop %v3455
    %v3457 = vmul.f32 1.0, %v3456
    %v3458 = vtanh.pop %v3451
    %v3459 = vmul.f32 %v3457, %v3388
    %3461 = vrot.lane.b32.xlu0 %v3458, 32
    %v3462 = vpop.permute.xlu0 %3461
    %v3464 = vmul.f32 %v3457, %v3462
    %3466 = vrot.lane.b32.xlu0 %v3464, 32
    %v3467 = vpop.permute.xlu0 %3466
    %v3469 = vadd.f32 %v3459, %v3467
    %v3470 = vtanh.pop %v3469
    %3472 = vrot.lane.b32.xlu0 %v3470, 32
    %v3473 = vpop.permute.xlu0 %3472
    %v3475 = vmul.f32 %v3457, %v3473
    %v3476 = vrot.slane %v3202, 3
    %v3477 = vrot.slane %v3205, 2
    %v3478 = vsel %vm2804, %v3477, %v3476
    %v3480 = vrot.slane %v3202, 4
    %v3481 = vrot.slane %v3205, 3
    %v3482 = vsel %vm2804, %v3481, %v3480
    %v3484 = vsel %vm3224, %v3478, %v3482
    %v3485 = vpack.c.bf16 %v3475, %v3475
    %3487 = vrot.lane.b32.xlu0 %v3485, 64
    %v3488 = vpop.permute.xlu0 %3487
    %v3490 = vsel %vm464, %v3488, 0
    %3492 = vmatprep.subr.bf16.mxu0 0
    %3493 = vmatpush1.bf16.msra.mxu0 0
    %3494 = vmatprep.subr.bf16.mxu0 0
    %3495 = vmatpush1.bf16.msra.mxu0 0
    %3496 = vmatprep.subr.bf16.mxu0 0
    %3497 = vmatpush1.bf16.msra.mxu0 0
    %3498 = vmatprep.subr.bf16.mxu0 0
    %3499 = vmatpush1.bf16.msra.mxu0 0
    %3500 = vmatprep.subr.bf16.mxu0 0
    %3501 = vmatpush1.bf16.msra.mxu0 0
    %3502 = vmatprep.subr.bf16.mxu0 0
    %3503 = vmatpush1.bf16.msra.mxu0 0
    %3504 = vmatprep.subr.bf16.mxu0 0
    %3505 = vmatpush1.bf16.msra.mxu0 %v3244
    %3506 = vmatprep.subr.bf16.mxu0 0
    %3507 = vmatpush1.bf16.msra.mxu0 %v3243
    %3508 = vmatprep.subr.bf16.mxu0 0
    %3509 = vmatpush2.bf16.msra.mxu0 0
    %3510 = vmatprep.subr.bf16.mxu0 0
    %3511 = vmatpush2.bf16.msra.mxu0 0
    %3512 = vmatprep.subr.bf16.mxu0 0
    %3513 = vmatpush2.bf16.msra.mxu0 0
    %3514 = vmatprep.subr.bf16.mxu0 0
    %3515 = vmatpush2.bf16.msra.mxu0 0
    %3516 = vmatprep.subr.bf16.mxu0 0
    %3517 = vmatpush2.bf16.msra.mxu0 0
    %3518 = vmatprep.subr.bf16.mxu0 0
    %3519 = vmatpush2.bf16.msra.mxu0 0
    %3520 = vmatprep.subr.bf16.mxu0 0
    %3521 = vmatpush2.bf16.msra.mxu0 0
    %3522 = vmatprep.subr.bf16.mxu0 0
    %3523 = vmatpush2.bf16.msra.mxu0 0
    %3524 = vmatprep.mubr.bf16.mxu0 0
    %3525 = vmatmul.mubr.bf16.gmra.mxu0 %v3490
    %v3526 = vpop.f32.mrf.mxu0
    %v3527 = vadd.f32 0.0, %v3526
    %v3528 = vpop.f32.mrf.mxu0
    %v3529 = vpop.f32.mrf.mxu0
    %v3530 = vpop.f32.mrf.mxu0
    %3531 = vdwg.mxu0
    %v3532 = vadd.f32 %v3484, %v3527
    %v3533 = vxor.u32 %v3532, 2147483648
    %v3534 = vmul.f32 %v3533, 1.442695
    %v3535 = vpow.pop %v3534
    %v3536 = vadd.f32 %v3535, 1.0
    %v3537 = vrcp.pop %v3536
    %v3538 = vmul.f32 1.0, %v3537
    %v3539 = vtanh.pop %v3532
    %v3540 = vmul.f32 %v3538, %v3469
    %3542 = vrot.lane.b32.xlu0 %v3539, 32
    %v3543 = vpop.permute.xlu0 %3542
    %v3545 = vmul.f32 %v3538, %v3543
    %3547 = vrot.lane.b32.xlu0 %v3545, 32
    %v3548 = vpop.permute.xlu0 %3547
    %v3550 = vadd.f32 %v3540, %v3548
    %v3551 = vtanh.pop %v3550
    %3553 = vrot.lane.b32.xlu0 %v3551, 32
    %v3554 = vpop.permute.xlu0 %3553
    %v3556 = vmul.f32 %v3538, %v3554
    %v3557 = vsel %vm3224, %v3482, %v3478
    %v3558 = vpack.c.bf16 %v3556, %v3556
    %3560 = vrot.lane.b32.xlu0 %v3558, 64
    %v3561 = vpop.permute.xlu0 %3560
    %v3563 = vsel %vm464, %v3561, 0
    %3565 = vmatprep.subr.bf16.mxu0 0
    %3566 = vmatpush1.bf16.msra.mxu0 0
    %3567 = vmatprep.subr.bf16.mxu0 0
    %3568 = vmatpush1.bf16.msra.mxu0 0
    %3569 = vmatprep.subr.bf16.mxu0 0
    %3570 = vmatpush1.bf16.msra.mxu0 0
    %3571 = vmatprep.subr.bf16.mxu0 0
    %3572 = vmatpush1.bf16.msra.mxu0 0
    %3573 = vmatprep.subr.bf16.mxu0 0
    %3574 = vmatpush1.bf16.msra.mxu0 0
    %3575 = vmatprep.subr.bf16.mxu0 0
    %3576 = vmatpush1.bf16.msra.mxu0 0
    %3577 = vmatprep.subr.bf16.mxu0 0
    %3578 = vmatpush1.bf16.msra.mxu0 %v3244
    %3579 = vmatprep.subr.bf16.mxu0 0
    %3580 = vmatpush1.bf16.msra.mxu0 %v3243
    %3581 = vmatprep.subr.bf16.mxu0 0
    %3582 = vmatpush2.bf16.msra.mxu0 0
    %3583 = vmatprep.subr.bf16.mxu0 0
    %3584 = vmatpush2.bf16.msra.mxu0 0
    %3585 = vmatprep.subr.bf16.mxu0 0
    %3586 = vmatpush2.bf16.msra.mxu0 0
    %3587 = vmatprep.subr.bf16.mxu0 0
    %3588 = vmatpush2.bf16.msra.mxu0 0
    %3589 = vmatprep.subr.bf16.mxu0 0
    %3590 = vmatpush2.bf16.msra.mxu0 0
    %3591 = vmatprep.subr.bf16.mxu0 0
    %3592 = vmatpush2.bf16.msra.mxu0 0
    %3593 = vmatprep.subr.bf16.mxu0 0
    %3594 = vmatpush2.bf16.msra.mxu0 0
    %3595 = vmatprep.subr.bf16.mxu0 0
    %3596 = vmatpush2.bf16.msra.mxu0 0
    %3597 = vmatprep.mubr.bf16.mxu0 0
    %3598 = vmatmul.mubr.bf16.gmra.mxu0 %v3563
    %v3599 = vpop.f32.mrf.mxu0
    %v3600 = vadd.f32 0.0, %v3599
    %v3601 = vpop.f32.mrf.mxu0
    %v3602 = vpop.f32.mrf.mxu0
    %v3603 = vpop.f32.mrf.mxu0
    %3604 = vdwg.mxu0
    %v3605 = vadd.f32 %v3557, %v3600
    %v3606 = vxor.u32 %v3605, 2147483648
    %v3607 = vmul.f32 %v3606, 1.442695
    %v3608 = vpow.pop %v3607
    %v3609 = vadd.f32 %v3608, 1.0
    %v3610 = vrcp.pop %v3609
    %v3611 = vmul.f32 1.0, %v3610
    %v3612 = vtanh.pop %v3605
    %v3613 = vmul.f32 %v3611, %v3550
    %3615 = vrot.lane.b32.xlu0 %v3612, 32
    %v3616 = vpop.permute.xlu0 %3615
    %v3618 = vmul.f32 %v3611, %v3616
    %3620 = vrot.lane.b32.xlu0 %v3618, 32
    %v3621 = vpop.permute.xlu0 %3620
    %v3623 = vadd.f32 %v3613, %v3621
    %v3624 = vtanh.pop %v3623
    %3626 = vrot.lane.b32.xlu0 %v3624, 32
    %v3627 = vpop.permute.xlu0 %3626
    %v3629 = vmul.f32 %v3611, %v3627
    %v3630 = vsel %vm3224, %v3401, %v3397
    %v3631 = vpack.c.bf16 %v3629, %v3629
    %3633 = vrot.lane.b32.xlu0 %v3631, 64
    %v3634 = vpop.permute.xlu0 %3633
    %v3636 = vsel %vm464, %v3634, 0
    %3638 = vmatprep.subr.bf16.mxu0 0
    %3639 = vmatpush1.bf16.msra.mxu0 0
    %3640 = vmatprep.subr.bf16.mxu0 0
    %3641 = vmatpush1.bf16.msra.mxu0 0
    %3642 = vmatprep.subr.bf16.mxu0 0
    %3643 = vmatpush1.bf16.msra.mxu0 0
    %3644 = vmatprep.subr.bf16.mxu0 0
    %3645 = vmatpush1.bf16.msra.mxu0 0
    %3646 = vmatprep.subr.bf16.mxu0 0
    %3647 = vmatpush1.bf16.msra.mxu0 0
    %3648 = vmatprep.subr.bf16.mxu0 0
    %3649 = vmatpush1.bf16.msra.mxu0 0
    %3650 = vmatprep.subr.bf16.mxu0 0
    %3651 = vmatpush1.bf16.msra.mxu0 %v3244
    %3652 = vmatprep.subr.bf16.mxu0 0
    %3653 = vmatpush1.bf16.msra.mxu0 %v3243
    %3654 = vmatprep.subr.bf16.mxu0 0
    %3655 = vmatpush2.bf16.msra.mxu0 0
    %3656 = vmatprep.subr.bf16.mxu0 0
    %3657 = vmatpush2.bf16.msra.mxu0 0
    %3658 = vmatprep.subr.bf16.mxu0 0
    %3659 = vmatpush2.bf16.msra.mxu0 0
    %3660 = vmatprep.subr.bf16.mxu0 0
    %3661 = vmatpush2.bf16.msra.mxu0 0
    %3662 = vmatprep.subr.bf16.mxu0 0
    %3663 = vmatpush2.bf16.msra.mxu0 0
    %3664 = vmatprep.subr.bf16.mxu0 0
    %3665 = vmatpush2.bf16.msra.mxu0 0
    %3666 = vmatprep.subr.bf16.mxu0 0
    %3667 = vmatpush2.bf16.msra.mxu0 0
    %3668 = vmatprep.subr.bf16.mxu0 0
    %3669 = vmatpush2.bf16.msra.mxu0 0
    %3670 = vmatprep.mubr.bf16.mxu0 0
    %3671 = vmatmul.mubr.bf16.gmra.mxu0 %v3636
    %v3672 = vpop.f32.mrf.mxu0
    %v3673 = vadd.f32 0.0, %v3672
    %v3674 = vpop.f32.mrf.mxu0
    %v3675 = vpop.f32.mrf.mxu0
    %v3676 = vpop.f32.mrf.mxu0
    %3677 = vdwg.mxu0
    %v3678 = vadd.f32 %v3630, %v3673
    %v3679 = vxor.u32 %v3678, 2147483648
    %v3680 = vmul.f32 %v3679, 1.442695
    %v3681 = vpow.pop %v3680
    %v3682 = vadd.f32 %v3681, 1.0
    %v3683 = vrcp.pop %v3682
    %v3684 = vmul.f32 1.0, %v3683
    %v3685 = vtanh.pop %v3678
    %v3686 = vmul.f32 %v3684, %v3623
    %3688 = vrot.lane.b32.xlu0 %v3685, 32
    %v3689 = vpop.permute.xlu0 %3688
    %v3691 = vmul.f32 %v3684, %v3689
    %3693 = vrot.lane.b32.xlu0 %v3691, 32
    %v3694 = vpop.permute.xlu0 %3693
    %v3696 = vadd.f32 %v3686, %v3694
    %v3697 = vtanh.pop %v3696
    %3699 = vrot.lane.b32.xlu0 %v3697, 32
    %v3700 = vpop.permute.xlu0 %3699
    %v3702 = vmul.f32 %v3684, %v3700
    %v3703 = vsel %vm3224, %v3320, %v3316
    %v3704 = vpack.c.bf16 %v3702, %v3702
    %3706 = vrot.lane.b32.xlu0 %v3704, 64
    %v3707 = vpop.permute.xlu0 %3706
    %v3709 = vsel %vm464, %v3707, 0
    %3711 = vmatprep.subr.bf16.mxu0 0
    %3712 = vmatpush1.bf16.msra.mxu0 0
    %3713 = vmatprep.subr.bf16.mxu0 0
    %3714 = vmatpush1.bf16.msra.mxu0 0
    %3715 = vmatprep.subr.bf16.mxu0 0
    %3716 = vmatpush1.bf16.msra.mxu0 0
    %3717 = vmatprep.subr.bf16.mxu0 0
    %3718 = vmatpush1.bf16.msra.mxu0 0
    %3719 = vmatprep.subr.bf16.mxu0 0
    %3720 = vmatpush1.bf16.msra.mxu0 0
    %3721 = vmatprep.subr.bf16.mxu0 0
    %3722 = vmatpush1.bf16.msra.mxu0 0
    %3723 = vmatprep.subr.bf16.mxu0 0
    %3724 = vmatpush1.bf16.msra.mxu0 %v3244
    %3725 = vmatprep.subr.bf16.mxu0 0
    %3726 = vmatpush1.bf16.msra.mxu0 %v3243
    %3727 = vmatprep.subr.bf16.mxu0 0
    %3728 = vmatpush2.bf16.msra.mxu0 0
    %3729 = vmatprep.subr.bf16.mxu0 0
    %3730 = vmatpush2.bf16.msra.mxu0 0
    %3731 = vmatprep.subr.bf16.mxu0 0
    %3732 = vmatpush2.bf16.msra.mxu0 0
    %3733 = vmatprep.subr.bf16.mxu0 0
    %3734 = vmatpush2.bf16.msra.mxu0 0
    %3735 = vmatprep.subr.bf16.mxu0 0
    %3736 = vmatpush2.bf16.msra.mxu0 0
    %3737 = vmatprep.subr.bf16.mxu0 0
    %3738 = vmatpush2.bf16.msra.mxu0 0
    %3739 = vmatprep.subr.bf16.mxu0 0
    %3740 = vmatpush2.bf16.msra.mxu0 0
    %3741 = vmatprep.subr.bf16.mxu0 0
    %3742 = vmatpush2.bf16.msra.mxu0 0
    %3743 = vmatprep.mubr.bf16.mxu0 0
    %3744 = vmatmul.mubr.bf16.gmra.mxu0 %v3709
    %v3745 = vpop.f32.mrf.mxu0
    %v3746 = vadd.f32 0.0, %v3745
    %v3747 = vpop.f32.mrf.mxu0
    %v3748 = vpop.f32.mrf.mxu0
    %v3749 = vpop.f32.mrf.mxu0
    %3750 = vdwg.mxu0
    %v3751 = vadd.f32 %v3703, %v3746
    %v3752 = vxor.u32 %v3751, 2147483648
    %v3753 = vmul.f32 %v3752, 1.442695
    %v3754 = vpow.pop %v3753
    %v3755 = vadd.f32 %v3754, 1.0
    %v3756 = vrcp.pop %v3755
    %v3757 = vmul.f32 1.0, %v3756
    %v3758 = vtanh.pop %v3751
    %v3759 = vmul.f32 %v3757, %v3696
    %3761 = vrot.lane.b32.xlu0 %v3758, 32
    %v3762 = vpop.permute.xlu0 %3761
    %v3764 = vmul.f32 %v3757, %v3762
    %3766 = vrot.lane.b32.xlu0 %v3764, 32
    %v3767 = vpop.permute.xlu0 %3766
    %v3769 = vadd.f32 %v3759, %v3767
    %v3770 = vtanh.pop %v3769
    %3772 = vrot.lane.b32.xlu0 %v3770, 32
    %v3773 = vpop.permute.xlu0 %3772
    %v3775 = vmul.f32 %v3757, %v3773
    %v3776 = vsel %vm3224, %v3232, %v3228
    %v3777 = vpack.c.bf16 %v3775, %v3775
    %3779 = vrot.lane.b32.xlu0 %v3777, 64
    %v3780 = vpop.permute.xlu0 %3779
    %v3782 = vsel %vm464, %v3780, 0
    %3784 = vmatprep.subr.bf16.mxu0 0
    %3785 = vmatpush1.bf16.msra.mxu0 0
    %3786 = vmatprep.subr.bf16.mxu0 0
    %3787 = vmatpush1.bf16.msra.mxu0 0
    %3788 = vmatprep.subr.bf16.mxu0 0
    %3789 = vmatpush1.bf16.msra.mxu0 0
    %3790 = vmatprep.subr.bf16.mxu0 0
    %3791 = vmatpush1.bf16.msra.mxu0 0
    %3792 = vmatprep.subr.bf16.mxu0 0
    %3793 = vmatpush1.bf16.msra.mxu0 0
    %3794 = vmatprep.subr.bf16.mxu0 0
    %3795 = vmatpush1.bf16.msra.mxu0 0
    %3796 = vmatprep.subr.bf16.mxu0 0
    %3797 = vmatpush1.bf16.msra.mxu0 %v3244
    %3798 = vmatprep.subr.bf16.mxu0 0
    %3799 = vmatpush1.bf16.msra.mxu0 %v3243
    %3800 = vmatprep.subr.bf16.mxu0 0
    %3801 = vmatpush2.bf16.msra.mxu0 0
    %3802 = vmatprep.subr.bf16.mxu0 0
    %3803 = vmatpush2.bf16.msra.mxu0 0
    %3804 = vmatprep.subr.bf16.mxu0 0
    %3805 = vmatpush2.bf16.msra.mxu0 0
    %3806 = vmatprep.subr.bf16.mxu0 0
    %3807 = vmatpush2.bf16.msra.mxu0 0
    %3808 = vmatprep.subr.bf16.mxu0 0
    %3809 = vmatpush2.bf16.msra.mxu0 0
    %3810 = vmatprep.subr.bf16.mxu0 0
    %3811 = vmatpush2.bf16.msra.mxu0 0
    %3812 = vmatprep.subr.bf16.mxu0 0
    %3813 = vmatpush2.bf16.msra.mxu0 0
    %3814 = vmatprep.subr.bf16.mxu0 0
    %3815 = vmatpush2.bf16.msra.mxu0 0
    %3816 = vmatprep.mubr.bf16.mxu0 0
    %3817 = vmatmul.mubr.bf16.gmra.mxu0 %v3782
    %v3818 = vpop.f32.mrf.mxu0
    %v3819 = vadd.f32 0.0, %v3818
    %v3820 = vpop.f32.mrf.mxu0
    %v3821 = vpop.f32.mrf.mxu0
    %v3822 = vpop.f32.mrf.mxu0
    %3823 = vdwg.mxu0
    %v3824 = vadd.f32 %v3776, %v3819
    %v3825 = vxor.u32 %v3824, 2147483648
    %v3826 = vmul.f32 %v3825, 1.442695
    %v3827 = vpow.pop %v3826
    %v3828 = vadd.f32 %v3827, 1.0
    %v3829 = vrcp.pop %v3828
    %v3830 = vmul.f32 1.0, %v3829
    %v3831 = vtanh.pop %v3824
    %v3832 = vmul.f32 %v3830, %v3769
    %3834 = vrot.lane.b32.xlu0 %v3831, 32
    %v3835 = vpop.permute.xlu0 %3834
    %v3837 = vmul.f32 %v3830, %v3835
    %3839 = vrot.lane.b32.xlu0 %v3837, 32
    %v3840 = vpop.permute.xlu0 %3839
    %v3842 = vadd.f32 %v3832, %v3840
    %v3843 = vtanh.pop %v3842
    %3845 = vrot.lane.b32.xlu0 %v3843, 32
    %v3846 = vpop.permute.xlu0 %3845
    %v3848 = vmul.f32 %v3830, %v3846
    %v3851 = vunpack.c.l.s4 1966171168
    %v3852 = vunpack.c.0.s8 %v3851
    %v3853 = vlaneseq
    %v3854 = vshrl.u32 %v3853, 7
    %v3855 = vsub.s32 %v3852, %v3854
    %v3856 = vrot.slane %v3314, %v3855
    %v3857 = vcombine.high %v3856, %v3856
    %v3859 = vunpack.c.l.s4 1966171168
    %v3860 = vunpack.c.0.s8 %v3859
    %v3861 = vlaneseq
    %v3862 = vshrl.u32 %v3861, 7
    %v3863 = vsub.s32 %v3860, %v3862
    %v3864 = vrot.slane %v3856, %v3863
    %v3866 = vunpack.c.l.s4 1966171168
    %v3867 = vunpack.c.0.s8 %v3866
    %v3868 = vlaneseq
    %v3869 = vshrl.u32 %v3868, 7
    %v3870 = vsub.s32 %v3867, %v3869
    %v3871 = vrot.slane %v3857, %v3870
    %v3876 = vunpack.c.l.s4 1966171168
    %v3877 = vunpack.c.0.s8 %v3876
    %v3878 = vlaneseq
    %v3879 = vshrl.u32 %v3878, 7
    %v3880 = vsub.s32 %v3877, %v3879
    %v3881 = vrot.slane %v3394, %v3880
    %v3882 = vcombine.high %v3881, %v3881
    %v3884 = vunpack.c.l.s4 1966171168
    %v3885 = vunpack.c.0.s8 %v3884
    %v3886 = vlaneseq
    %v3887 = vshrl.u32 %v3886, 7
    %v3888 = vsub.s32 %v3885, %v3887
    %v3889 = vrot.slane %v3881, %v3888
    %v3891 = vunpack.c.l.s4 1966171168
    %v3892 = vunpack.c.0.s8 %v3891
    %v3893 = vlaneseq
    %v3894 = vshrl.u32 %v3893, 7
    %v3895 = vsub.s32 %v3892, %v3894
    %v3896 = vrot.slane %v3882, %v3895
    %v3899 = vunpack.c.l.s4 1966171168
    %v3900 = vunpack.c.0.s8 %v3899
    %v3901 = vlaneseq
    %v3902 = vshrl.u32 %v3901, 7
    %v3903 = vsub.s32 %v3900, %v3902
    %v3904 = vrot.slane %v3475, %v3903
    %v3905 = vcombine.high %v3904, %v3904
    %v3907 = vunpack.c.l.s4 1966171168
    %v3908 = vunpack.c.0.s8 %v3907
    %v3909 = vlaneseq
    %v3910 = vshrl.u32 %v3909, 7
    %v3911 = vsub.s32 %v3908, %v3910
    %v3912 = vrot.slane %v3904, %v3911
    %v3914 = vunpack.c.l.s4 1966171168
    %v3915 = vunpack.c.0.s8 %v3914
    %v3916 = vlaneseq
    %v3917 = vshrl.u32 %v3916, 7
    %v3918 = vsub.s32 %v3915, %v3917
    %v3919 = vrot.slane %v3905, %v3918
    %v3922 = vunpack.c.l.s4 1966171168
    %v3923 = vunpack.c.0.s8 %v3922
    %v3924 = vlaneseq
    %v3925 = vshrl.u32 %v3924, 7
    %v3926 = vsub.s32 %v3923, %v3925
    %v3927 = vrot.slane %v3556, %v3926
    %v3928 = vcombine.high %v3927, %v3927
    %v3930 = vunpack.c.l.s4 1966171168
    %v3931 = vunpack.c.0.s8 %v3930
    %v3932 = vlaneseq
    %v3933 = vshrl.u32 %v3932, 7
    %v3934 = vsub.s32 %v3931, %v3933
    %v3935 = vrot.slane %v3927, %v3934
    %v3937 = vunpack.c.l.s4 1966171168
    %v3938 = vunpack.c.0.s8 %v3937
    %v3939 = vlaneseq
    %v3940 = vshrl.u32 %v3939, 7
    %v3941 = vsub.s32 %v3938, %v3940
    %v3942 = vrot.slane %v3928, %v3941
    %v3945 = vunpack.c.l.s4 1966171168
    %v3946 = vunpack.c.0.s8 %v3945
    %v3947 = vlaneseq
    %v3948 = vshrl.u32 %v3947, 7
    %v3949 = vsub.s32 %v3946, %v3948
    %v3950 = vrot.slane %v3629, %v3949
    %v3951 = vcombine.high %v3950, %v3950
    %v3953 = vunpack.c.l.s4 1966171168
    %v3954 = vunpack.c.0.s8 %v3953
    %v3955 = vlaneseq
    %v3956 = vshrl.u32 %v3955, 7
    %v3957 = vsub.s32 %v3954, %v3956
    %v3958 = vrot.slane %v3950, %v3957
    %v3960 = vunpack.c.l.s4 1966171168
    %v3961 = vunpack.c.0.s8 %v3960
    %v3962 = vlaneseq
    %v3963 = vshrl.u32 %v3962, 7
    %v3964 = vsub.s32 %v3961, %v3963
    %v3965 = vrot.slane %v3951, %v3964
    %v3968 = vunpack.c.l.s4 1966171168
    %v3969 = vunpack.c.0.s8 %v3968
    %v3970 = vlaneseq
    %v3971 = vshrl.u32 %v3970, 7
    %v3972 = vsub.s32 %v3969, %v3971
    %v3973 = vrot.slane %v3702, %v3972
    %v3974 = vcombine.high %v3973, %v3973
    %v3976 = vunpack.c.l.s4 1966171168
    %v3977 = vunpack.c.0.s8 %v3976
    %v3978 = vlaneseq
    %v3979 = vshrl.u32 %v3978, 7
    %v3980 = vsub.s32 %v3977, %v3979
    %v3981 = vrot.slane %v3973, %v3980
    %v3983 = vunpack.c.l.s4 1966171168
    %v3984 = vunpack.c.0.s8 %v3983
    %v3985 = vlaneseq
    %v3986 = vshrl.u32 %v3985, 7
    %v3987 = vsub.s32 %v3984, %v3986
    %v3988 = vrot.slane %v3974, %v3987
    %v3991 = vunpack.c.l.s4 1966171168
    %v3992 = vunpack.c.0.s8 %v3991
    %v3993 = vlaneseq
    %v3994 = vshrl.u32 %v3993, 7
    %v3995 = vsub.s32 %v3992, %v3994
    %v3996 = vrot.slane %v3775, %v3995
    %v3997 = vcombine.high %v3996, %v3996
    %v3999 = vunpack.c.l.s4 1966171168
    %v4000 = vunpack.c.0.s8 %v3999
    %v4001 = vlaneseq
    %v4002 = vshrl.u32 %v4001, 7
    %v4003 = vsub.s32 %v4000, %v4002
    %v4004 = vrot.slane %v3996, %v4003
    %v4006 = vunpack.c.l.s4 1966171168
    %v4007 = vunpack.c.0.s8 %v4006
    %v4008 = vlaneseq
    %v4009 = vshrl.u32 %v4008, 7
    %v4010 = vsub.s32 %v4007, %v4009
    %v4011 = vrot.slane %v3997, %v4010
    %v4014 = vunpack.c.l.s4 1966171168
    %v4015 = vunpack.c.0.s8 %v4014
    %v4016 = vlaneseq
    %v4017 = vshrl.u32 %v4016, 7
    %v4018 = vsub.s32 %v4015, %v4017
    %v4019 = vrot.slane %v3848, %v4018
    %v4020 = vcombine.high %v4019, %v4019
    %v4022 = vunpack.c.l.s4 1966171168
    %v4023 = vunpack.c.0.s8 %v4022
    %v4024 = vlaneseq
    %v4025 = vshrl.u32 %v4024, 7
    %v4026 = vsub.s32 %v4023, %v4025
    %v4027 = vrot.slane %v4019, %v4026
    %v4029 = vunpack.c.l.s4 1966171168
    %v4030 = vunpack.c.0.s8 %v4029
    %v4031 = vlaneseq
    %v4032 = vshrl.u32 %v4031, 7
    %v4033 = vsub.s32 %v4030, %v4032
    %v4034 = vrot.slane %v4020, %v4033
    %v4037 = vlaneseq
    %v4038 = vshrl.u32 %v4037, 7
    %v4039 = vsub.s32 0, %v4038
    %v4040 = vrot.slane %v3889, %v4039
    %v4041 = vlaneseq
    %v4042 = vshrl.u32 %v4041, 7
    %v4043 = vsub.s32 0, %v4042
    %v4044 = vrot.slane %v3896, %v4043
    %v4047 = vlaneseq
    %v4048 = vshrl.u32 %v4047, 7
    %v4049 = vsub.s32 0, %v4048
    %v4050 = vrot.slane %v3912, %v4049
    %v4051 = vlaneseq
    %v4052 = vshrl.u32 %v4051, 7
    %v4053 = vsub.s32 0, %v4052
    %v4054 = vrot.slane %v3919, %v4053
    %v4057 = vlaneseq
    %v4058 = vshrl.u32 %v4057, 7
    %v4059 = vsub.s32 0, %v4058
    %v4060 = vrot.slane %v3935, %v4059
    %v4061 = vlaneseq
    %v4062 = vshrl.u32 %v4061, 7
    %v4063 = vsub.s32 0, %v4062
    %v4064 = vrot.slane %v3942, %v4063
    %v4067 = vlaneseq
    %v4068 = vshrl.u32 %v4067, 7
    %v4069 = vsub.s32 0, %v4068
    %v4070 = vrot.slane %v3958, %v4069
    %v4071 = vlaneseq
    %v4072 = vshrl.u32 %v4071, 7
    %v4073 = vsub.s32 0, %v4072
    %v4074 = vrot.slane %v3965, %v4073
    %v4077 = vlaneseq
    %v4078 = vshrl.u32 %v4077, 7
    %v4079 = vsub.s32 0, %v4078
    %v4080 = vrot.slane %v3981, %v4079
    %v4081 = vlaneseq
    %v4082 = vshrl.u32 %v4081, 7
    %v4083 = vsub.s32 0, %v4082
    %v4084 = vrot.slane %v3988, %v4083
    %v4087 = vlaneseq
    %v4088 = vshrl.u32 %v4087, 7
    %v4089 = vsub.s32 0, %v4088
    %v4090 = vrot.slane %v4004, %v4089
    %v4091 = vlaneseq
    %v4092 = vshrl.u32 %v4091, 7
    %v4093 = vsub.s32 0, %v4092
    %v4094 = vrot.slane %v4011, %v4093
    %v4097 = vlaneseq
    %v4098 = vshrl.u32 %v4097, 7
    %v4099 = vsub.s32 0, %v4098
    %v4100 = vrot.slane %v4027, %v4099
    %v4101 = vlaneseq
    %v4102 = vshrl.u32 %v4101, 7
    %v4103 = vsub.s32 0, %v4102
    %v4104 = vrot.slane %v4034, %v4103
    %vm4107 = vcmask 1040384
    %v4108 = vsel %vm4107, %v3864, %v4040
    %v4109 = vsel %vm4107, %v3871, %v4044
    %vm4110 = vcmask 1041408
    %v4111 = vsel %vm4110, %v4108, %v4050
    %v4112 = vsel %vm4110, %v4109, %v4054
    %vm4113 = vcmask 1042432
    %v4114 = vsel %vm4113, %v4111, %v4060
    %v4115 = vsel %vm4113, %v4112, %v4064
    %vm4116 = vcmask 1043456
    %v4117 = vsel %vm4116, %v4114, %v4070
    %v4118 = vsel %vm4116, %v4115, %v4074
    %v4119 = vsel %vm1905, %v4117, %v4080
    %v4120 = vsel %vm1905, %v4118, %v4084
    %v4121 = vsel %vm1897, %v4119, %v4090
    %v4122 = vsel %vm1897, %v4120, %v4094
    %v4123 = vsel %vm1889, %v4121, %v4100
    %v4124 = vsel %vm1889, %v4122, %v4104
    %v4125 = vlaneseq
    %v4126 = vshrl.u32 %v4125, 7
    %v4127 = vsub.s32 0, %v4126
    %v4128 = vrot.slane %v3864, %v4127
    %v4129 = vlaneseq
    %v4130 = vshrl.u32 %v4129, 7
    %v4131 = vsub.s32 0, %v4130
    %v4132 = vrot.slane %v3871, %v4131
    %v4135 = vsel %vm4107, %v4027, %v4090
    %v4136 = vsel %vm4107, %v4034, %v4094
    %v4137 = vsel %vm4110, %v4135, %v4080
    %v4138 = vsel %vm4110, %v4136, %v4084
    %v4139 = vsel %vm4113, %v4137, %v4070
    %v4140 = vsel %vm4113, %v4138, %v4074
    %v4141 = vsel %vm4116, %v4139, %v4060
    %v4142 = vsel %vm4116, %v4140, %v4064
    %v4143 = vsel %vm1905, %v4141, %v4050
    %v4144 = vsel %vm1905, %v4142, %v4054
    %v4145 = vsel %vm1897, %v4143, %v4040
    %v4146 = vsel %vm1897, %v4144, %v4044
    %v4147 = vsel %vm1889, %v4145, %v4128
    %v4148 = vsel %vm1889, %v4146, %v4132
    %4151 = vrot.lane.b32.xlu0 %v4123, 64
    %v4152 = vpop.permute.xlu0 %4151
    %4153 = vrot.lane.b32.xlu0 %v4124, 64
    %v4154 = vpop.permute.xlu0 %4153
    %4159 = vrot.lane.b32.xlu0 %v4147, 64
    %v4160 = vpop.permute.xlu0 %4159
    %4161 = vrot.lane.b32.xlu0 %v4148, 64
    %v4162 = vpop.permute.xlu0 %4161
    %v4165 = vsel %vm516, %v4152, %v4160
    %v4166 = vsel %vm516, %v4154, %v4162
    %v4167 = vlaneseq
    %v4168 = vshrl.u32 %v4167, 7
    %v4169 = vsub.s32 6, %v4168
    %v4170 = vrot.slane %v1886, %v4169
    %v4171 = vmul.f32 %v4165, %v4170
    %v4172 = vmul.f32 %v4166, %v4170
    %v4173 = vsel %vm464, %v4171, 0.0
    %4174 = vadd.xlane.f32.xlu0 %v4173
    %v4175 = vpop.xlane.xlu0 %4174
    %v4176 = vsel %vm464, %v4172, 0.0
    %4177 = vadd.xlane.f32.xlu0 %v4176
    %v4178 = vpop.xlane.xlu0 %4177
    %v4181 = vlaneseq
    %v4182 = vshrl.u32 %v4181, 7
    %v4183 = vsub.s32 %v3209, %v4182
    %v4184 = vrot.slane %v4175, %v4183
    %v4185 = vlaneseq
    %v4186 = vshrl.u32 %v4185, 7
    %v4187 = vsub.s32 %v3209, %v4186
    %v4188 = vrot.slane %v4178, %v4187
    %v4189 = vsel %vm2804, %v4188, %v4184
    %vm4191 = vcmask 58368
    %v4192 = vsel %vm4191, %v4189, -inf
    %4193 = vmax.xlane.f32.xlu0 %v4192
    %v4194 = vpop.xlane.xlu0 %4193
    %v4196 = vlaneseq
    %v4197 = vshrl.u32 %v4196, 7
    %v4198 = vsub.s32 0, %v4197
    %v4199 = vrot.slane %v4194, %v4198
    %v4200 = vlaneseq
    %v4201 = vshrl.u32 %v4200, 7
    %v4202 = vsub.s32 1, %v4201
    %v4203 = vrot.slane %v4194, %v4202
    %v4206 = vsub.f32 %v4175, %v4199
    %v4207 = vsub.f32 %v4178, %v4203
    %v4208 = vmul.f32 %v4206, 1.442695
    %v4209 = vpow.pop %v4208
    %v4210 = vmul.f32 %v4207, 1.442695
    %v4211 = vpow.pop %v4210
    %4214 = vset.pattern.permute.xlu0 0
    %4215 = vperm.xlu0 %4214, %v4209
    %v4216 = vpop.permute.xlu0 %4215
    %4217 = vset.pattern.permute.xlu0 0
    %4218 = vperm.xlu0 %4217, %v4211
    %v4219 = vpop.permute.xlu0 %4218
    %v4220 = vlaneseq
    %v4221 = vshrl.u32 %v4220, 7
    %v4222 = vsub.s32 %v3209, %v4221
    %v4223 = vrot.slane %v4216, %v4222
    %v4224 = vlaneseq
    %v4225 = vshrl.u32 %v4224, 7
    %v4226 = vsub.s32 %v3209, %v4225
    %v4227 = vrot.slane %v4219, %v4226
    %v4228 = vsel %vm2804, %v4227, %v4223
    %v4230 = vsel %vm4191, %v4228, 0.0
    %4231 = vadd.xlane.f32.xlu0 %v4230
    %v4232 = vpop.xlane.xlu0 %4231
    %v4233 = vrcp.pop %v4232
    %v4235 = vlaneseq
    %v4236 = vshrl.u32 %v4235, 7
    %v4237 = vsub.s32 0, %v4236
    %v4238 = vrot.slane %v4233, %v4237
    %v4239 = vlaneseq
    %v4240 = vshrl.u32 %v4239, 7
    %v4241 = vsub.s32 1, %v4240
    %v4242 = vrot.slane %v4233, %v4241
    %v4245 = vmul.f32 %v4209, %v4238
    %v4246 = vmul.f32 %v4211, %v4242
    %4248 = vset.pattern.permute.xlu0 0
    %4249 = vperm.xlu0 %4248, %v4245
    %v4250 = vpop.permute.xlu0 %4249
    %4253 = vset.pattern.permute.xlu0 0
    %4254 = vperm.xlu0 %4253, %v4246
    %v4255 = vpop.permute.xlu0 %4254
    %v4257 = vmul.f32 %v4250, %v4165
    %v4258 = vmul.f32 %v4255, %v4166
    %v4259 = vsel %vm464, %v4257, 0.0
    %v4260 = vrot.slane %v4259, 4
    %v4261 = vadd.f32 %v4259, %v4260
    %v4262 = vrot.slane %v4261, 2
    %v4263 = vadd.f32 %v4261, %v4262
    %v4264 = vrot.slane %v4263, 1
    %v4265 = vadd.f32 %v4263, %v4264
    %v4266 = vsel %vm464, %v4258, 0.0
    %v4267 = vrot.slane %v4266, 4
    %v4268 = vadd.f32 %v4266, %v4267
    %v4269 = vrot.slane %v4268, 2
    %v4270 = vadd.f32 %v4268, %v4269
    %v4271 = vrot.slane %v4270, 1
    %v4272 = vadd.f32 %v4270, %v4271
    %v4273 = vlaneseq
    %v4274 = vshrl.u32 %v4273, 7
    %v4275 = vsub.s32 %v3209, %v4274
    %v4276 = vrot.slane %v4250, %v4275
    %v4277 = vlaneseq
    %v4278 = vshrl.u32 %v4277, 7
    %v4279 = vsub.s32 %v3209, %v4278
    %v4280 = vrot.slane %v4255, %v4279
    %v4281 = vsel %vm2804, %v4280, %v4276
    %4283 = vst.msk [vmem:[#allocation10] sm:$0x3] %vm4191, %v4281
    %v4284 = vld [vmem:[#allocation2 + $0x350] sm:$0xf]
    %v4285 = vld [vmem:[#allocation2 + $0x354] sm:$0xf]
    %v4286 = vld [vmem:[#allocation2 + $0x358] sm:$0xf]
    %v4287 = vld [vmem:[#allocation2 + $0x35c] sm:$0xf]
    %v4288 = vld [vmem:[#allocation2 + $0x360] sm:$0xf]
    %v4289 = vld [vmem:[#allocation2 + $0x364] sm:$0xf]
    %v4290 = vld [vmem:[#allocation2 + $0x368] sm:$0xf]
    %v4291 = vld [vmem:[#allocation2 + $0x36c] sm:$0xf]
    %v4292 = vld [vmem:[#allocation2 + $0x370] sm:$0xf]
    %v4293 = vld [vmem:[#allocation2 + $0x374] sm:$0xf]
    %v4294 = vld [vmem:[#allocation2 + $0x378] sm:$0xf]
    %v4295 = vld [vmem:[#allocation2 + $0x37c] sm:$0xf]
    %v4296 = vld [vmem:[#allocation2 + $0x380] sm:$0xf]
    %v4297 = vld [vmem:[#allocation2 + $0x384] sm:$0xf]
    %v4298 = vld [vmem:[#allocation2 + $0x388] sm:$0xf]
    %v4299 = vld [vmem:[#allocation2 + $0x38c] sm:$0xf]
    %v4300 = vpack.c.bf16 %v1880, %v1880
    %v4317 = vunpack.c.l.b16 %v4284
    %v4318 = vunpack.c.l.b16 %v4285
    %v4319 = vunpack.c.l.b16 %v4286
    %v4320 = vunpack.c.l.b16 %v4287
    %v4321 = vunpack.c.l.b16 %v4288
    %v4322 = vunpack.c.l.b16 %v4289
    %v4323 = vunpack.c.l.b16 %v4290
    %v4324 = vunpack.c.l.b16 %v4291
    %v4325 = vunpack.c.l.b16 %v4292
    %v4326 = vunpack.c.l.b16 %v4293
    %v4327 = vunpack.c.l.b16 %v4294
    %v4328 = vunpack.c.l.b16 %v4295
    %v4329 = vunpack.c.l.b16 %v4296
    %v4330 = vunpack.c.l.b16 %v4297
    %v4331 = vunpack.c.l.b16 %v4298
    %v4332 = vunpack.c.l.b16 %v4299
    %v4333 = vpack.c.b16 %v4318, %v4317
    %v4334 = vpack.c.b16 %v4320, %v4319
    %v4335 = vpack.c.b16 %v4322, %v4321
    %v4336 = vpack.c.b16 %v4324, %v4323
    %v4337 = vpack.c.b16 %v4326, %v4325
    %v4338 = vpack.c.b16 %v4328, %v4327
    %v4339 = vpack.c.b16 %v4330, %v4329
    %v4340 = vpack.c.b16 %v4332, %v4331
    %4349 = vmatprep.subr.bf16.mxu0 0
    %4350 = vmatpush1.bf16.msra.mxu0 %v4340
    %4351 = vmatprep.subr.bf16.mxu0 0
    %4352 = vmatpush1.bf16.msra.mxu0 %v4339
    %4353 = vmatprep.subr.bf16.mxu0 0
    %4354 = vmatpush1.bf16.msra.mxu0 %v4338
    %4355 = vmatprep.subr.bf16.mxu0 0
    %4356 = vmatpush1.bf16.msra.mxu0 %v4337
    %4357 = vmatprep.subr.bf16.mxu0 0
    %4358 = vmatpush1.bf16.msra.mxu0 %v4336
    %4359 = vmatprep.subr.bf16.mxu0 0
    %4360 = vmatpush1.bf16.msra.mxu0 %v4335
    %4361 = vmatprep.subr.bf16.mxu0 0
    %4362 = vmatpush1.bf16.msra.mxu0 %v4334
    %4363 = vmatprep.subr.bf16.mxu0 0
    %4364 = vmatpush1.bf16.msra.mxu0 %v4333
    %4365 = vmatprep.subr.bf16.mxu0 0
    %4366 = vmatpush2.bf16.msra.mxu0 0
    %4367 = vmatprep.subr.bf16.mxu0 0
    %4368 = vmatpush2.bf16.msra.mxu0 0
    %4369 = vmatprep.subr.bf16.mxu0 0
    %4370 = vmatpush2.bf16.msra.mxu0 0
    %4371 = vmatprep.subr.bf16.mxu0 0
    %4372 = vmatpush2.bf16.msra.mxu0 0
    %4373 = vmatprep.subr.bf16.mxu0 0
    %4374 = vmatpush2.bf16.msra.mxu0 0
    %4375 = vmatprep.subr.bf16.mxu0 0
    %4376 = vmatpush2.bf16.msra.mxu0 0
    %4377 = vmatprep.subr.bf16.mxu0 0
    %4378 = vmatpush2.bf16.msra.mxu0 0
    %4379 = vmatprep.subr.bf16.mxu0 0
    %4380 = vmatpush2.bf16.msra.mxu0 0
    %4381 = vmatprep.mubr.bf16.mxu0 0
    %4382 = vmatmul.mubr.bf16.gmra.mxu0 %v4300
    %v4383 = vpop.f32.mrf.mxu0
    %v4384 = vadd.f32 0.0, %v4383
    %v4385 = vpop.f32.mrf.mxu0
    %v4386 = vpop.f32.mrf.mxu0
    %v4387 = vpop.f32.mrf.mxu0
    %4388 = vdwg.mxu0
    %v4389 = vlaneseq
    %v4390 = vshrl.u32 %v4389, 7
    %v4391 = vsub.s32 5, %v4390
    %v4392 = vrot.slane %v1886, %v4391
    %v4393 = vadd.f32 %v4384, %v4392
    %v4394 = vtanh.pop %v3094
    %v4395 = vtanh.pop %v4265
    %v4396 = vtanh.pop %v4272
    %v4397 = vsub.f32 1.0, %v4394
    %v4398 = vmul.f32 %v4397, %v3094
    %v4399 = vmul.f32 %v4394, %v4393
    %v4400 = vadd.f32 %v4398, %v4399
    %v4401 = vsub.f32 1.0, %v4395
    %v4402 = vsub.f32 1.0, %v4396
    %v4403 = vmul.f32 %v4401, %v4265
    %v4404 = vmul.f32 %v4402, %v4272
    %v4406 = vrot.slane %v4393, 1
    %v4409 = vmul.f32 %v4395, %v4393
    %v4410 = vmul.f32 %v4396, %v4406
    %v4411 = vadd.f32 %v4403, %v4409
    %v4412 = vadd.f32 %v4404, %v4410
    %v4415 = vrot.slane %v4412, 7
    %v4416 = vsel %vm2804, %v4415, %v4411
    %4417 = vrot.lane.b32.xlu0 %v4416, 32
    %v4418 = vpop.permute.xlu0 %4417
    %v4420 = vsel %vm464, %v4400, %v4418
    %v4421 = vld [vmem:[#allocation2 + $0x390] sm:$0xf]
    %v4422 = vld [vmem:[#allocation2 + $0x394] sm:$0xf]
    %v4423 = vld [vmem:[#allocation2 + $0x398] sm:$0xf]
    %v4424 = vld [vmem:[#allocation2 + $0x39c] sm:$0xf]
    %v4425 = vld [vmem:[#allocation2 + $0x3a0] sm:$0xf]
    %v4426 = vld [vmem:[#allocation2 + $0x3a4] sm:$0xf]
    %v4427 = vld [vmem:[#allocation2 + $0x3a8] sm:$0xf]
    %v4428 = vld [vmem:[#allocation2 + $0x3ac] sm:$0xf]
    %v4429 = vpack.c.bf16 %v4420, %v4420
    %v4438 = vunpack.c.l.b16 %v4421
    %v4439 = vunpack.c.l.b16 %v4422
    %v4440 = vunpack.c.l.b16 %v4423
    %v4441 = vunpack.c.l.b16 %v4424
    %v4442 = vunpack.c.l.b16 %v4425
    %v4443 = vunpack.c.l.b16 %v4426
    %v4444 = vunpack.c.l.b16 %v4427
    %v4445 = vunpack.c.l.b16 %v4428
    %v4446 = vpack.c.b16 %v4439, %v4438
    %v4447 = vpack.c.b16 %v4441, %v4440
    %v4448 = vpack.c.b16 %v4443, %v4442
    %v4449 = vpack.c.b16 %v4445, %v4444
    %v4455 = vsel %vm988, %v4429, 0
    %4457 = vmatprep.subr.bf16.mxu0 0
    %4458 = vmatpush1.bf16.msra.mxu0 0
    %4459 = vmatprep.subr.bf16.mxu0 0
    %4460 = vmatpush1.bf16.msra.mxu0 0
    %4461 = vmatprep.subr.bf16.mxu0 0
    %4462 = vmatpush1.bf16.msra.mxu0 0
    %4463 = vmatprep.subr.bf16.mxu0 0
    %4464 = vmatpush1.bf16.msra.mxu0 0
    %4465 = vmatprep.subr.bf16.mxu0 0
    %4466 = vmatpush1.bf16.msra.mxu0 %v4449
    %4467 = vmatprep.subr.bf16.mxu0 0
    %4468 = vmatpush1.bf16.msra.mxu0 %v4448
    %4469 = vmatprep.subr.bf16.mxu0 0
    %4470 = vmatpush1.bf16.msra.mxu0 %v4447
    %4471 = vmatprep.subr.bf16.mxu0 0
    %4472 = vmatpush1.bf16.msra.mxu0 %v4446
    %4473 = vmatprep.subr.bf16.mxu0 0
    %4474 = vmatpush2.bf16.msra.mxu0 0
    %4475 = vmatprep.subr.bf16.mxu0 0
    %4476 = vmatpush2.bf16.msra.mxu0 0
    %4477 = vmatprep.subr.bf16.mxu0 0
    %4478 = vmatpush2.bf16.msra.mxu0 0
    %4479 = vmatprep.subr.bf16.mxu0 0
    %4480 = vmatpush2.bf16.msra.mxu0 0
    %4481 = vmatprep.subr.bf16.mxu0 0
    %4482 = vmatpush2.bf16.msra.mxu0 0
    %4483 = vmatprep.subr.bf16.mxu0 0
    %4484 = vmatpush2.bf16.msra.mxu0 0
    %4485 = vmatprep.subr.bf16.mxu0 0
    %4486 = vmatpush2.bf16.msra.mxu0 0
    %4487 = vmatprep.subr.bf16.mxu0 0
    %4488 = vmatpush2.bf16.msra.mxu0 0
    %4489 = vmatprep.mubr.bf16.mxu0 0
    %4490 = vmatmul.mubr.bf16.gmra.mxu0 %v4455
    %v4491 = vpop.f32.mrf.mxu0
    %v4492 = vadd.f32 0.0, %v4491
    %v4493 = vpop.f32.mrf.mxu0
    %v4494 = vpop.f32.mrf.mxu0
    %v4495 = vpop.f32.mrf.mxu0
    %4496 = vdwg.mxu0
    %v4497 = vlaneseq
    %v4498 = vshrl.u32 %v4497, 7
    %v4499 = vsub.s32 7, %v4498
    %v4500 = vrot.slane %v1886, %v4499
    %v4501 = vadd.f32 %v4492, %v4500
    %vm4502 = vcmask 25600
    %v4503 = vsel %vm4502, %v4501, -inf
    %4504 = vmax.xlane.f32.xlu0 %v4503
    %v4505 = vpop.xlane.xlu0 %4504
    %v4506 = vsub.f32 %v4501, %v4505
    %v4507 = vmul.f32 %v4506, 1.442695
    %v4508 = vpow.pop %v4507
    %v4509 = vsel %vm4502, %v4508, 0.0
    %4510 = vadd.xlane.f32.xlu0 %v4509
    %v4511 = vpop.xlane.xlu0 %4510
    %v4512 = vrcp.pop %v4511
    %v4513 = vmul.f32 %v4508, %v4512
    %4514 = vst.msk [vmem:[#allocation9] sm:$0x3] %vm4502, %v4513
    // Predicated region
    $region26: #{bganet_forward.1} parent=1 // pred_check
      _
    $region27: #{bganet_forward.1} parent=1 // pred_check_branch
      %4516 = sbr.rel (0) target = $region29
    $region28: #{bganet_forward.1} parent=1 // pred_region
      %s4518 = ssub.s32 32, 32
      %4519 = vsyncadd [#allocation6], %s4518
      %s4521 = sshll.u32 [#allocation9], 4
      %s4522 = int_to_ptr.vmem [resolvable:$true] %s4521
      %4524 = dma.vmem_to_hbm [thread:$0]  %s4522, 32, %s4, [#allocation6]
    $region29: #{bganet_forward.1} parent=1 // pred_fallthru
      _
    // Predicated region
    $region30: #{bganet_forward.1} parent=1 // pred_check
      _
    $region31: #{bganet_forward.1} parent=1 // pred_check_branch
      %4526 = sbr.rel (0) target = $region33
    $region32: #{bganet_forward.1} parent=1 // pred_region
      %s4528 = ssub.s32 32, 32
      %4529 = vsyncadd [#allocation11], %s4528
      %s4531 = sshll.u32 [#allocation10], 4
      %s4532 = int_to_ptr.vmem [resolvable:$true] %s4531
      %4534 = dma.vmem_to_hbm [thread:$0]  %s4532, 32, %s5, [#allocation11]
    $region33: #{bganet_forward.1} parent=1 // pred_fallthru
      _
    // Predicated region
    $region34: #{bganet_forward.1} parent=1 // pred_check
      _
    $region35: #{bganet_forward.1} parent=1 // pred_check_branch
      %4536 = sbr.rel (0) target = $region37
    $region36: #{bganet_forward.1} parent=1 // pred_region
      %4537 = dma.done [#allocation6], 32
    $region37: #{bganet_forward.1} parent=1 // pred_fallthru
      _
    // Predicated region
    $region38: #{bganet_forward.1} parent=1 // pred_check
      _
    $region39: #{bganet_forward.1} parent=1 // pred_check_branch
      %4539 = sbr.rel (0) target = $region41
    $region40: #{bganet_forward.1} parent=1 // pred_region
      %4540 = dma.done [#allocation11], 32
    $region41: #{bganet_forward.1} parent=1 // pred_fallthru
      _
    %4541 = vsyncpa [#allocation5], 1
    %4542 = vsyncpa [#allocation8], 1
    %4543 = vsyncpa [#allocation6], 1
    %4544 = vsyncpa [#allocation11], 1
  %4545 = vsyncmov [#allocation3]
  %s4546 = vpop.sfrf %4545
  %p4547 = scmp.eq.s32.totalorder %s4546, 0
  %p4548 = pneg %p4547
  %4550 = shalt.err (%p4548)

</llo_original>
